<compile_context>
chip_gen: v5e
topology: v5e:2x2
jax: 0.10.0
libtpu: 0.0.40
codegen_flags: <defaults>
</compile_context>

<pallas_src>
import functools
import math

import jax
import jax.numpy as jnp
from jax import lax
from jax.experimental import pallas as pl
from jax.experimental.pallas import tpu as pltpu

_SUBLANE = 8
_MAX_ROW_TILE = 512                 # pipelined row tiles; VMEM-safe on v7x
_VMEM_LIMIT = 32 * 1024 * 1024      # within the scoped default on v5e/v6e/v7x
_LN_EPS = 1e-5


# ----------------------------------------------------------------------------
# helpers
# ----------------------------------------------------------------------------
def _round_up(n, m):
    return (n + m - 1) // m * m


def _pick_row_tiling(rows):
    """Return (row_tile, padded_rows); tile is a multiple of 8 sublanes, the
    grid divides evenly, and (when possible) the grid has >=2 steps so the
    'parallel' axis can shard across v7x's two TensorCores."""
    rows_p = _round_up(max(rows, 1), _SUBLANE)
    tm = min(_MAX_ROW_TILE, rows_p)
    if rows_p // tm < 2 and rows_p > _SUBLANE:
        tm = _round_up(rows_p // 2, _SUBLANE)
    return tm, _round_up(rows_p, tm)


def _compiler_params():
    return pltpu.CompilerParams(
        dimension_semantics=("parallel",),      # megacore sharding on v7x
        vmem_limit_bytes=_VMEM_LIMIT,
    )


def _layernorm_f32(x, eps):
    mu = jnp.mean(x, axis=-1, keepdims=True)
    xc = x - mu
    var = jnp.mean(xc * xc, axis=-1, keepdims=True)
    return xc * lax.rsqrt(var + eps)


# ----------------------------------------------------------------------------
# kernels
# ----------------------------------------------------------------------------
def _attn_block_kernel(x_ref, w_in_ref, b_in_ref, w_out_ref, b_out_ref,
                       o_ref, *, nhead, scale, eps):
    """Fused pre-norm self-attention block for ONE batch element:
       out = x + out_proj( MHA( LayerNorm(x) ) ).
    Block shapes: x_ref/o_ref (1, S, E); weights resident across grid steps.
    TODO(synk): attn_mask / key_padding_mask not implemented (forward under
    test passes attention_mask=None, so key_padding_mask is None)."""
    x = x_ref[0].astype(jnp.float32)                          # (S, E)
    h = _layernorm_f32(x, eps)                                # LN (no affine)

    # QKV projection: bf16-capable MXU operands, f32 accumulate.
    qkv = jnp.dot(h.astype(w_in_ref.dtype), w_in_ref[...],
                  preferred_element_type=jnp.float32) + b_in_ref[...]

    e = x.shape[-1]
    dh = e // nhead
    head_outs = []
    for hh in range(nhead):                                   # static unroll
        lo = hh * dh
        q = qkv[:, lo:lo + dh]                                # (S, Dh)
        k = qkv[:, e + lo:e + lo + dh]
        v = qkv[:, 2 * e + lo:2 * e + lo + dh]
        # q @ k^T without an explicit transpose (contract last dims).
        s = lax.dot_general(q, k, (((1,), (1,)), ((), ())),
                            preferred_element_type=jnp.float32) * scale
        s = s - jnp.max(s, axis=-1, keepdims=True)
        p = jnp.exp(s)
        p = p * pl.reciprocal(jnp.sum(p, axis=-1, keepdims=True), approx=True)
        # attention-weight dropout is identity in eval mode.
        head_outs.append(jnp.dot(p, v, preferred_element_type=jnp.float32))
    attn = jnp.concatenate(head_outs, axis=-1)                # (S, E) lane-dense

    y = jnp.dot(attn.astype(w_out_ref.dtype), w_out_ref[...],
                preferred_element_type=jnp.float32) + b_out_ref[...]
    o_ref[0] = (x + y).astype(o_ref.dtype)                    # fused residual


def _mlp_block_kernel(x_ref, w1_ref, b1_ref, w2_ref, b2_ref, o_ref, *, eps):
    """Fused pre-norm MLP block on a (tm, E) row tile:
       out = x + fc2( relu( fc1( LayerNorm(x) ) ) )."""
    x = x_ref[...].astype(jnp.float32)
    h = _layernorm_f32(x, eps)
    a = jnp.dot(h.astype(w1_ref.dtype), w1_ref[...],
                preferred_element_type=jnp.float32) + b1_ref[...]
    a = jnp.maximum(a, 0.0)                                   # ReLU in f32
    # dropout(p) is identity in eval mode.
    y = jnp.dot(a.astype(w2_ref.dtype), w2_ref[...],
                preferred_element_type=jnp.float32) + b2_ref[...]
    o_ref[...] = (x + y).astype(o_ref.dtype)                  # fused residual


# ----------------------------------------------------------------------------
# wrappers
# ----------------------------------------------------------------------------
def attention_block_pallas(x, w_in, b_in, w_out, b_out, nhead):
    """x: [B, S, E] -> x + selfattn_block(x), one grid step per batch elem."""
    b, s, e = x.shape
    dh = e // nhead
    scale = 1.0 / math.sqrt(dh)
    blk = pl.BlockSpec((1, s, e), lambda i: (i, 0, 0))
    cost = pl.CostEstimate(
        flops=2 * b * s * e * (3 * e + e) + 4 * b * nhead * s * s * dh,
        transcendentals=b * nhead * s * s,
        bytes_accessed=4 * (2 * b * s * e + 4 * e * e + 4 * e),
    )
    return pl.pallas_call(
        functools.partial(_attn_block_kernel, nhead=nhead, scale=scale,
                          eps=_LN_EPS),
        out_shape=jax.ShapeDtypeStruct((b, s, e), x.dtype),
        grid=(b,),
        in_specs=[
            blk,
            pl.BlockSpec((e, 3 * e), lambda i: (0, 0)),   # weights stay resident
            pl.BlockSpec((1, 3 * e), lambda i: (0, 0)),
            pl.BlockSpec((e, e), lambda i: (0, 0)),
            pl.BlockSpec((1, e), lambda i: (0, 0)),
        ],
        out_specs=blk,
        compiler_params=_compiler_params(),
        cost_estimate=cost,
    )(x, w_in, b_in, w_out, b_out)


def mlp_block_pallas(x2d, w1, b1, w2, b2):
    """x2d: [rows, E] -> x2d + mlp_block(x2d), tiled over rows."""
    rows, e = x2d.shape
    hid = w1.shape[1]
    tm, rows_p = _pick_row_tiling(rows)
    xp = x2d if rows_p == rows else jnp.pad(x2d, ((0, rows_p - rows), (0, 0)))
    cost = pl.CostEstimate(
        flops=4 * rows_p * e * hid,
        transcendentals=0,
        bytes_accessed=4 * (2 * rows_p * e + 2 * e * hid + hid + e),
    )
    out = pl.pallas_call(
        functools.partial(_mlp_block_kernel, eps=_LN_EPS),
        out_shape=jax.ShapeDtypeStruct((rows_p, e), x2d.dtype),
        grid=(rows_p // tm,),
        in_specs=[
            pl.BlockSpec((tm, e), lambda i: (i, 0)),
            pl.BlockSpec((e, hid), lambda i: (0, 0)),     # weights stay resident
            pl.BlockSpec((1, hid), lambda i: (0, 0)),
            pl.BlockSpec((hid, e), lambda i: (0, 0)),
            pl.BlockSpec((1, e), lambda i: (0, 0)),
        ],
        out_specs=pl.BlockSpec((tm, e), lambda i: (i, 0)),
        compiler_params=_compiler_params(),
        cost_estimate=cost,
    )(xp, w1, b1, w2, b2)
    return out[:rows]


# ----------------------------------------------------------------------------
# model forward (Pallas)
# ----------------------------------------------------------------------------
def encoder_layer_pallas(x, lp, nhead):
    b, s, e = x.shape
    x = attention_block_pallas(x, lp["w_in"], lp["b_in"],
                               lp["w_out"], lp["b_out"], nhead)
    x2d = mlp_block_pallas(x.reshape(b * s, e),
                           lp["w1"], lp["b1"], lp["w2"], lp["b2"])
    return x2d.reshape(b, s, e)


def sentiment_classifier_pallas(params, input_ids, nhead):
    b, s = input_ids.shape
    # Embedding lookup is a data-dependent gather; done with jnp.take in the
    # wrapper (not a compute hotspot).
    # TODO(synk): optional Pallas row-gather via pl.Element + scalar prefetch.
    x = jnp.take(params["embedding"], input_ids, axis=0)     # [B, S, E]
    x = x + params["pe"][:s][None]      # positional encoding; dropout identity
    for lp in params["layers"]:
        x = encoder_layer_pallas(x, lp, nhead)
    cls = x[:, 0, :]                                          # [B, E]
    # Tiny [B,E]@[E,C] GEMV: plain XLA dot, not worth a padded kernel launch.
    return cls @ params["w_cls"] + params["b_cls"]


# ----------------------------------------------------------------------------
# params + pure-JAX reference
# ----------------------------------------------------------------------------
def init_params(key, vocab_size, num_classes, d_model, nhead, dim_ff,
                num_layers, max_len, dtype=jnp.float32):
    # Flip dtype to jnp.bfloat16 on v5e/v6e/v7x: kernels keep bf16 MXU operands
    # with f32 accumulation and do LN/softmax math in f32.
    def xavier(k, shape):
        bound = math.sqrt(6.0 / (shape[0] + shape[1]))
        return jax.random.uniform(k, shape, dtype, -bound, bound)

    def bias(k, n):
        return jax.random.uniform(k, (1, n), dtype, -0.05, 0.05)  # pre-shaped

    keys = jax.random.split(key, 2 + num_layers)
    params = {"embedding": xavier(keys[0], (vocab_size, d_model))}

    position = jnp.arange(max_len, dtype=jnp.float32)[:, None]
    div_term = jnp.exp(jnp.arange(0, d_model, 2, dtype=jnp.float32)
                       * (-math.log(10000.0) / d_model))
    ang = position * div_term
    params["pe"] = jnp.stack([jnp.sin(ang), jnp.cos(ang)],
                             axis=-1).reshape(max_len, d_model).astype(dtype)

    layers = []
    for li in range(num_layers):
        lk = jax.random.split(keys[1 + li], 8)
        layers.append(dict(
            w_in=xavier(lk[0], (d_model, 3 * d_model)),
            b_in=bias(lk[1], 3 * d_model),
            w_out=xavier(lk[2], (d_model, d_model)),
            b_out=bias(lk[3], d_model),
            w1=xavier(lk[4], (d_model, dim_ff)),
            b1=bias(lk[5], dim_ff),
            w2=xavier(lk[6], (dim_ff, d_model)),
            b2=bias(lk[7], d_model),
        ))
    params["layers"] = layers
    ck = jax.random.split(keys[-1], 2)
    params["w_cls"] = xavier(ck[0], (d_model, num_classes))
    params["b_cls"] = bias(ck[1], num_classes)
    return params


def _ln_ref(x, eps=_LN_EPS):
    mu = jnp.mean(x, -1, keepdims=True)
    var = jnp.mean((x - mu) ** 2, -1, keepdims=True)
    return (x - mu) * lax.rsqrt(var + eps)


def reference_forward(params, input_ids, nhead):
    x = params["embedding"][input_ids]
    b, s = input_ids.shape
    e = x.shape[-1]
    dh = e // nhead
    x = x + params["pe"][:s][None]
    for lp in params["layers"]:
        h = _ln_ref(x)
        qkv = h @ lp["w_in"] + lp["b_in"]
        q, k, v = jnp.split(qkv, 3, axis=-1)

        def heads(t):
            return t.reshape(b, s, nhead, dh).transpose(0, 2, 1, 3)

        sc = jnp.einsum("bhqd,bhkd->bhqk", heads(q), heads(k)) / math.sqrt(dh)
        p = jax.nn.softmax(sc, axis=-1)
        o = jnp.einsum("bhqk,bhkd->bhqd", p, heads(v))
        o = o.transpose(0, 2, 1, 3).reshape(b, s, e)
        x = x + (o @ lp["w_out"] + lp["b_out"])
        h2 = _ln_ref(x)
        m = jnp.maximum(h2 @ lp["w1"] + lp["b1"], 0.0) @ lp["w2"] + lp["b2"]
        x = x + m
    return x[:, 0, :] @ params["w_cls"] + params["b_cls"]


# ----------------------------------------------------------------------------
if __name__ == "__main__":
    vocab_size, num_classes = 100, 2
    d_model, nhead, dim_ff = 128, 8, 512
    num_layers, max_len = 2, 128
    batch, seq = 2, 8

    key = jax.random.PRNGKey(0)
    kparams, kids = jax.random.split(key)
    params = init_params(kparams, vocab_size, num_classes, d_model, nhead,
                         dim_ff, num_layers, max_len)
    input_ids = jax.random.randint(kids, (batch, seq), 0, vocab_size)

    fwd = jax.jit(functools.partial(sentiment_classifier_pallas, nhead=nhead))
    logits = fwd(params, input_ids)
    jax.block_until_ready(logits)

    ref = reference_forward(params, input_ids, nhead)
    assert logits.shape == (batch, num_classes)
    err = float(jnp.max(jnp.abs(logits - ref)))
    assert jnp.allclose(logits, ref, atol=3e-2, rtol=3e-2), err

    print("KERNEL_OK")
</pallas_src>

<mosaic_0001>
module attributes {stable_mosaic.version = 11 : i64} {
  func.func @_mlp_block_kernel(%arg0: i32, %arg1: memref<8x128xf32, #tpu.memory_space<vmem>>, %arg2: memref<128x512xf32, #tpu.memory_space<vmem>>, %arg3: memref<1x512xf32, #tpu.memory_space<vmem>>, %arg4: memref<512x128xf32, #tpu.memory_space<vmem>>, %arg5: memref<1x128xf32, #tpu.memory_space<vmem>>, %arg6: memref<8x128xf32, #tpu.memory_space<vmem>>) attributes {dimension_semantics = [#tpu.dimension_semantics<parallel>], iteration_bounds = array<i64: 2>, scalar_prefetch = 0 : i64, scratch_operands = 0 : i64, tpu.core_type = #tpu.core_type<tc>, window_params = [{transform_indices = @transform_0, window_bounds = array<i64: 8, 128>}, {pipeline_mode = #tpu.pipeline_mode<synchronous>, transform_indices = @transform_1, window_bounds = array<i64: 128, 512>}, {pipeline_mode = #tpu.pipeline_mode<synchronous>, transform_indices = @transform_2, window_bounds = array<i64: 1, 512>}, {pipeline_mode = #tpu.pipeline_mode<synchronous>, transform_indices = @transform_3, window_bounds = array<i64: 512, 128>}, {pipeline_mode = #tpu.pipeline_mode<synchronous>, transform_indices = @transform_4, window_bounds = array<i64: 1, 128>}, {transform_indices = @transform_5, window_bounds = array<i64: 8, 128>}]} {
    %c0 = arith.constant 0 : index
    %c0_0 = arith.constant 0 : index
    %0 = vector.load %arg1[%c0, %c0_0] : memref<8x128xf32, #tpu.memory_space<vmem>>, vector<8x128xf32>
    %cst = arith.constant dense<0.000000e+00> : vector<8xf32>
    %1 = vector.multi_reduction <add>, %0, %cst [1] : vector<8x128xf32> to vector<8xf32>
    %2 = vector.shape_cast %1 : vector<8xf32> to vector<8x1xf32>
    %cst_1 = arith.constant 1.280000e+02 : f32
    %3 = vector.broadcast %cst_1 : f32 to vector<8x1xf32>
    %4 = arith.divf %2, %3 : vector<8x1xf32>
    %5 = vector.broadcast %4 : vector<8x1xf32> to vector<8x128xf32>
    %6 = arith.subf %0, %5 : vector<8x128xf32>
    %7 = arith.mulf %6, %6 : vector<8x128xf32>
    %cst_2 = arith.constant dense<0.000000e+00> : vector<8xf32>
    %8 = vector.multi_reduction <add>, %7, %cst_2 [1] : vector<8x128xf32> to vector<8xf32>
    %9 = vector.shape_cast %8 : vector<8xf32> to vector<8x1xf32>
    %cst_3 = arith.constant 1.280000e+02 : f32
    %10 = vector.broadcast %cst_3 : f32 to vector<8x1xf32>
    %11 = arith.divf %9, %10 : vector<8x1xf32>
    %cst_4 = arith.constant 9.99999974E-6 : f32
    %12 = vector.broadcast %cst_4 : f32 to vector<8x1xf32>
    %13 = arith.addf %11, %12 : vector<8x1xf32>
    %14 = math.rsqrt %13 : vector<8x1xf32>
    %15 = vector.broadcast %14 : vector<8x1xf32> to vector<8x128xf32>
    %16 = arith.mulf %6, %15 : vector<8x128xf32>
    %c0_5 = arith.constant 0 : index
    %c0_6 = arith.constant 0 : index
    %17 = vector.load %arg2[%c0_5, %c0_6] : memref<128x512xf32, #tpu.memory_space<vmem>>, vector<128x512xf32>
    %cst_7 = arith.constant dense<0.000000e+00> : vector<8x512xf32>
    %18 = tpu.matmul %16, %17, %cst_7 {dimension_numbers = #tpu.dot_dimension_numbers<[1], [0], [0], [1], [0, 0, 1, 1], [], []>} : vector<8x128xf32>, vector<128x512xf32>, vector<8x512xf32> -> vector<8x512xf32>
    %c0_8 = arith.constant 0 : index
    %c0_9 = arith.constant 0 : index
    %19 = vector.load %arg3[%c0_8, %c0_9] : memref<1x512xf32, #tpu.memory_space<vmem>>, vector<1x512xf32>
    %20 = vector.broadcast %19 : vector<1x512xf32> to vector<8x512xf32>
    %21 = arith.addf %18, %20 : vector<8x512xf32>
    %cst_10 = arith.constant 0.000000e+00 : f32
    %22 = vector.broadcast %cst_10 : f32 to vector<8x512xf32>
    %23 = arith.maximumf %21, %22 : vector<8x512xf32>
    %c0_11 = arith.constant 0 : index
    %c0_12 = arith.constant 0 : index
    %24 = vector.load %arg4[%c0_11, %c0_12] : memref<512x128xf32, #tpu.memory_space<vmem>>, vector<512x128xf32>
    %cst_13 = arith.constant dense<0.000000e+00> : vector<8x128xf32>
    %25 = tpu.matmul %23, %24, %cst_13 {dimension_numbers = #tpu.dot_dimension_numbers<[1], [0], [0], [1], [0, 0, 1, 1], [], []>} : vector<8x512xf32>, vector<512x128xf32>, vector<8x128xf32> -> vector<8x128xf32>
    %c0_14 = arith.constant 0 : index
    %c0_15 = arith.constant 0 : index
    %26 = vector.load %arg5[%c0_14, %c0_15] : memref<1x128xf32, #tpu.memory_space<vmem>>, vector<1x128xf32>
    %27 = vector.broadcast %26 : vector<1x128xf32> to vector<8x128xf32>
    %28 = arith.addf %25, %27 : vector<8x128xf32>
    %29 = arith.addf %0, %28 : vector<8x128xf32>
    %c0_16 = arith.constant 0 : index
    %c0_17 = arith.constant 0 : index
    %30 = vector.load %arg6[%c0_16, %c0_17] : memref<8x128xf32, #tpu.memory_space<vmem>>, vector<8x128xf32>
    tpu.vector_store %arg6[%c0_16, %c0_17], %29 {strides = array<i32>} : memref<8x128xf32, #tpu.memory_space<vmem>>, vector<8x128xf32>,
    return
  }
  func.func @transform_0(%arg0: i32) -> (i32, i32) {
    %c0_i32 = arith.constant 0 : i32
    %c0_i32_0 = arith.constant 0 : i32
    return %arg0, %c0_i32 : i32, i32
  }
  func.func @transform_1(%arg0: i32) -> (i32, i32) {
    %c0_i32 = arith.constant 0 : i32
    %c0_i32_0 = arith.constant 0 : i32
    %c0_i32_1 = arith.constant 0 : i32
    return %c0_i32, %c0_i32_0 : i32, i32
  }
  func.func @transform_2(%arg0: i32) -> (i32, i32) {
    %c0_i32 = arith.constant 0 : i32
    %c0_i32_0 = arith.constant 0 : i32
    %c0_i32_1 = arith.constant 0 : i32
    return %c0_i32, %c0_i32_0 : i32, i32
  }
  func.func @transform_3(%arg0: i32) -> (i32, i32) {
    %c0_i32 = arith.constant 0 : i32
    %c0_i32_0 = arith.constant 0 : i32
    %c0_i32_1 = arith.constant 0 : i32
    return %c0_i32, %c0_i32_0 : i32, i32
  }
  func.func @transform_4(%arg0: i32) -> (i32, i32) {
    %c0_i32 = arith.constant 0 : i32
    %c0_i32_0 = arith.constant 0 : i32
    %c0_i32_1 = arith.constant 0 : i32
    return %c0_i32, %c0_i32_0 : i32, i32
  }
  func.func @transform_5(%arg0: i32) -> (i32, i32) {
    %c0_i32 = arith.constant 0 : i32
    %c0_i32_0 = arith.constant 0 : i32
    return %arg0, %c0_i32 : i32, i32
  }
}

module attributes {stable_mosaic.version = 11 : i64} {
  func.func @_attn_block_kernel(%arg0: i32, %arg1: memref<1x8x128xf32, #tpu.memory_space<vmem>>, %arg2: memref<128x384xf32, #tpu.memory_space<vmem>>, %arg3: memref<1x384xf32, #tpu.memory_space<vmem>>, %arg4: memref<128x128xf32, #tpu.memory_space<vmem>>, %arg5: memref<1x128xf32, #tpu.memory_space<vmem>>, %arg6: memref<1x8x128xf32, #tpu.memory_space<vmem>>) attributes {dimension_semantics = [#tpu.dimension_semantics<parallel>], iteration_bounds = array<i64: 2>, scalar_prefetch = 0 : i64, scratch_operands = 0 : i64, tpu.core_type = #tpu.core_type<tc>, window_params = [{transform_indices = @transform_0, window_bounds = array<i64: 1, 8, 128>}, {pipeline_mode = #tpu.pipeline_mode<synchronous>, transform_indices = @transform_1, window_bounds = array<i64: 128, 384>}, {pipeline_mode = #tpu.pipeline_mode<synchronous>, transform_indices = @transform_2, window_bounds = array<i64: 1, 384>}, {pipeline_mode = #tpu.pipeline_mode<synchronous>, transform_indices = @transform_3, window_bounds = array<i64: 128, 128>}, {pipeline_mode = #tpu.pipeline_mode<synchronous>, transform_indices = @transform_4, window_bounds = array<i64: 1, 128>}, {transform_indices = @transform_5, window_bounds = array<i64: 1, 8, 128>}]} {
    %c0 = arith.constant 0 : index
    %c0_0 = arith.constant 0 : index
    %c0_1 = arith.constant 0 : index
    %0 = vector.load %arg1[%c0, %c0_0, %c0_1] : memref<1x8x128xf32, #tpu.memory_space<vmem>>, vector<1x8x128xf32>
    %1 = vector.shape_cast %0 : vector<1x8x128xf32> to vector<8x128xf32>
    %cst = arith.constant dense<0.000000e+00> : vector<8xf32>
    %2 = vector.multi_reduction <add>, %1, %cst [1] : vector<8x128xf32> to vector<8xf32>
    %3 = vector.shape_cast %2 : vector<8xf32> to vector<8x1xf32>
    %cst_2 = arith.constant 1.280000e+02 : f32
    %4 = vector.broadcast %cst_2 : f32 to vector<8x1xf32>
    %5 = arith.divf %3, %4 : vector<8x1xf32>
    %6 = vector.broadcast %5 : vector<8x1xf32> to vector<8x128xf32>
    %7 = arith.subf %1, %6 : vector<8x128xf32>
    %8 = arith.mulf %7, %7 : vector<8x128xf32>
    %cst_3 = arith.constant dense<0.000000e+00> : vector<8xf32>
    %9 = vector.multi_reduction <add>, %8, %cst_3 [1] : vector<8x128xf32> to vector<8xf32>
    %10 = vector.shape_cast %9 : vector<8xf32> to vector<8x1xf32>
    %cst_4 = arith.constant 1.280000e+02 : f32
    %11 = vector.broadcast %cst_4 : f32 to vector<8x1xf32>
    %12 = arith.divf %10, %11 : vector<8x1xf32>
    %cst_5 = arith.constant 9.99999974E-6 : f32
    %13 = vector.broadcast %cst_5 : f32 to vector<8x1xf32>
    %14 = arith.addf %12, %13 : vector<8x1xf32>
    %15 = math.rsqrt %14 : vector<8x1xf32>
    %16 = vector.broadcast %15 : vector<8x1xf32> to vector<8x128xf32>
    %17 = arith.mulf %7, %16 : vector<8x128xf32>
    %c0_6 = arith.constant 0 : index
    %c0_7 = arith.constant 0 : index
    %18 = vector.load %arg2[%c0_6, %c0_7] : memref<128x384xf32, #tpu.memory_space<vmem>>, vector<128x384xf32>
    %cst_8 = arith.constant dense<0.000000e+00> : vector<8x384xf32>
    %19 = tpu.matmul %17, %18, %cst_8 {dimension_numbers = #tpu.dot_dimension_numbers<[1], [0], [0], [1], [0, 0, 1, 1], [], []>} : vector<8x128xf32>, vector<128x384xf32>, vector<8x384xf32> -> vector<8x384xf32>
    %c0_9 = arith.constant 0 : index
    %c0_10 = arith.constant 0 : index
    %20 = vector.load %arg3[%c0_9, %c0_10] : memref<1x384xf32, #tpu.memory_space<vmem>>, vector<1x384xf32>
    %21 = vector.broadcast %20 : vector<1x384xf32> to vector<8x384xf32>
    %22 = arith.addf %19, %21 : vector<8x384xf32>
    %23 = vector.extract_strided_slice %22 {offsets = [0, 0], sizes = [8, 16], strides = [1, 1]} : vector<8x384xf32> to vector<8x16xf32>
    %24 = vector.extract_strided_slice %22 {offsets = [0, 128], sizes = [8, 16], strides = [1, 1]} : vector<8x384xf32> to vector<8x16xf32>
    %25 = vector.extract_strided_slice %22 {offsets = [0, 256], sizes = [8, 16], strides = [1, 1]} : vector<8x384xf32> to vector<8x16xf32>
    %cst_11 = arith.constant dense<0.000000e+00> : vector<8x8xf32>
    %26 = tpu.matmul %23, %24, %cst_11 {dimension_numbers = #tpu.dot_dimension_numbers<[1], [1], [0], [0], [0, 0, 1, 0], [], []>} : vector<8x16xf32>, vector<8x16xf32>, vector<8x8xf32> -> vector<8x8xf32>
    %cst_12 = arith.constant 2.500000e-01 : f32
    %27 = vector.broadcast %cst_12 : f32 to vector<8x8xf32>
    %28 = arith.mulf %26, %27 : vector<8x8xf32>
    %cst_13 = arith.constant dense<0xFF800000> : vector<8xf32>
    %29 = vector.multi_reduction <maximumf>, %28, %cst_13 [1] : vector<8x8xf32> to vector<8xf32>
    %30 = vector.shape_cast %29 : vector<8xf32> to vector<8x1xf32>
    %31 = vector.broadcast %30 : vector<8x1xf32> to vector<8x8xf32>
    %32 = arith.subf %28, %31 : vector<8x8xf32>
    %33 = math.exp %32 : vector<8x8xf32>
    %cst_14 = arith.constant dense<0.000000e+00> : vector<8xf32>
    %34 = vector.multi_reduction <add>, %33, %cst_14 [1] : vector<8x8xf32> to vector<8xf32>
    %35 = vector.shape_cast %34 : vector<8xf32> to vector<8x1xf32>
    %36 = tpu.reciprocal %35 {approx = true} : vector<8x1xf32> -> vector<8x1xf32>
    %37 = vector.broadcast %36 : vector<8x1xf32> to vector<8x8xf32>
    %38 = arith.mulf %33, %37 : vector<8x8xf32>
    %cst_15 = arith.constant dense<0.000000e+00> : vector<8x16xf32>
    %39 = tpu.matmul %38, %25, %cst_15 {dimension_numbers = #tpu.dot_dimension_numbers<[1], [0], [0], [1], [0, 0, 1, 1], [], []>} : vector<8x8xf32>, vector<8x16xf32>, vector<8x16xf32> -> vector<8x16xf32>
    %40 = vector.extract_strided_slice %22 {offsets = [0, 16], sizes = [8, 16], strides = [1, 1]} : vector<8x384xf32> to vector<8x16xf32>
    %41 = vector.extract_strided_slice %22 {offsets = [0, 144], sizes = [8, 16], strides = [1, 1]} : vector<8x384xf32> to vector<8x16xf32>
    %42 = vector.extract_strided_slice %22 {offsets = [0, 272], sizes = [8, 16], strides = [1, 1]} : vector<8x384xf32> to vector<8x16xf32>
    %cst_16 = arith.constant dense<0.000000e+00> : vector<8x8xf32>
    %43 = tpu.matmul %40, %41, %cst_16 {dimension_numbers = #tpu.dot_dimension_numbers<[1], [1], [0], [0], [0, 0, 1, 0], [], []>} : vector<8x16xf32>, vector<8x16xf32>, vector<8x8xf32> -> vector<8x8xf32>
    %cst_17 = arith.constant 2.500000e-01 : f32
    %44 = vector.broadcast %cst_17 : f32 to vector<8x8xf32>
    %45 = arith.mulf %43, %44 : vector<8x8xf32>
    %cst_18 = arith.constant dense<0xFF800000> : vector<8xf32>
    %46 = vector.multi_reduction <maximumf>, %45, %cst_18 [1] : vector<8x8xf32> to vector<8xf32>
    %47 = vector.shape_cast %46 : vector<8xf32> to vector<8x1xf32>
    %48 = vector.broadcast %47 : vector<8x1xf32> to vector<8x8xf32>
    %49 = arith.subf %45, %48 : vector<8x8xf32>
    %50 = math.exp %49 : vector<8x8xf32>
    %cst_19 = arith.constant dense<0.000000e+00> : vector<8xf32>
    %51 = vector.multi_reduction <add>, %50, %cst_19 [1] : vector<8x8xf32> to vector<8xf32>
    %52 = vector.shape_cast %51 : vector<8xf32> to vector<8x1xf32>
    %53 = tpu.reciprocal %52 {approx = true} : vector<8x1xf32> -> vector<8x1xf32>
    %54 = vector.broadcast %53 : vector<8x1xf32> to vector<8x8xf32>
    %55 = arith.mulf %50, %54 : vector<8x8xf32>
    %cst_20 = arith.constant dense<0.000000e+00> : vector<8x16xf32>
    %56 = tpu.matmul %55, %42, %cst_20 {dimension_numbers = #tpu.dot_dimension_numbers<[1], [0], [0], [1], [0, 0, 1, 1], [], []>} : vector<8x8xf32>, vector<8x16xf32>, vector<8x16xf32> -> vector<8x16xf32>
    %57 = vector.extract_strided_slice %22 {offsets = [0, 32], sizes = [8, 16], strides = [1, 1]} : vector<8x384xf32> to vector<8x16xf32>
    %58 = vector.extract_strided_slice %22 {offsets = [0, 160], sizes = [8, 16], strides = [1, 1]} : vector<8x384xf32> to vector<8x16xf32>
    %59 = vector.extract_strided_slice %22 {offsets = [0, 288], sizes = [8, 16], strides = [1, 1]} : vector<8x384xf32> to vector<8x16xf32>
    %cst_21 = arith.constant dense<0.000000e+00> : vector<8x8xf32>
    %60 = tpu.matmul %57, %58, %cst_21 {dimension_numbers = #tpu.dot_dimension_numbers<[1], [1], [0], [0], [0, 0, 1, 0], [], []>} : vector<8x16xf32>, vector<8x16xf32>, vector<8x8xf32> -> vector<8x8xf32>
    %cst_22 = arith.constant 2.500000e-01 : f32
    %61 = vector.broadcast %cst_22 : f32 to vector<8x8xf32>
    %62 = arith.mulf %60, %61 : vector<8x8xf32>
    %cst_23 = arith.constant dense<0xFF800000> : vector<8xf32>
    %63 = vector.multi_reduction <maximumf>, %62, %cst_23 [1] : vector<8x8xf32> to vector<8xf32>
    %64 = vector.shape_cast %63 : vector<8xf32> to vector<8x1xf32>
    %65 = vector.broadcast %64 : vector<8x1xf32> to vector<8x8xf32>
    %66 = arith.subf %62, %65 : vector<8x8xf32>
    %67 = math.exp %66 : vector<8x8xf32>
    %cst_24 = arith.constant dense<0.000000e+00> : vector<8xf32>
    %68 = vector.multi_reduction <add>, %67, %cst_24 [1] : vector<8x8xf32> to vector<8xf32>
    %69 = vector.shape_cast %68 : vector<8xf32> to vector<8x1xf32>
    %70 = tpu.reciprocal %69 {approx = true} : vector<8x1xf32> -> vector<8x1xf32>
    %71 = vector.broadcast %70 : vector<8x1xf32> to vector<8x8xf32>
    %72 = arith.mulf %67, %71 : vector<8x8xf32>
    %cst_25 = arith.constant dense<0.000000e+00> : vector<8x16xf32>
    %73 = tpu.matmul %72, %59, %cst_25 {dimension_numbers = #tpu.dot_dimension_numbers<[1], [0], [0], [1], [0, 0, 1, 1], [], []>} : vector<8x8xf32>, vector<8x16xf32>, vector<8x16xf32> -> vector<8x16xf32>
    %74 = vector.extract_strided_slice %22 {offsets = [0, 48], sizes = [8, 16], strides = [1, 1]} : vector<8x384xf32> to vector<8x16xf32>
    %75 = vector.extract_strided_slice %22 {offsets = [0, 176], sizes = [8, 16], strides = [1, 1]} : vector<8x384xf32> to vector<8x16xf32>
    %76 = vector.extract_strided_slice %22 {offsets = [0, 304], sizes = [8, 16], strides = [1, 1]} : vector<8x384xf32> to vector<8x16xf32>
    %cst_26 = arith.constant dense<0.000000e+00> : vector<8x8xf32>
    %77 = tpu.matmul %74, %75, %cst_26 {dimension_numbers = #tpu.dot_dimension_numbers<[1], [1], [0], [0], [0, 0, 1, 0], [], []>} : vector<8x16xf32>, vector<8x16xf32>, vector<8x8xf32> -> vector<8x8xf32>
    %cst_27 = arith.constant 2.500000e-01 : f32
    %78 = vector.broadcast %cst_27 : f32 to vector<8x8xf32>
    %79 = arith.mulf %77, %78 : vector<8x8xf32>
    %cst_28 = arith.constant dense<0xFF800000> : vector<8xf32>
    %80 = vector.multi_reduction <maximumf>, %79, %cst_28 [1] : vector<8x8xf32> to vector<8xf32>
    %81 = vector.shape_cast %80 : vector<8xf32> to vector<8x1xf32>
    %82 = vector.broadcast %81 : vector<8x1xf32> to vector<8x8xf32>
    %83 = arith.subf %79, %82 : vector<8x8xf32>
    %84 = math.exp %83 : vector<8x8xf32>
    %cst_29 = arith.constant dense<0.000000e+00> : vector<8xf32>
    %85 = vector.multi_reduction <add>, %84, %cst_29 [1] : vector<8x8xf32> to vector<8xf32>
    %86 = vector.shape_cast %85 : vector<8xf32> to vector<8x1xf32>
    %87 = tpu.reciprocal %86 {approx = true} : vector<8x1xf32> -> vector<8x1xf32>
    %88 = vector.broadcast %87 : vector<8x1xf32> to vector<8x8xf32>
    %89 = arith.mulf %84, %88 : vector<8x8xf32>
    %cst_30 = arith.constant dense<0.000000e+00> : vector<8x16xf32>
    %90 = tpu.matmul %89, %76, %cst_30 {dimension_numbers = #tpu.dot_dimension_numbers<[1], [0], [0], [1], [0, 0, 1, 1], [], []>} : vector<8x8xf32>, vector<8x16xf32>, vector<8x16xf32> -> vector<8x16xf32>
    %91 = vector.extract_strided_slice %22 {offsets = [0, 64], sizes = [8, 16], strides = [1, 1]} : vector<8x384xf32> to vector<8x16xf32>
    %92 = vector.extract_strided_slice %22 {offsets = [0, 192], sizes = [8, 16], strides = [1, 1]} : vector<8x384xf32> to vector<8x16xf32>
    %93 = vector.extract_strided_slice %22 {offsets = [0, 320], sizes = [8, 16], strides = [1, 1]} : vector<8x384xf32> to vector<8x16xf32>
    %cst_31 = arith.constant dense<0.000000e+00> : vector<8x8xf32>
    %94 = tpu.matmul %91, %92, %cst_31 {dimension_numbers = #tpu.dot_dimension_numbers<[1], [1], [0], [0], [0, 0, 1, 0], [], []>} : vector<8x16xf32>, vector<8x16xf32>, vector<8x8xf32> -> vector<8x8xf32>
    %cst_32 = arith.constant 2.500000e-01 : f32
    %95 = vector.broadcast %cst_32 : f32 to vector<8x8xf32>
    %96 = arith.mulf %94, %95 : vector<8x8xf32>
    %cst_33 = arith.constant dense<0xFF800000> : vector<8xf32>
    %97 = vector.multi_reduction <maximumf>, %96, %cst_33 [1] : vector<8x8xf32> to vector<8xf32>
    %98 = vector.shape_cast %97 : vector<8xf32> to vector<8x1xf32>
    %99 = vector.broadcast %98 : vector<8x1xf32> to vector<8x8xf32>
    %100 = arith.subf %96, %99 : vector<8x8xf32>
    %101 = math.exp %100 : vector<8x8xf32>
    %cst_34 = arith.constant dense<0.000000e+00> : vector<8xf32>
    %102 = vector.multi_reduction <add>, %101, %cst_34 [1] : vector<8x8xf32> to vector<8xf32>
    %103 = vector.shape_cast %102 : vector<8xf32> to vector<8x1xf32>
    %104 = tpu.reciprocal %103 {approx = true} : vector<8x1xf32> -> vector<8x1xf32>
    %105 = vector.broadcast %104 : vector<8x1xf32> to vector<8x8xf32>
    %106 = arith.mulf %101, %105 : vector<8x8xf32>
    %cst_35 = arith.constant dense<0.000000e+00> : vector<8x16xf32>
    %107 = tpu.matmul %106, %93, %cst_35 {dimension_numbers = #tpu.dot_dimension_numbers<[1], [0], [0], [1], [0, 0, 1, 1], [], []>} : vector<8x8xf32>, vector<8x16xf32>, vector<8x16xf32> -> vector<8x16xf32>
    %108 = vector.extract_strided_slice %22 {offsets = [0, 80], sizes = [8, 16], strides = [1, 1]} : vector<8x384xf32> to vector<8x16xf32>
    %109 = vector.extract_strided_slice %22 {offsets = [0, 208], sizes = [8, 16], strides = [1, 1]} : vector<8x384xf32> to vector<8x16xf32>
    %110 = vector.extract_strided_slice %22 {offsets = [0, 336], sizes = [8, 16], strides = [1, 1]} : vector<8x384xf32> to vector<8x16xf32>
    %cst_36 = arith.constant dense<0.000000e+00> : vector<8x8xf32>
    %111 = tpu.matmul %108, %109, %cst_36 {dimension_numbers = #tpu.dot_dimension_numbers<[1], [1], [0], [0], [0, 0, 1, 0], [], []>} : vector<8x16xf32>, vector<8x16xf32>, vector<8x8xf32> -> vector<8x8xf32>
    %cst_37 = arith.constant 2.500000e-01 : f32
    %112 = vector.broadcast %cst_37 : f32 to vector<8x8xf32>
    %113 = arith.mulf %111, %112 : vector<8x8xf32>
    %cst_38 = arith.constant dense<0xFF800000> : vector<8xf32>
    %114 = vector.multi_reduction <maximumf>, %113, %cst_38 [1] : vector<8x8xf32> to vector<8xf32>
    %115 = vector.shape_cast %114 : vector<8xf32> to vector<8x1xf32>
    %116 = vector.broadcast %115 : vector<8x1xf32> to vector<8x8xf32>
    %117 = arith.subf %113, %116 : vector<8x8xf32>
    %118 = math.exp %117 : vector<8x8xf32>
    %cst_39 = arith.constant dense<0.000000e+00> : vector<8xf32>
    %119 = vector.multi_reduction <add>, %118, %cst_39 [1] : vector<8x8xf32> to vector<8xf32>
    %120 = vector.shape_cast %119 : vector<8xf32> to vector<8x1xf32>
    %121 = tpu.reciprocal %120 {approx = true} : vector<8x1xf32> -> vector<8x1xf32>
    %122 = vector.broadcast %121 : vector<8x1xf32> to vector<8x8xf32>
    %123 = arith.mulf %118, %122 : vector<8x8xf32>
    %cst_40 = arith.constant dense<0.000000e+00> : vector<8x16xf32>
    %124 = tpu.matmul %123, %110, %cst_40 {dimension_numbers = #tpu.dot_dimension_numbers<[1], [0], [0], [1], [0, 0, 1, 1], [], []>} : vector<8x8xf32>, vector<8x16xf32>, vector<8x16xf32> -> vector<8x16xf32>
    %125 = vector.extract_strided_slice %22 {offsets = [0, 96], sizes = [8, 16], strides = [1, 1]} : vector<8x384xf32> to vector<8x16xf32>
    %126 = vector.extract_strided_slice %22 {offsets = [0, 224], sizes = [8, 16], strides = [1, 1]} : vector<8x384xf32> to vector<8x16xf32>
    %127 = vector.extract_strided_slice %22 {offsets = [0, 352], sizes = [8, 16], strides = [1, 1]} : vector<8x384xf32> to vector<8x16xf32>
    %cst_41 = arith.constant dense<0.000000e+00> : vector<8x8xf32>
    %128 = tpu.matmul %125, %126, %cst_41 {dimension_numbers = #tpu.dot_dimension_numbers<[1], [1], [0], [0], [0, 0, 1, 0], [], []>} : vector<8x16xf32>, vector<8x16xf32>, vector<8x8xf32> -> vector<8x8xf32>
    %cst_42 = arith.constant 2.500000e-01 : f32
    %129 = vector.broadcast %cst_42 : f32 to vector<8x8xf32>
    %130 = arith.mulf %128, %129 : vector<8x8xf32>
    %cst_43 = arith.constant dense<0xFF800000> : vector<8xf32>
    %131 = vector.multi_reduction <maximumf>, %130, %cst_43 [1] : vector<8x8xf32> to vector<8xf32>
    %132 = vector.shape_cast %131 : vector<8xf32> to vector<8x1xf32>
    %133 = vector.broadcast %132 : vector<8x1xf32> to vector<8x8xf32>
    %134 = arith.subf %130, %133 : vector<8x8xf32>
    %135 = math.exp %134 : vector<8x8xf32>
    %cst_44 = arith.constant dense<0.000000e+00> : vector<8xf32>
    %136 = vector.multi_reduction <add>, %135, %cst_44 [1] : vector<8x8xf32> to vector<8xf32>
    %137 = vector.shape_cast %136 : vector<8xf32> to vector<8x1xf32>
    %138 = tpu.reciprocal %137 {approx = true} : vector<8x1xf32> -> vector<8x1xf32>
    %139 = vector.broadcast %138 : vector<8x1xf32> to vector<8x8xf32>
    %140 = arith.mulf %135, %139 : vector<8x8xf32>
    %cst_45 = arith.constant dense<0.000000e+00> : vector<8x16xf32>
    %141 = tpu.matmul %140, %127, %cst_45 {dimension_numbers = #tpu.dot_dimension_numbers<[1], [0], [0], [1], [0, 0, 1, 1], [], []>} : vector<8x8xf32>, vector<8x16xf32>, vector<8x16xf32> -> vector<8x16xf32>
    %142 = vector.extract_strided_slice %22 {offsets = [0, 112], sizes = [8, 16], strides = [1, 1]} : vector<8x384xf32> to vector<8x16xf32>
    %143 = vector.extract_strided_slice %22 {offsets = [0, 240], sizes = [8, 16], strides = [1, 1]} : vector<8x384xf32> to vector<8x16xf32>
    %144 = vector.extract_strided_slice %22 {offsets = [0, 368], sizes = [8, 16], strides = [1, 1]} : vector<8x384xf32> to vector<8x16xf32>
    %cst_46 = arith.constant dense<0.000000e+00> : vector<8x8xf32>
    %145 = tpu.matmul %142, %143, %cst_46 {dimension_numbers = #tpu.dot_dimension_numbers<[1], [1], [0], [0], [0, 0, 1, 0], [], []>} : vector<8x16xf32>, vector<8x16xf32>, vector<8x8xf32> -> vector<8x8xf32>
    %cst_47 = arith.constant 2.500000e-01 : f32
    %146 = vector.broadcast %cst_47 : f32 to vector<8x8xf32>
    %147 = arith.mulf %145, %146 : vector<8x8xf32>
    %cst_48 = arith.constant dense<0xFF800000> : vector<8xf32>
    %148 = vector.multi_reduction <maximumf>, %147, %cst_48 [1] : vector<8x8xf32> to vector<8xf32>
    %149 = vector.shape_cast %148 : vector<8xf32> to vector<8x1xf32>
    %150 = vector.broadcast %149 : vector<8x1xf32> to vector<8x8xf32>
    %151 = arith.subf %147, %150 : vector<8x8xf32>
    %152 = math.exp %151 : vector<8x8xf32>
    %cst_49 = arith.constant dense<0.000000e+00> : vector<8xf32>
    %153 = vector.multi_reduction <add>, %152, %cst_49 [1] : vector<8x8xf32> to vector<8xf32>
    %154 = vector.shape_cast %153 : vector<8xf32> to vector<8x1xf32>
    %155 = tpu.reciprocal %154 {approx = true} : vector<8x1xf32> -> vector<8x1xf32>
    %156 = vector.broadcast %155 : vector<8x1xf32> to vector<8x8xf32>
    %157 = arith.mulf %152, %156 : vector<8x8xf32>
    %cst_50 = arith.constant dense<0.000000e+00> : vector<8x16xf32>
    %158 = tpu.matmul %157, %144, %cst_50 {dimension_numbers = #tpu.dot_dimension_numbers<[1], [0], [0], [1], [0, 0, 1, 1], [], []>} : vector<8x8xf32>, vector<8x16xf32>, vector<8x16xf32> -> vector<8x16xf32>
    %159 = tpu.concatenate %39, %56, %73, %90, %107, %124, %141, %158 in 1 : vector<8x16xf32>, vector<8x16xf32>, vector<8x16xf32>, vector<8x16xf32>, vector<8x16xf32>, vector<8x16xf32>, vector<8x16xf32>, vector<8x16xf32> -> vector<8x128xf32>
    %c0_51 = arith.constant 0 : index
    %c0_52 = arith.constant 0 : index
    %160 = vector.load %arg4[%c0_51, %c0_52] : memref<128x128xf32, #tpu.memory_space<vmem>>, vector<128x128xf32>
    %cst_53 = arith.constant dense<0.000000e+00> : vector<8x128xf32>
    %161 = tpu.matmul %159, %160, %cst_53 {dimension_numbers = #tpu.dot_dimension_numbers<[1], [0], [0], [1], [0, 0, 1, 1], [], []>} : vector<8x128xf32>, vector<128x128xf32>, vector<8x128xf32> -> vector<8x128xf32>
    %c0_54 = arith.constant 0 : index
    %c0_55 = arith.constant 0 : index
    %162 = vector.load %arg5[%c0_54, %c0_55] : memref<1x128xf32, #tpu.memory_space<vmem>>, vector<1x128xf32>
    %163 = vector.broadcast %162 : vector<1x128xf32> to vector<8x128xf32>
    %164 = arith.addf %161, %163 : vector<8x128xf32>
    %165 = arith.addf %1, %164 : vector<8x128xf32>
    %c0_56 = arith.constant 0 : index
    %c0_57 = arith.constant 0 : index
    %c0_58 = arith.constant 0 : index
    %166 = vector.load %arg6[%c0_56, %c0_57, %c0_58] : memref<1x8x128xf32, #tpu.memory_space<vmem>>, vector<1x8x128xf32>
    %167 = vector.shape_cast %166 : vector<1x8x128xf32> to vector<8x128xf32>
    %168 = vector.shape_cast %165 : vector<8x128xf32> to vector<1x8x128xf32>
    tpu.vector_store %arg6[%c0_56, %c0_57, %c0_58], %168 {strides = array<i32>} : memref<1x8x128xf32, #tpu.memory_space<vmem>>, vector<1x8x128xf32>,
    return
  }
  func.func @transform_0(%arg0: i32) -> (i32, i32, i32) {
    %c0_i32 = arith.constant 0 : i32
    %c0_i32_0 = arith.constant 0 : i32
    %c0_i32_1 = arith.constant 0 : i32
    return %arg0, %c0_i32, %c0_i32_0 : i32, i32, i32
  }
  func.func @transform_1(%arg0: i32) -> (i32, i32) {
    %c0_i32 = arith.constant 0 : i32
    %c0_i32_0 = arith.constant 0 : i32
    %c0_i32_1 = arith.constant 0 : i32
    return %c0_i32, %c0_i32_0 : i32, i32
  }
  func.func @transform_2(%arg0: i32) -> (i32, i32) {
    %c0_i32 = arith.constant 0 : i32
    %c0_i32_0 = arith.constant 0 : i32
    %c0_i32_1 = arith.constant 0 : i32
    return %c0_i32, %c0_i32_0 : i32, i32
  }
  func.func @transform_3(%arg0: i32) -> (i32, i32) {
    %c0_i32 = arith.constant 0 : i32
    %c0_i32_0 = arith.constant 0 : i32
    %c0_i32_1 = arith.constant 0 : i32
    return %c0_i32, %c0_i32_0 : i32, i32
  }
  func.func @transform_4(%arg0: i32) -> (i32, i32) {
    %c0_i32 = arith.constant 0 : i32
    %c0_i32_0 = arith.constant 0 : i32
    %c0_i32_1 = arith.constant 0 : i32
    return %c0_i32, %c0_i32_0 : i32, i32
  }
  func.func @transform_5(%arg0: i32) -> (i32, i32, i32) {
    %c0_i32 = arith.constant 0 : i32
    %c0_i32_0 = arith.constant 0 : i32
    %c0_i32_1 = arith.constant 0 : i32
    return %arg0, %c0_i32, %c0_i32_0 : i32, i32, i32
  }
}

module attributes {stable_mosaic.version = 11 : i64} {
  func.func @_attn_block_kernel(%arg0: i32, %arg1: memref<1x8x128xf32, #tpu.memory_space<vmem>>, %arg2: memref<128x384xf32, #tpu.memory_space<vmem>>, %arg3: memref<1x384xf32, #tpu.memory_space<vmem>>, %arg4: memref<128x128xf32, #tpu.memory_space<vmem>>, %arg5: memref<1x128xf32, #tpu.memory_space<vmem>>, %arg6: memref<1x8x128xf32, #tpu.memory_space<vmem>>) attributes {dimension_semantics = [#tpu.dimension_semantics<parallel>], iteration_bounds = array<i64: 2>, scalar_prefetch = 0 : i64, scratch_operands = 0 : i64, tpu.core_type = #tpu.core_type<tc>, window_params = [{transform_indices = @transform_0, window_bounds = array<i64: 1, 8, 128>}, {pipeline_mode = #tpu.pipeline_mode<synchronous>, transform_indices = @transform_1, window_bounds = array<i64: 128, 384>}, {pipeline_mode = #tpu.pipeline_mode<synchronous>, transform_indices = @transform_2, window_bounds = array<i64: 1, 384>}, {pipeline_mode = #tpu.pipeline_mode<synchronous>, transform_indices = @transform_3, window_bounds = array<i64: 128, 128>}, {pipeline_mode = #tpu.pipeline_mode<synchronous>, transform_indices = @transform_4, window_bounds = array<i64: 1, 128>}, {transform_indices = @transform_5, window_bounds = array<i64: 1, 8, 128>}]} {
    %c0 = arith.constant 0 : index
    %c0_0 = arith.constant 0 : index
    %c0_1 = arith.constant 0 : index
    %0 = vector.load %arg1[%c0, %c0_0, %c0_1] : memref<1x8x128xf32, #tpu.memory_space<vmem>>, vector<1x8x128xf32>
    %1 = vector.shape_cast %0 : vector<1x8x128xf32> to vector<8x128xf32>
    %cst = arith.constant dense<0.000000e+00> : vector<8xf32>
    %2 = vector.multi_reduction <add>, %1, %cst [1] : vector<8x128xf32> to vector<8xf32>
    %3 = vector.shape_cast %2 : vector<8xf32> to vector<8x1xf32>
    %cst_2 = arith.constant 1.280000e+02 : f32
    %4 = vector.broadcast %cst_2 : f32 to vector<8x1xf32>
    %5 = arith.divf %3, %4 : vector<8x1xf32>
    %6 = vector.broadcast %5 : vector<8x1xf32> to vector<8x128xf32>
    %7 = arith.subf %1, %6 : vector<8x128xf32>
    %8 = arith.mulf %7, %7 : vector<8x128xf32>
    %cst_3 = arith.constant dense<0.000000e+00> : vector<8xf32>
    %9 = vector.multi_reduction <add>, %8, %cst_3 [1] : vector<8x128xf32> to vector<8xf32>
    %10 = vector.shape_cast %9 : vector<8xf32> to vector<8x1xf32>
    %cst_4 = arith.constant 1.280000e+02 : f32
    %11 = vector.broadcast %cst_4 : f32 to vector<8x1xf32>
    %12 = arith.divf %10, %11 : vector<8x1xf32>
    %cst_5 = arith.constant 9.99999974E-6 : f32
    %13 = vector.broadcast %cst_5 : f32 to vector<8x1xf32>
    %14 = arith.addf %12, %13 : vector<8x1xf32>
    %15 = math.rsqrt %14 : vector<8x1xf32>
    %16 = vector.broadcast %15 : vector<8x1xf32> to vector<8x128xf32>
    %17 = arith.mulf %7, %16 : vector<8x128xf32>
    %c0_6 = arith.constant 0 : index
    %c0_7 = arith.constant 0 : index
    %18 = vector.load %arg2[%c0_6, %c0_7] : memref<128x384xf32, #tpu.memory_space<vmem>>, vector<128x384xf32>
    %cst_8 = arith.constant dense<0.000000e+00> : vector<8x384xf32>
    %19 = tpu.matmul %17, %18, %cst_8 {dimension_numbers = #tpu.dot_dimension_numbers<[1], [0], [0], [1], [0, 0, 1, 1], [], []>} : vector<8x128xf32>, vector<128x384xf32>, vector<8x384xf32> -> vector<8x384xf32>
    %c0_9 = arith.constant 0 : index
    %c0_10 = arith.constant 0 : index
    %20 = vector.load %arg3[%c0_9, %c0_10] : memref<1x384xf32, #tpu.memory_space<vmem>>, vector<1x384xf32>
    %21 = vector.broadcast %20 : vector<1x384xf32> to vector<8x384xf32>
    %22 = arith.addf %19, %21 : vector<8x384xf32>
    %23 = vector.extract_strided_slice %22 {offsets = [0, 0], sizes = [8, 16], strides = [1, 1]} : vector<8x384xf32> to vector<8x16xf32>
    %24 = vector.extract_strided_slice %22 {offsets = [0, 128], sizes = [8, 16], strides = [1, 1]} : vector<8x384xf32> to vector<8x16xf32>
    %25 = vector.extract_strided_slice %22 {offsets = [0, 256], sizes = [8, 16], strides = [1, 1]} : vector<8x384xf32> to vector<8x16xf32>
    %cst_11 = arith.constant dense<0.000000e+00> : vector<8x8xf32>
    %26 = tpu.matmul %23, %24, %cst_11 {dimension_numbers = #tpu.dot_dimension_numbers<[1], [1], [0], [0], [0, 0, 1, 0], [], []>} : vector<8x16xf32>, vector<8x16xf32>, vector<8x8xf32> -> vector<8x8xf32>
    %cst_12 = arith.constant 2.500000e-01 : f32
    %27 = vector.broadcast %cst_12 : f32 to vector<8x8xf32>
    %28 = arith.mulf %26, %27 : vector<8x8xf32>
    %cst_13 = arith.constant dense<0xFF800000> : vector<8xf32>
    %29 = vector.multi_reduction <maximumf>, %28, %cst_13 [1] : vector<8x8xf32> to vector<8xf32>
    %30 = vector.shape_cast %29 : vector<8xf32> to vector<8x1xf32>
    %31 = vector.broadcast %30 : vector<8x1xf32> to vector<8x8xf32>
    %32 = arith.subf %28, %31 : vector<8x8xf32>
    %33 = math.exp %32 : vector<8x8xf32>
    %cst_14 = arith.constant dense<0.000000e+00> : vector<8xf32>
    %34 = vector.multi_reduction <add>, %33, %cst_14 [1] : vector<8x8xf32> to vector<8xf32>
    %35 = vector.shape_cast %34 : vector<8xf32> to vector<8x1xf32>
    %36 = tpu.reciprocal %35 {approx = true} : vector<8x1xf32> -> vector<8x1xf32>
    %37 = vector.broadcast %36 : vector<8x1xf32> to vector<8x8xf32>
    %38 = arith.mulf %33, %37 : vector<8x8xf32>
    %cst_15 = arith.constant dense<0.000000e+00> : vector<8x16xf32>
    %39 = tpu.matmul %38, %25, %cst_15 {dimension_numbers = #tpu.dot_dimension_numbers<[1], [0], [0], [1], [0, 0, 1, 1], [], []>} : vector<8x8xf32>, vector<8x16xf32>, vector<8x16xf32> -> vector<8x16xf32>
    %40 = vector.extract_strided_slice %22 {offsets = [0, 16], sizes = [8, 16], strides = [1, 1]} : vector<8x384xf32> to vector<8x16xf32>
    %41 = vector.extract_strided_slice %22 {offsets = [0, 144], sizes = [8, 16], strides = [1, 1]} : vector<8x384xf32> to vector<8x16xf32>
    %42 = vector.extract_strided_slice %22 {offsets = [0, 272], sizes = [8, 16], strides = [1, 1]} : vector<8x384xf32> to vector<8x16xf32>
    %cst_16 = arith.constant dense<0.000000e+00> : vector<8x8xf32>
    %43 = tpu.matmul %40, %41, %cst_16 {dimension_numbers = #tpu.dot_dimension_numbers<[1], [1], [0], [0], [0, 0, 1, 0], [], []>} : vector<8x16xf32>, vector<8x16xf32>, vector<8x8xf32> -> vector<8x8xf32>
    %cst_17 = arith.constant 2.500000e-01 : f32
    %44 = vector.broadcast %cst_17 : f32 to vector<8x8xf32>
    %45 = arith.mulf %43, %44 : vector<8x8xf32>
    %cst_18 = arith.constant dense<0xFF800000> : vector<8xf32>
    %46 = vector.multi_reduction <maximumf>, %45, %cst_18 [1] : vector<8x8xf32> to vector<8xf32>
    %47 = vector.shape_cast %46 : vector<8xf32> to vector<8x1xf32>
    %48 = vector.broadcast %47 : vector<8x1xf32> to vector<8x8xf32>
    %49 = arith.subf %45, %48 : vector<8x8xf32>
    %50 = math.exp %49 : vector<8x8xf32>
    %cst_19 = arith.constant dense<0.000000e+00> : vector<8xf32>
    %51 = vector.multi_reduction <add>, %50, %cst_19 [1] : vector<8x8xf32> to vector<8xf32>
    %52 = vector.shape_cast %51 : vector<8xf32> to vector<8x1xf32>
    %53 = tpu.reciprocal %52 {approx = true} : vector<8x1xf32> -> vector<8x1xf32>
    %54 = vector.broadcast %53 : vector<8x1xf32> to vector<8x8xf32>
    %55 = arith.mulf %50, %54 : vector<8x8xf32>
    %cst_20 = arith.constant dense<0.000000e+00> : vector<8x16xf32>
    %56 = tpu.matmul %55, %42, %cst_20 {dimension_numbers = #tpu.dot_dimension_numbers<[1], [0], [0], [1], [0, 0, 1, 1], [], []>} : vector<8x8xf32>, vector<8x16xf32>, vector<8x16xf32> -> vector<8x16xf32>
    %57 = vector.extract_strided_slice %22 {offsets = [0, 32], sizes = [8, 16], strides = [1, 1]} : vector<8x384xf32> to vector<8x16xf32>
    %58 = vector.extract_strided_slice %22 {offsets = [0, 160], sizes = [8, 16], strides = [1, 1]} : vector<8x384xf32> to vector<8x16xf32>
    %59 = vector.extract_strided_slice %22 {offsets = [0, 288], sizes = [8, 16], strides = [1, 1]} : vector<8x384xf32> to vector<8x16xf32>
    %cst_21 = arith.constant dense<0.000000e+00> : vector<8x8xf32>
    %60 = tpu.matmul %57, %58, %cst_21 {dimension_numbers = #tpu.dot_dimension_numbers<[1], [1], [0], [0], [0, 0, 1, 0], [], []>} : vector<8x16xf32>, vector<8x16xf32>, vector<8x8xf32> -> vector<8x8xf32>
    %cst_22 = arith.constant 2.500000e-01 : f32
    %61 = vector.broadcast %cst_22 : f32 to vector<8x8xf32>
    %62 = arith.mulf %60, %61 : vector<8x8xf32>
    %cst_23 = arith.constant dense<0xFF800000> : vector<8xf32>
    %63 = vector.multi_reduction <maximumf>, %62, %cst_23 [1] : vector<8x8xf32> to vector<8xf32>
    %64 = vector.shape_cast %63 : vector<8xf32> to vector<8x1xf32>
    %65 = vector.broadcast %64 : vector<8x1xf32> to vector<8x8xf32>
    %66 = arith.subf %62, %65 : vector<8x8xf32>
    %67 = math.exp %66 : vector<8x8xf32>
    %cst_24 = arith.constant dense<0.000000e+00> : vector<8xf32>
    %68 = vector.multi_reduction <add>, %67, %cst_24 [1] : vector<8x8xf32> to vector<8xf32>
    %69 = vector.shape_cast %68 : vector<8xf32> to vector<8x1xf32>
    %70 = tpu.reciprocal %69 {approx = true} : vector<8x1xf32> -> vector<8x1xf32>
    %71 = vector.broadcast %70 : vector<8x1xf32> to vector<8x8xf32>
    %72 = arith.mulf %67, %71 : vector<8x8xf32>
    %cst_25 = arith.constant dense<0.000000e+00> : vector<8x16xf32>
    %73 = tpu.matmul %72, %59, %cst_25 {dimension_numbers = #tpu.dot_dimension_numbers<[1], [0], [0], [1], [0, 0, 1, 1], [], []>} : vector<8x8xf32>, vector<8x16xf32>, vector<8x16xf32> -> vector<8x16xf32>
    %74 = vector.extract_strided_slice %22 {offsets = [0, 48], sizes = [8, 16], strides = [1, 1]} : vector<8x384xf32> to vector<8x16xf32>
    %75 = vector.extract_strided_slice %22 {offsets = [0, 176], sizes = [8, 16], strides = [1, 1]} : vector<8x384xf32> to vector<8x16xf32>
    %76 = vector.extract_strided_slice %22 {offsets = [0, 304], sizes = [8, 16], strides = [1, 1]} : vector<8x384xf32> to vector<8x16xf32>
    %cst_26 = arith.constant dense<0.000000e+00> : vector<8x8xf32>
    %77 = tpu.matmul %74, %75, %cst_26 {dimension_numbers = #tpu.dot_dimension_numbers<[1], [1], [0], [0], [0, 0, 1, 0], [], []>} : vector<8x16xf32>, vector<8x16xf32>, vector<8x8xf32> -> vector<8x8xf32>
    %cst_27 = arith.constant 2.500000e-01 : f32
    %78 = vector.broadcast %cst_27 : f32 to vector<8x8xf32>
    %79 = arith.mulf %77, %78 : vector<8x8xf32>
    %cst_28 = arith.constant dense<0xFF800000> : vector<8xf32>
    %80 = vector.multi_reduction <maximumf>, %79, %cst_28 [1] : vector<8x8xf32> to vector<8xf32>
    %81 = vector.shape_cast %80 : vector<8xf32> to vector<8x1xf32>
    %82 = vector.broadcast %81 : vector<8x1xf32> to vector<8x8xf32>
    %83 = arith.subf %79, %82 : vector<8x8xf32>
    %84 = math.exp %83 : vector<8x8xf32>
    %cst_29 = arith.constant dense<0.000000e+00> : vector<8xf32>
    %85 = vector.multi_reduction <add>, %84, %cst_29 [1] : vector<8x8xf32> to vector<8xf32>
    %86 = vector.shape_cast %85 : vector<8xf32> to vector<8x1xf32>
    %87 = tpu.reciprocal %86 {approx = true} : vector<8x1xf32> -> vector<8x1xf32>
    %88 = vector.broadcast %87 : vector<8x1xf32> to vector<8x8xf32>
    %89 = arith.mulf %84, %88 : vector<8x8xf32>
    %cst_30 = arith.constant dense<0.000000e+00> : vector<8x16xf32>
    %90 = tpu.matmul %89, %76, %cst_30 {dimension_numbers = #tpu.dot_dimension_numbers<[1], [0], [0], [1], [0, 0, 1, 1], [], []>} : vector<8x8xf32>, vector<8x16xf32>, vector<8x16xf32> -> vector<8x16xf32>
    %91 = vector.extract_strided_slice %22 {offsets = [0, 64], sizes = [8, 16], strides = [1, 1]} : vector<8x384xf32> to vector<8x16xf32>
    %92 = vector.extract_strided_slice %22 {offsets = [0, 192], sizes = [8, 16], strides = [1, 1]} : vector<8x384xf32> to vector<8x16xf32>
    %93 = vector.extract_strided_slice %22 {offsets = [0, 320], sizes = [8, 16], strides = [1, 1]} : vector<8x384xf32> to vector<8x16xf32>
    %cst_31 = arith.constant dense<0.000000e+00> : vector<8x8xf32>
    %94 = tpu.matmul %91, %92, %cst_31 {dimension_numbers = #tpu.dot_dimension_numbers<[1], [1], [0], [0], [0, 0, 1, 0], [], []>} : vector<8x16xf32>, vector<8x16xf32>, vector<8x8xf32> -> vector<8x8xf32>
    %cst_32 = arith.constant 2.500000e-01 : f32
    %95 = vector.broadcast %cst_32 : f32 to vector<8x8xf32>
    %96 = arith.mulf %94, %95 : vector<8x8xf32>
    %cst_33 = arith.constant dense<0xFF800000> : vector<8xf32>
    %97 = vector.multi_reduction <maximumf>, %96, %cst_33 [1] : vector<8x8xf32> to vector<8xf32>
    %98 = vector.shape_cast %97 : vector<8xf32> to vector<8x1xf32>
    %99 = vector.broadcast %98 : vector<8x1xf32> to vector<8x8xf32>
    %100 = arith.subf %96, %99 : vector<8x8xf32>
    %101 = math.exp %100 : vector<8x8xf32>
    %cst_34 = arith.constant dense<0.000000e+00> : vector<8xf32>
    %102 = vector.multi_reduction <add>, %101, %cst_34 [1] : vector<8x8xf32> to vector<8xf32>
    %103 = vector.shape_cast %102 : vector<8xf32> to vector<8x1xf32>
    %104 = tpu.reciprocal %103 {approx = true} : vector<8x1xf32> -> vector<8x1xf32>
    %105 = vector.broadcast %104 : vector<8x1xf32> to vector<8x8xf32>
    %106 = arith.mulf %101, %105 : vector<8x8xf32>
    %cst_35 = arith.constant dense<0.000000e+00> : vector<8x16xf32>
    %107 = tpu.matmul %106, %93, %cst_35 {dimension_numbers = #tpu.dot_dimension_numbers<[1], [0], [0], [1], [0, 0, 1, 1], [], []>} : vector<8x8xf32>, vector<8x16xf32>, vector<8x16xf32> -> vector<8x16xf32>
    %108 = vector.extract_strided_slice %22 {offsets = [0, 80], sizes = [8, 16], strides = [1, 1]} : vector<8x384xf32> to vector<8x16xf32>
    %109 = vector.extract_strided_slice %22 {offsets = [0, 208], sizes = [8, 16], strides = [1, 1]} : vector<8x384xf32> to vector<8x16xf32>
    %110 = vector.extract_strided_slice %22 {offsets = [0, 336], sizes = [8, 16], strides = [1, 1]} : vector<8x384xf32> to vector<8x16xf32>
    %cst_36 = arith.constant dense<0.000000e+00> : vector<8x8xf32>
    %111 = tpu.matmul %108, %109, %cst_36 {dimension_numbers = #tpu.dot_dimension_numbers<[1], [1], [0], [0], [0, 0, 1, 0], [], []>} : vector<8x16xf32>, vector<8x16xf32>, vector<8x8xf32> -> vector<8x8xf32>
    %cst_37 = arith.constant 2.500000e-01 : f32
    %112 = vector.broadcast %cst_37 : f32 to vector<8x8xf32>
    %113 = arith.mulf %111, %112 : vector<8x8xf32>
    %cst_38 = arith.constant dense<0xFF800000> : vector<8xf32>
    %114 = vector.multi_reduction <maximumf>, %113, %cst_38 [1] : vector<8x8xf32> to vector<8xf32>
    %115 = vector.shape_cast %114 : vector<8xf32> to vector<8x1xf32>
    %116 = vector.broadcast %115 : vector<8x1xf32> to vector<8x8xf32>
    %117 = arith.subf %113, %116 : vector<8x8xf32>
    %118 = math.exp %117 : vector<8x8xf32>
    %cst_39 = arith.constant dense<0.000000e+00> : vector<8xf32>
    %119 = vector.multi_reduction <add>, %118, %cst_39 [1] : vector<8x8xf32> to vector<8xf32>
    %120 = vector.shape_cast %119 : vector<8xf32> to vector<8x1xf32>
    %121 = tpu.reciprocal %120 {approx = true} : vector<8x1xf32> -> vector<8x1xf32>
    %122 = vector.broadcast %121 : vector<8x1xf32> to vector<8x8xf32>
    %123 = arith.mulf %118, %122 : vector<8x8xf32>
    %cst_40 = arith.constant dense<0.000000e+00> : vector<8x16xf32>
    %124 = tpu.matmul %123, %110, %cst_40 {dimension_numbers = #tpu.dot_dimension_numbers<[1], [0], [0], [1], [0, 0, 1, 1], [], []>} : vector<8x8xf32>, vector<8x16xf32>, vector<8x16xf32> -> vector<8x16xf32>
    %125 = vector.extract_strided_slice %22 {offsets = [0, 96], sizes = [8, 16], strides = [1, 1]} : vector<8x384xf32> to vector<8x16xf32>
    %126 = vector.extract_strided_slice %22 {offsets = [0, 224], sizes = [8, 16], strides = [1, 1]} : vector<8x384xf32> to vector<8x16xf32>
    %127 = vector.extract_strided_slice %22 {offsets = [0, 352], sizes = [8, 16], strides = [1, 1]} : vector<8x384xf32> to vector<8x16xf32>
    %cst_41 = arith.constant dense<0.000000e+00> : vector<8x8xf32>
    %128 = tpu.matmul %125, %126, %cst_41 {dimension_numbers = #tpu.dot_dimension_numbers<[1], [1], [0], [0], [0, 0, 1, 0], [], []>} : vector<8x16xf32>, vector<8x16xf32>, vector<8x8xf32> -> vector<8x8xf32>
    %cst_42 = arith.constant 2.500000e-01 : f32
    %129 = vector.broadcast %cst_42 : f32 to vector<8x8xf32>
    %130 = arith.mulf %128, %129 : vector<8x8xf32>
    %cst_43 = arith.constant dense<0xFF800000> : vector<8xf32>
    %131 = vector.multi_reduction <maximumf>, %130, %cst_43 [1] : vector<8x8xf32> to vector<8xf32>
    %132 = vector.shape_cast %131 : vector<8xf32> to vector<8x1xf32>
    %133 = vector.broadcast %132 : vector<8x1xf32> to vector<8x8xf32>
    %134 = arith.subf %130, %133 : vector<8x8xf32>
    %135 = math.exp %134 : vector<8x8xf32>
    %cst_44 = arith.constant dense<0.000000e+00> : vector<8xf32>
    %136 = vector.multi_reduction <add>, %135, %cst_44 [1] : vector<8x8xf32> to vector<8xf32>
    %137 = vector.shape_cast %136 : vector<8xf32> to vector<8x1xf32>
    %138 = tpu.reciprocal %137 {approx = true} : vector<8x1xf32> -> vector<8x1xf32>
    %139 = vector.broadcast %138 : vector<8x1xf32> to vector<8x8xf32>
    %140 = arith.mulf %135, %139 : vector<8x8xf32>
    %cst_45 = arith.constant dense<0.000000e+00> : vector<8x16xf32>
    %141 = tpu.matmul %140, %127, %cst_45 {dimension_numbers = #tpu.dot_dimension_numbers<[1], [0], [0], [1], [0, 0, 1, 1], [], []>} : vector<8x8xf32>, vector<8x16xf32>, vector<8x16xf32> -> vector<8x16xf32>
    %142 = vector.extract_strided_slice %22 {offsets = [0, 112], sizes = [8, 16], strides = [1, 1]} : vector<8x384xf32> to vector<8x16xf32>
    %143 = vector.extract_strided_slice %22 {offsets = [0, 240], sizes = [8, 16], strides = [1, 1]} : vector<8x384xf32> to vector<8x16xf32>
    %144 = vector.extract_strided_slice %22 {offsets = [0, 368], sizes = [8, 16], strides = [1, 1]} : vector<8x384xf32> to vector<8x16xf32>
    %cst_46 = arith.constant dense<0.000000e+00> : vector<8x8xf32>
    %145 = tpu.matmul %142, %143, %cst_46 {dimension_numbers = #tpu.dot_dimension_numbers<[1], [1], [0], [0], [0, 0, 1, 0], [], []>} : vector<8x16xf32>, vector<8x16xf32>, vector<8x8xf32> -> vector<8x8xf32>
    %cst_47 = arith.constant 2.500000e-01 : f32
    %146 = vector.broadcast %cst_47 : f32 to vector<8x8xf32>
    %147 = arith.mulf %145, %146 : vector<8x8xf32>
    %cst_48 = arith.constant dense<0xFF800000> : vector<8xf32>
    %148 = vector.multi_reduction <maximumf>, %147, %cst_48 [1] : vector<8x8xf32> to vector<8xf32>
    %149 = vector.shape_cast %148 : vector<8xf32> to vector<8x1xf32>
    %150 = vector.broadcast %149 : vector<8x1xf32> to vector<8x8xf32>
    %151 = arith.subf %147, %150 : vector<8x8xf32>
    %152 = math.exp %151 : vector<8x8xf32>
    %cst_49 = arith.constant dense<0.000000e+00> : vector<8xf32>
    %153 = vector.multi_reduction <add>, %152, %cst_49 [1] : vector<8x8xf32> to vector<8xf32>
    %154 = vector.shape_cast %153 : vector<8xf32> to vector<8x1xf32>
    %155 = tpu.reciprocal %154 {approx = true} : vector<8x1xf32> -> vector<8x1xf32>
    %156 = vector.broadcast %155 : vector<8x1xf32> to vector<8x8xf32>
    %157 = arith.mulf %152, %156 : vector<8x8xf32>
    %cst_50 = arith.constant dense<0.000000e+00> : vector<8x16xf32>
    %158 = tpu.matmul %157, %144, %cst_50 {dimension_numbers = #tpu.dot_dimension_numbers<[1], [0], [0], [1], [0, 0, 1, 1], [], []>} : vector<8x8xf32>, vector<8x16xf32>, vector<8x16xf32> -> vector<8x16xf32>
    %159 = tpu.concatenate %39, %56, %73, %90, %107, %124, %141, %158 in 1 : vector<8x16xf32>, vector<8x16xf32>, vector<8x16xf32>, vector<8x16xf32>, vector<8x16xf32>, vector<8x16xf32>, vector<8x16xf32>, vector<8x16xf32> -> vector<8x128xf32>
    %c0_51 = arith.constant 0 : index
    %c0_52 = arith.constant 0 : index
    %160 = vector.load %arg4[%c0_51, %c0_52] : memref<128x128xf32, #tpu.memory_space<vmem>>, vector<128x128xf32>
    %cst_53 = arith.constant dense<0.000000e+00> : vector<8x128xf32>
    %161 = tpu.matmul %159, %160, %cst_53 {dimension_numbers = #tpu.dot_dimension_numbers<[1], [0], [0], [1], [0, 0, 1, 1], [], []>} : vector<8x128xf32>, vector<128x128xf32>, vector<8x128xf32> -> vector<8x128xf32>
    %c0_54 = arith.constant 0 : index
    %c0_55 = arith.constant 0 : index
    %162 = vector.load %arg5[%c0_54, %c0_55] : memref<1x128xf32, #tpu.memory_space<vmem>>, vector<1x128xf32>
    %163 = vector.broadcast %162 : vector<1x128xf32> to vector<8x128xf32>
    %164 = arith.addf %161, %163 : vector<8x128xf32>
    %165 = arith.addf %1, %164 : vector<8x128xf32>
    %c0_56 = arith.constant 0 : index
    %c0_57 = arith.constant 0 : index
    %c0_58 = arith.constant 0 : index
    %166 = vector.load %arg6[%c0_56, %c0_57, %c0_58] : memref<1x8x128xf32, #tpu.memory_space<vmem>>, vector<1x8x128xf32>
    %167 = vector.shape_cast %166 : vector<1x8x128xf32> to vector<8x128xf32>
    %168 = vector.shape_cast %165 : vector<8x128xf32> to vector<1x8x128xf32>
    tpu.vector_store %arg6[%c0_56, %c0_57, %c0_58], %168 {strides = array<i32>} : memref<1x8x128xf32, #tpu.memory_space<vmem>>, vector<1x8x128xf32>,
    return
  }
  func.func @transform_0(%arg0: i32) -> (i32, i32, i32) {
    %c0_i32 = arith.constant 0 : i32
    %c0_i32_0 = arith.constant 0 : i32
    %c0_i32_1 = arith.constant 0 : i32
    return %arg0, %c0_i32, %c0_i32_0 : i32, i32, i32
  }
  func.func @transform_1(%arg0: i32) -> (i32, i32) {
    %c0_i32 = arith.constant 0 : i32
    %c0_i32_0 = arith.constant 0 : i32
    %c0_i32_1 = arith.constant 0 : i32
    return %c0_i32, %c0_i32_0 : i32, i32
  }
  func.func @transform_2(%arg0: i32) -> (i32, i32) {
    %c0_i32 = arith.constant 0 : i32
    %c0_i32_0 = arith.constant 0 : i32
    %c0_i32_1 = arith.constant 0 : i32
    return %c0_i32, %c0_i32_0 : i32, i32
  }
  func.func @transform_3(%arg0: i32) -> (i32, i32) {
    %c0_i32 = arith.constant 0 : i32
    %c0_i32_0 = arith.constant 0 : i32
    %c0_i32_1 = arith.constant 0 : i32
    return %c0_i32, %c0_i32_0 : i32, i32
  }
  func.func @transform_4(%arg0: i32) -> (i32, i32) {
    %c0_i32 = arith.constant 0 : i32
    %c0_i32_0 = arith.constant 0 : i32
    %c0_i32_1 = arith.constant 0 : i32
    return %c0_i32, %c0_i32_0 : i32, i32
  }
  func.func @transform_5(%arg0: i32) -> (i32, i32, i32) {
    %c0_i32 = arith.constant 0 : i32
    %c0_i32_0 = arith.constant 0 : i32
    %c0_i32_1 = arith.constant 0 : i32
    return %arg0, %c0_i32, %c0_i32_0 : i32, i32, i32
  }
}

module attributes {stable_mosaic.version = 11 : i64} {
  func.func @_mlp_block_kernel(%arg0: i32, %arg1: memref<8x128xf32, #tpu.memory_space<vmem>>, %arg2: memref<128x512xf32, #tpu.memory_space<vmem>>, %arg3: memref<1x512xf32, #tpu.memory_space<vmem>>, %arg4: memref<512x128xf32, #tpu.memory_space<vmem>>, %arg5: memref<1x128xf32, #tpu.memory_space<vmem>>, %arg6: memref<8x128xf32, #tpu.memory_space<vmem>>) attributes {dimension_semantics = [#tpu.dimension_semantics<parallel>], iteration_bounds = array<i64: 2>, scalar_prefetch = 0 : i64, scratch_operands = 0 : i64, tpu.core_type = #tpu.core_type<tc>, window_params = [{transform_indices = @transform_0, window_bounds = array<i64: 8, 128>}, {pipeline_mode = #tpu.pipeline_mode<synchronous>, transform_indices = @transform_1, window_bounds = array<i64: 128, 512>}, {pipeline_mode = #tpu.pipeline_mode<synchronous>, transform_indices = @transform_2, window_bounds = array<i64: 1, 512>}, {pipeline_mode = #tpu.pipeline_mode<synchronous>, transform_indices = @transform_3, window_bounds = array<i64: 512, 128>}, {pipeline_mode = #tpu.pipeline_mode<synchronous>, transform_indices = @transform_4, window_bounds = array<i64: 1, 128>}, {transform_indices = @transform_5, window_bounds = array<i64: 8, 128>}]} {
    %c0 = arith.constant 0 : index
    %c0_0 = arith.constant 0 : index
    %0 = vector.load %arg1[%c0, %c0_0] : memref<8x128xf32, #tpu.memory_space<vmem>>, vector<8x128xf32>
    %cst = arith.constant dense<0.000000e+00> : vector<8xf32>
    %1 = vector.multi_reduction <add>, %0, %cst [1] : vector<8x128xf32> to vector<8xf32>
    %2 = vector.shape_cast %1 : vector<8xf32> to vector<8x1xf32>
    %cst_1 = arith.constant 1.280000e+02 : f32
    %3 = vector.broadcast %cst_1 : f32 to vector<8x1xf32>
    %4 = arith.divf %2, %3 : vector<8x1xf32>
    %5 = vector.broadcast %4 : vector<8x1xf32> to vector<8x128xf32>
    %6 = arith.subf %0, %5 : vector<8x128xf32>
    %7 = arith.mulf %6, %6 : vector<8x128xf32>
    %cst_2 = arith.constant dense<0.000000e+00> : vector<8xf32>
    %8 = vector.multi_reduction <add>, %7, %cst_2 [1] : vector<8x128xf32> to vector<8xf32>
    %9 = vector.shape_cast %8 : vector<8xf32> to vector<8x1xf32>
    %cst_3 = arith.constant 1.280000e+02 : f32
    %10 = vector.broadcast %cst_3 : f32 to vector<8x1xf32>
    %11 = arith.divf %9, %10 : vector<8x1xf32>
    %cst_4 = arith.constant 9.99999974E-6 : f32
    %12 = vector.broadcast %cst_4 : f32 to vector<8x1xf32>
    %13 = arith.addf %11, %12 : vector<8x1xf32>
    %14 = math.rsqrt %13 : vector<8x1xf32>
    %15 = vector.broadcast %14 : vector<8x1xf32> to vector<8x128xf32>
    %16 = arith.mulf %6, %15 : vector<8x128xf32>
    %c0_5 = arith.constant 0 : index
    %c0_6 = arith.constant 0 : index
    %17 = vector.load %arg2[%c0_5, %c0_6] : memref<128x512xf32, #tpu.memory_space<vmem>>, vector<128x512xf32>
    %cst_7 = arith.constant dense<0.000000e+00> : vector<8x512xf32>
    %18 = tpu.matmul %16, %17, %cst_7 {dimension_numbers = #tpu.dot_dimension_numbers<[1], [0], [0], [1], [0, 0, 1, 1], [], []>} : vector<8x128xf32>, vector<128x512xf32>, vector<8x512xf32> -> vector<8x512xf32>
    %c0_8 = arith.constant 0 : index
    %c0_9 = arith.constant 0 : index
    %19 = vector.load %arg3[%c0_8, %c0_9] : memref<1x512xf32, #tpu.memory_space<vmem>>, vector<1x512xf32>
    %20 = vector.broadcast %19 : vector<1x512xf32> to vector<8x512xf32>
    %21 = arith.addf %18, %20 : vector<8x512xf32>
    %cst_10 = arith.constant 0.000000e+00 : f32
    %22 = vector.broadcast %cst_10 : f32 to vector<8x512xf32>
    %23 = arith.maximumf %21, %22 : vector<8x512xf32>
    %c0_11 = arith.constant 0 : index
    %c0_12 = arith.constant 0 : index
    %24 = vector.load %arg4[%c0_11, %c0_12] : memref<512x128xf32, #tpu.memory_space<vmem>>, vector<512x128xf32>
    %cst_13 = arith.constant dense<0.000000e+00> : vector<8x128xf32>
    %25 = tpu.matmul %23, %24, %cst_13 {dimension_numbers = #tpu.dot_dimension_numbers<[1], [0], [0], [1], [0, 0, 1, 1], [], []>} : vector<8x512xf32>, vector<512x128xf32>, vector<8x128xf32> -> vector<8x128xf32>
    %c0_14 = arith.constant 0 : index
    %c0_15 = arith.constant 0 : index
    %26 = vector.load %arg5[%c0_14, %c0_15] : memref<1x128xf32, #tpu.memory_space<vmem>>, vector<1x128xf32>
    %27 = vector.broadcast %26 : vector<1x128xf32> to vector<8x128xf32>
    %28 = arith.addf %25, %27 : vector<8x128xf32>
    %29 = arith.addf %0, %28 : vector<8x128xf32>
    %c0_16 = arith.constant 0 : index
    %c0_17 = arith.constant 0 : index
    %30 = vector.load %arg6[%c0_16, %c0_17] : memref<8x128xf32, #tpu.memory_space<vmem>>, vector<8x128xf32>
    tpu.vector_store %arg6[%c0_16, %c0_17], %29 {strides = array<i32>} : memref<8x128xf32, #tpu.memory_space<vmem>>, vector<8x128xf32>,
    return
  }
  func.func @transform_0(%arg0: i32) -> (i32, i32) {
    %c0_i32 = arith.constant 0 : i32
    %c0_i32_0 = arith.constant 0 : i32
    return %arg0, %c0_i32 : i32, i32
  }
  func.func @transform_1(%arg0: i32) -> (i32, i32) {
    %c0_i32 = arith.constant 0 : i32
    %c0_i32_0 = arith.constant 0 : i32
    %c0_i32_1 = arith.constant 0 : i32
    return %c0_i32, %c0_i32_0 : i32, i32
  }
  func.func @transform_2(%arg0: i32) -> (i32, i32) {
    %c0_i32 = arith.constant 0 : i32
    %c0_i32_0 = arith.constant 0 : i32
    %c0_i32_1 = arith.constant 0 : i32
    return %c0_i32, %c0_i32_0 : i32, i32
  }
  func.func @transform_3(%arg0: i32) -> (i32, i32) {
    %c0_i32 = arith.constant 0 : i32
    %c0_i32_0 = arith.constant 0 : i32
    %c0_i32_1 = arith.constant 0 : i32
    return %c0_i32, %c0_i32_0 : i32, i32
  }
  func.func @transform_4(%arg0: i32) -> (i32, i32) {
    %c0_i32 = arith.constant 0 : i32
    %c0_i32_0 = arith.constant 0 : i32
    %c0_i32_1 = arith.constant 0 : i32
    return %c0_i32, %c0_i32_0 : i32, i32
  }
  func.func @transform_5(%arg0: i32) -> (i32, i32) {
    %c0_i32 = arith.constant 0 : i32
    %c0_i32_0 = arith.constant 0 : i32
    return %arg0, %c0_i32 : i32, i32
  }
}

</mosaic_0001>

<llo_original>
// kernel: sentiment_classifier_pallas.5
$region0: #{sentiment_classifier_pallas.5}
  #allocation0 [shape = 'u32[]', space=smem, size = 0x4, offset = 0x4, fixed_abs, tag = 'smem constant byte address 0x4 - core index']
  #allocation1 [shape = 'u32[72,128]{1,0:T(1,128)}', space=vmem, size = 0x9000, scoped, tag = 'internal scratch']
  %s0 = inlined_call_operand.vmem [shape: f32[16,128], index: 0, kind: input, shape index: {}]
  %s1 = inlined_call_operand.vmem [shape: f32[128,512], index: 1, kind: input, shape index: {}]
  %s2 = inlined_call_operand.vmem [shape: f32[1,512], index: 2, kind: input, shape index: {}]
  %s3 = inlined_call_operand.hbm [shape: f32[512,128], index: 3, kind: input, shape index: {}]
  %s4 = inlined_call_operand.vmem [shape: f32[1,128], index: 4, kind: input, shape index: {}]
  %s5 = inlined_call_operand.vmem [shape: f32[16,128], index: 5, kind: output, shape index: {}]
  %s6 = sld [smem:[#allocation0]]
  $region57: #{sentiment_classifier_pallas.5} parent=0
    _
  %s8 = ssub.s32 1, %s6
  %s9 = scalar_select 0, %s8, %s6
  $region1: #{sentiment_classifier_pallas.5} parent=0
    #allocation2 [shape = 'u8[262144]{0}', space=vmem, size = 0x40000, scoped, tag = 'input window, operand 3, single buffered']
    #allocation3 [shape = 's32[2]{0}', space=sflag, size = 0x8, scoped, tag = 'scoped memory for sentiment_classifier_pallas.5']
    %10 = vsyncpa [#allocation3], 0
    loop: start=0, step=1, limit=4
    $region2: #{sentiment_classifier_pallas.5} parent=1 // loop_pre_header
      _
    $region3: #{sentiment_classifier_pallas.5} parent=1 // loop_header
      %s12 = sphi 0, %s16
      %p13 = scmp.ge.s32.totalorder %s12, 4
      %s22 = sphi 0, %s24
      %s25 = sphi 0, %s22
      %s26 = sphi 0, %s25
      %s42 = sphi 0, %s26
      %s46 = sphi 0, %s46
      %s48 = sphi 0, %s46
      %s49 = sphi 0, %s48
      %s63 = sphi 0, %s49
      %s67 = sphi 0, %s67
      %s69 = sphi 0, %s67
      %s70 = sphi 0, %s69
      %s84 = sphi 0, %s70
      %s88 = sphi 0, %s88
      %s90 = sphi 0, %s88
      %s91 = sphi 0, %s90
      %s105 = sphi 0, %s91
      %s109 = sphi 0, %s109
      %s111 = sphi 0, %s109
      %s112 = sphi 0, %s111
      %s126 = sphi 0, %s112
      %s132 = sphi 0, %s134
      %s135 = sphi 0, %s132
      %s136 = sphi 0, %s135
      %s152 = sphi 0, %s136
    $region4: #{sentiment_classifier_pallas.5} parent=1 // loop_header_branch
      %15 = sbr.rel (%p13) target = $region8
    $region5: #{sentiment_classifier_pallas.5} parent=1 // loop_body
      %s17 = ssub.s32 %s12, 1
      %s18 = ssub.s32 %s12, 2
      %s19 = sadd.s32 %s12, 1
      %s20 = ssub.s32 %s12, %s19
      %p21 = scmp.eq.s32.totalorder %s20, 0
      %s23 = sadd.s32 %s22, 1
      %s24 = scalar_select %p21, %s22, %s23
      %p27 = pneg %p21
      %p28 = scmp.eq.s32.totalorder %s12, 1
      %p29 = por %p27, %p28
      %p30 = scmp.ne.s32.totalorder %s22, %s25
      %p31 = scmp.eq.s32.totalorder %s12, 0
      %p32 = por %p30, %p31
      %p33 = scmp.ne.s32.totalorder %s22, %s25
      %p34 = scmp.eq.s32.totalorder %s17, 1
      %p35 = por %p33, %p34
      %p36 = scmp.ne.s32.totalorder %s25, %s26
      %p37 = scmp.eq.s32.totalorder %s17, 0
      %p38 = por %p36, %p37
      %p39 = scmp.ne.s32.totalorder %s25, %s26
      %p40 = scmp.eq.s32.totalorder %s18, 1
      %p41 = por %p39, %p40
      %p43 = scmp.ne.s32.totalorder %s26, %s42
      %p44 = scmp.eq.s32.totalorder %s18, 0
      %p45 = por %p43, %p44
      %s47 = sadd.s32 %s46, 1
      %p50 = scmp.eq.s32.totalorder %s12, 1
      %p51 = scmp.ne.s32.totalorder %s46, %s48
      %p52 = scmp.eq.s32.totalorder %s12, 0
      %p53 = por %p51, %p52
      %p54 = scmp.ne.s32.totalorder %s46, %s48
      %p55 = scmp.eq.s32.totalorder %s17, 1
      %p56 = por %p54, %p55
      %p57 = scmp.ne.s32.totalorder %s48, %s49
      %p58 = scmp.eq.s32.totalorder %s17, 0
      %p59 = por %p57, %p58
      %p60 = scmp.ne.s32.totalorder %s48, %s49
      %p61 = scmp.eq.s32.totalorder %s18, 1
      %p62 = por %p60, %p61
      %p64 = scmp.ne.s32.totalorder %s49, %s63
      %p65 = scmp.eq.s32.totalorder %s18, 0
      %p66 = por %p64, %p65
      %s68 = sadd.s32 %s67, 1
      %p71 = scmp.eq.s32.totalorder %s12, 1
      %p72 = scmp.ne.s32.totalorder %s67, %s69
      %p73 = scmp.eq.s32.totalorder %s12, 0
      %p74 = por %p72, %p73
      %p75 = scmp.ne.s32.totalorder %s67, %s69
      %p76 = scmp.eq.s32.totalorder %s17, 1
      %p77 = por %p75, %p76
      %p78 = scmp.ne.s32.totalorder %s69, %s70
      %p79 = scmp.eq.s32.totalorder %s17, 0
      %p80 = por %p78, %p79
      %p81 = scmp.ne.s32.totalorder %s69, %s70
      %p82 = scmp.eq.s32.totalorder %s18, 1
      %p83 = por %p81, %p82
      %p85 = scmp.ne.s32.totalorder %s70, %s84
      %p86 = scmp.eq.s32.totalorder %s18, 0
      %p87 = por %p85, %p86
      %s89 = sadd.s32 %s88, 1
      %p92 = scmp.eq.s32.totalorder %s12, 1
      %p93 = scmp.ne.s32.totalorder %s88, %s90
      %p94 = scmp.eq.s32.totalorder %s12, 0
      %p95 = por %p93, %p94
      %p96 = scmp.ne.s32.totalorder %s88, %s90
      %p97 = scmp.eq.s32.totalorder %s17, 1
      %p98 = por %p96, %p97
      %p99 = scmp.ne.s32.totalorder %s90, %s91
      %p100 = scmp.eq.s32.totalorder %s17, 0
      %p101 = por %p99, %p100
      %p102 = scmp.ne.s32.totalorder %s90, %s91
      %p103 = scmp.eq.s32.totalorder %s18, 1
      %p104 = por %p102, %p103
      %p106 = scmp.ne.s32.totalorder %s91, %s105
      %p107 = scmp.eq.s32.totalorder %s18, 0
      %p108 = por %p106, %p107
      %s110 = sadd.s32 %s109, 1
      %p113 = scmp.eq.s32.totalorder %s12, 1
      %p114 = scmp.ne.s32.totalorder %s109, %s111
      %p115 = scmp.eq.s32.totalorder %s12, 0
      %p116 = por %p114, %p115
      %p117 = scmp.ne.s32.totalorder %s109, %s111
      %p118 = scmp.eq.s32.totalorder %s17, 1
      %p119 = por %p117, %p118
      %p120 = scmp.ne.s32.totalorder %s111, %s112
      %p121 = scmp.eq.s32.totalorder %s17, 0
      %p122 = por %p120, %p121
      %p123 = scmp.ne.s32.totalorder %s111, %s112
      %p124 = scmp.eq.s32.totalorder %s18, 1
      %p125 = por %p123, %p124
      %p127 = scmp.ne.s32.totalorder %s112, %s126
      %p128 = scmp.eq.s32.totalorder %s18, 0
      %p129 = por %p127, %p128
      %s130 = ssub.s32 %s12, %s19
      %p131 = scmp.eq.s32.totalorder %s130, 0
      %s133 = sadd.s32 %s132, 1
      %s134 = scalar_select %p131, %s132, %s133
      %p137 = pneg %p131
      %p138 = scmp.eq.s32.totalorder %s12, 1
      %p139 = por %p137, %p138
      %p140 = scmp.ne.s32.totalorder %s132, %s135
      %p141 = scmp.eq.s32.totalorder %s12, 0
      %p142 = por %p140, %p141
      %p143 = scmp.ne.s32.totalorder %s132, %s135
      %p144 = scmp.eq.s32.totalorder %s17, 1
      %p145 = por %p143, %p144
      %p146 = scmp.ne.s32.totalorder %s135, %s136
      %p147 = scmp.eq.s32.totalorder %s17, 0
      %p148 = por %p146, %p147
      %p149 = scmp.ne.s32.totalorder %s135, %s136
      %p150 = scmp.eq.s32.totalorder %s18, 1
      %p151 = por %p149, %p150
      %p153 = scmp.ne.s32.totalorder %s136, %s152
      %p154 = scmp.eq.s32.totalorder %s18, 0
      %p155 = por %p153, %p154
      %p156 = scmp.le.s32.totalorder 1, %s12
      %p157 = scmp.lt.s32.totalorder %s12, 3
      %p158 = pnand %p156, %p157
      %p159 = pneg %p158
      // Predicated region
      $region9: #{sentiment_classifier_pallas.5} parent=5 // pred_check
        _
      $region10: #{sentiment_classifier_pallas.5} parent=5 // pred_check_branch
        %161 = sbr.rel (%p158) target = $region12
      $region11: #{sentiment_classifier_pallas.5} parent=5 // pred_region
        %s162 = ssub.s32 %s12, 1
        // Predicated region
        $region13: #{sentiment_classifier_pallas.5} parent=11 // pred_check
          %p163 = pneg %p59
        $region14: #{sentiment_classifier_pallas.5} parent=11 // pred_check_branch
          %165 = sbr.rel (%p163) target = $region16
        $region15: #{sentiment_classifier_pallas.5} parent=11 // pred_region
          _
        $region16: #{sentiment_classifier_pallas.5} parent=11 // pred_fallthru
          _
        // Predicated region
        $region17: #{sentiment_classifier_pallas.5} parent=11 // pred_check
          %p166 = pneg %p80
        $region18: #{sentiment_classifier_pallas.5} parent=11 // pred_check_branch
          %168 = sbr.rel (%p166) target = $region20
        $region19: #{sentiment_classifier_pallas.5} parent=11 // pred_region
          _
        $region20: #{sentiment_classifier_pallas.5} parent=11 // pred_fallthru
          _
        // Predicated region
        $region21: #{sentiment_classifier_pallas.5} parent=11 // pred_check
          %p169 = pneg %p101
        $region22: #{sentiment_classifier_pallas.5} parent=11 // pred_check_branch
          %171 = sbr.rel (%p169) target = $region24
        $region23: #{sentiment_classifier_pallas.5} parent=11 // pred_region
          %173 = vsyncadd [#allocation3], 0
          %s174 = sshll.u32 %s3, 4
          %s175 = int_to_ptr.hbm [resolvable:$true] %s174
          %s176 = sshll.u32 [#allocation2], 4
          %s177 = int_to_ptr.vmem [resolvable:$true] %s176
          %182 = dma.hbm_to_vmem [thread:$0]  %s175, 8192, %s177, [#allocation3], 128, 128, 8
        $region24: #{sentiment_classifier_pallas.5} parent=11 // pred_fallthru
          _
        // Predicated region
        $region25: #{sentiment_classifier_pallas.5} parent=11 // pred_check
          %p183 = pneg %p122
        $region26: #{sentiment_classifier_pallas.5} parent=11 // pred_check_branch
          %185 = sbr.rel (%p183) target = $region28
        $region27: #{sentiment_classifier_pallas.5} parent=11 // pred_region
          _
        $region28: #{sentiment_classifier_pallas.5} parent=11 // pred_fallthru
          _
      $region12: #{sentiment_classifier_pallas.5} parent=5 // pred_fallthru
        _
      %p186 = scmp.lt.s32.totalorder %s12, 2
      // Predicated region
      $region29: #{sentiment_classifier_pallas.5} parent=5 // pred_check
        %p187 = pneg %p186
      $region30: #{sentiment_classifier_pallas.5} parent=5 // pred_check_branch
        %189 = sbr.rel (%p187) target = $region32
      $region31: #{sentiment_classifier_pallas.5} parent=5 // pred_region
        // Predicated region
        $region33: #{sentiment_classifier_pallas.5} parent=31 // pred_check
          %p190 = pneg %p32
        $region34: #{sentiment_classifier_pallas.5} parent=31 // pred_check_branch
          %192 = sbr.rel (%p190) target = $region36
        $region35: #{sentiment_classifier_pallas.5} parent=31 // pred_region
          %p193 = scmp.lt.s32.totalorder %s12, 1
          %s194 = scalar_select %p193, %s12, 1
          %s195 = smul.addr %s194, 8
          %s196 = scalar_lea.vmem %s0, %s195
        $region36: #{sentiment_classifier_pallas.5} parent=31 // pred_fallthru
          _
      $region32: #{sentiment_classifier_pallas.5} parent=5 // pred_fallthru
        _
      %p197 = scmp.le.s32.totalorder 1, %s12
      %p198 = scmp.lt.s32.totalorder %s12, 3
      %p199 = pnand %p197, %p198
      %p200 = pneg %p199
      // Predicated region
      $region37: #{sentiment_classifier_pallas.5} parent=5 // pred_check
        _
      $region38: #{sentiment_classifier_pallas.5} parent=5 // pred_check_branch
        %202 = sbr.rel (%p199) target = $region40
      $region39: #{sentiment_classifier_pallas.5} parent=5 // pred_region
        %s203 = ssub.s32 %s12, 1
        // Predicated region
        $region41: #{sentiment_classifier_pallas.5} parent=39 // pred_check
          %p204 = pneg %p101
        $region42: #{sentiment_classifier_pallas.5} parent=39 // pred_check_branch
          %206 = sbr.rel (%p204) target = $region44
        $region43: #{sentiment_classifier_pallas.5} parent=39 // pred_region
          %208 = dma.done [#allocation3], 8192
        $region44: #{sentiment_classifier_pallas.5} parent=39 // pred_fallthru
          _
        %p209 = scmp.lt.s32.totalorder %s17, 1
        %s210 = scalar_select %p209, %s17, 1
        %s211 = smul.addr %s210, 8
        %s212 = scalar_lea.vmem %s0, %s211
        %p213 = pneg %p38
        %p214 = pneg %p35
        %p215 = pneg %p59
        %p216 = pneg %p56
        %p217 = pneg %p80
        %p218 = pneg %p77
        %p219 = pneg %p101
        %p220 = pneg %p98
        %p221 = pneg %p122
        %p222 = pneg %p119
        %p223 = pneg %p148
        %p224 = pneg %p145
        %p225 = scmp.lt.s32.totalorder %s17, 1
        %s226 = scalar_select %p225, %s17, 1
        %s227 = smul.addr %s226, 8
        %s228 = scalar_lea.vmem %s5, %s227
        %p229 = scmp.lt.s32.totalorder %s17, 1
        %s230 = scalar_select %p229, %s17, 1
        %s231 = smul.addr %s230, 8
        %s232 = scalar_lea.vmem %s0, %s231
        %p233 = scmp.lt.s32.totalorder %s17, 1
        %s234 = scalar_select %p233, %s17, 1
        %s235 = smul.addr %s234, 8
        %s236 = scalar_lea.vmem %s5, %s235
        %v237 = vld [vmem:[%s232] sm:$0xff]
        %238 = vadd.xlane.f32.xlu0 %v237
        %v239 = vpop.xlane.xlu0 %238
        %v240 = vrcp.pop 128.0
        %v241 = vmul.f32 128.0, %v240
        %v242 = vsub.f32 1.0, %v241
        %v243 = vmul.f32 %v240, %v242
        %v244 = vadd.f32 %v240, %v243
        %vm245 = vweird.f32 %v240
        %v246 = vsel %vm245, %v240, %v244
        %v247 = vmul.f32 %v239, %v246
        %v248 = vsub.f32 %v237, %v247
        %v249 = vmul.f32 %v248, %v248
        %250 = vadd.xlane.f32.xlu0 %v249
        %v251 = vpop.xlane.xlu0 %250
        %v252 = vmul.f32 %v251, %v246
        %v253 = vadd.f32 %v252, 1e-05
        %v254 = vrsqrt.pop %v253
        %v255 = vmul.f32 %v254, %v253
        %v256 = vmul.f32 %v255, %v254
        %v257 = vmul.f32 0.5, %v256
        %v258 = vsub.f32 1.5, %v257
        %v259 = vmul.f32 %v254, %v258
        %vm260 = vweird.f32 %v253
        %vm261 = vweird.f32 %v254
        %vm262 = vmor %vm260, %vm261
        %v263 = vsel %vm262, %v254, %v259
        %v264 = vmul.f32 %v248, %v263
        %v265 = vld [vmem:[%s1] sm:$0xff]
        %v266 = vld [vmem:[%s1 + $0x8] sm:$0xff]
        %v267 = vld [vmem:[%s1 + $0x10] sm:$0xff]
        %v268 = vld [vmem:[%s1 + $0x18] sm:$0xff]
        %v269 = vld [vmem:[%s1 + $0x20] sm:$0xff]
        %v270 = vld [vmem:[%s1 + $0x28] sm:$0xff]
        %v271 = vld [vmem:[%s1 + $0x30] sm:$0xff]
        %v272 = vld [vmem:[%s1 + $0x38] sm:$0xff]
        %v273 = vld [vmem:[%s1 + $0x40] sm:$0xff]
        %v274 = vld [vmem:[%s1 + $0x48] sm:$0xff]
        %v275 = vld [vmem:[%s1 + $0x50] sm:$0xff]
        %v276 = vld [vmem:[%s1 + $0x58] sm:$0xff]
        %v277 = vld [vmem:[%s1 + $0x60] sm:$0xff]
        %v278 = vld [vmem:[%s1 + $0x68] sm:$0xff]
        %v279 = vld [vmem:[%s1 + $0x70] sm:$0xff]
        %v280 = vld [vmem:[%s1 + $0x78] sm:$0xff]
        %v281 = vld [vmem:[%s1 + $0x80] sm:$0xff]
        %v282 = vld [vmem:[%s1 + $0x88] sm:$0xff]
        %v283 = vld [vmem:[%s1 + $0x90] sm:$0xff]
        %v284 = vld [vmem:[%s1 + $0x98] sm:$0xff]
        %v285 = vld [vmem:[%s1 + $0xa0] sm:$0xff]
        %v286 = vld [vmem:[%s1 + $0xa8] sm:$0xff]
        %v287 = vld [vmem:[%s1 + $0xb0] sm:$0xff]
        %v288 = vld [vmem:[%s1 + $0xb8] sm:$0xff]
        %v289 = vld [vmem:[%s1 + $0xc0] sm:$0xff]
        %v290 = vld [vmem:[%s1 + $0xc8] sm:$0xff]
        %v291 = vld [vmem:[%s1 + $0xd0] sm:$0xff]
        %v292 = vld [vmem:[%s1 + $0xd8] sm:$0xff]
        %v293 = vld [vmem:[%s1 + $0xe0] sm:$0xff]
        %v294 = vld [vmem:[%s1 + $0xe8] sm:$0xff]
        %v295 = vld [vmem:[%s1 + $0xf0] sm:$0xff]
        %v296 = vld [vmem:[%s1 + $0xf8] sm:$0xff]
        %v297 = vld [vmem:[%s1 + $0x100] sm:$0xff]
        %v298 = vld [vmem:[%s1 + $0x108] sm:$0xff]
        %v299 = vld [vmem:[%s1 + $0x110] sm:$0xff]
        %v300 = vld [vmem:[%s1 + $0x118] sm:$0xff]
        %v301 = vld [vmem:[%s1 + $0x120] sm:$0xff]
        %v302 = vld [vmem:[%s1 + $0x128] sm:$0xff]
        %v303 = vld [vmem:[%s1 + $0x130] sm:$0xff]
        %v304 = vld [vmem:[%s1 + $0x138] sm:$0xff]
        %v305 = vld [vmem:[%s1 + $0x140] sm:$0xff]
        %v306 = vld [vmem:[%s1 + $0x148] sm:$0xff]
        %v307 = vld [vmem:[%s1 + $0x150] sm:$0xff]
        %v308 = vld [vmem:[%s1 + $0x158] sm:$0xff]
        %v309 = vld [vmem:[%s1 + $0x160] sm:$0xff]
        %v310 = vld [vmem:[%s1 + $0x168] sm:$0xff]
        %v311 = vld [vmem:[%s1 + $0x170] sm:$0xff]
        %v312 = vld [vmem:[%s1 + $0x178] sm:$0xff]
        %v313 = vld [vmem:[%s1 + $0x180] sm:$0xff]
        %v314 = vld [vmem:[%s1 + $0x188] sm:$0xff]
        %v315 = vld [vmem:[%s1 + $0x190] sm:$0xff]
        %v316 = vld [vmem:[%s1 + $0x198] sm:$0xff]
        %v317 = vld [vmem:[%s1 + $0x1a0] sm:$0xff]
        %v318 = vld [vmem:[%s1 + $0x1a8] sm:$0xff]
        %v319 = vld [vmem:[%s1 + $0x1b0] sm:$0xff]
        %v320 = vld [vmem:[%s1 + $0x1b8] sm:$0xff]
        %v321 = vld [vmem:[%s1 + $0x1c0] sm:$0xff]
        %v322 = vld [vmem:[%s1 + $0x1c8] sm:$0xff]
        %v323 = vld [vmem:[%s1 + $0x1d0] sm:$0xff]
        %v324 = vld [vmem:[%s1 + $0x1d8] sm:$0xff]
        %v325 = vld [vmem:[%s1 + $0x1e0] sm:$0xff]
        %v326 = vld [vmem:[%s1 + $0x1e8] sm:$0xff]
        %v327 = vld [vmem:[%s1 + $0x1f0] sm:$0xff]
        %v328 = vld [vmem:[%s1 + $0x1f8] sm:$0xff]
        %v329 = vld [vmem:[%s2] sm:$0xf]
        %v331 = vperm.slane %v329, 0
        %v332 = vperm.slane %v329, 1
        %v333 = vperm.slane %v329, 2
        %v334 = vperm.slane %v329, 3
        %339 = vmatpush.msra.mxu0 %v325
        %340 = vmatpush.msra.mxu0 %v321
        %341 = vmatpush.msra.mxu0 %v317
        %342 = vmatpush.msra.mxu0 %v313
        %343 = vmatpush.msra.mxu0 %v309
        %344 = vmatpush.msra.mxu0 %v305
        %345 = vmatpush.msra.mxu0 %v301
        %346 = vmatpush.msra.mxu0 %v297
        %347 = vmatpush.msra.mxu0 %v293
        %348 = vmatpush.msra.mxu0 %v289
        %349 = vmatpush.msra.mxu0 %v285
        %350 = vmatpush.msra.mxu0 %v281
        %351 = vmatpush.msra.mxu0 %v277
        %352 = vmatpush.msra.mxu0 %v273
        %353 = vmatpush.msra.mxu0 %v269
        %354 = vmatpush.msra.mxu0 %v265
        %355 = vmatmul.f32.gmra.mxu0 %v264
        %v356 = vpop.f32.mrf.mxu0
        %v357 = vadd.f32 %v331, %v356
        %358 = vdwg.mxu0
        %359 = vmatpush.msra.mxu0 %v326
        %360 = vmatpush.msra.mxu0 %v322
        %361 = vmatpush.msra.mxu0 %v318
        %362 = vmatpush.msra.mxu0 %v314
        %363 = vmatpush.msra.mxu0 %v310
        %364 = vmatpush.msra.mxu0 %v306
        %365 = vmatpush.msra.mxu0 %v302
        %366 = vmatpush.msra.mxu0 %v298
        %367 = vmatpush.msra.mxu0 %v294
        %368 = vmatpush.msra.mxu0 %v290
        %369 = vmatpush.msra.mxu0 %v286
        %370 = vmatpush.msra.mxu0 %v282
        %371 = vmatpush.msra.mxu0 %v278
        %372 = vmatpush.msra.mxu0 %v274
        %373 = vmatpush.msra.mxu0 %v270
        %374 = vmatpush.msra.mxu0 %v266
        %375 = vmatmul.f32.gmra.mxu0 %v264
        %v376 = vpop.f32.mrf.mxu0
        %v377 = vadd.f32 %v332, %v376
        %378 = vdwg.mxu0
        %379 = vmatpush.msra.mxu0 %v327
        %380 = vmatpush.msra.mxu0 %v323
        %381 = vmatpush.msra.mxu0 %v319
        %382 = vmatpush.msra.mxu0 %v315
        %383 = vmatpush.msra.mxu0 %v311
        %384 = vmatpush.msra.mxu0 %v307
        %385 = vmatpush.msra.mxu0 %v303
        %386 = vmatpush.msra.mxu0 %v299
        %387 = vmatpush.msra.mxu0 %v295
        %388 = vmatpush.msra.mxu0 %v291
        %389 = vmatpush.msra.mxu0 %v287
        %390 = vmatpush.msra.mxu0 %v283
        %391 = vmatpush.msra.mxu0 %v279
        %392 = vmatpush.msra.mxu0 %v275
        %393 = vmatpush.msra.mxu0 %v271
        %394 = vmatpush.msra.mxu0 %v267
        %395 = vmatmul.f32.gmra.mxu0 %v264
        %v396 = vpop.f32.mrf.mxu0
        %v397 = vadd.f32 %v333, %v396
        %398 = vdwg.mxu0
        %399 = vmatpush.msra.mxu0 %v328
        %400 = vmatpush.msra.mxu0 %v324
        %401 = vmatpush.msra.mxu0 %v320
        %402 = vmatpush.msra.mxu0 %v316
        %403 = vmatpush.msra.mxu0 %v312
        %404 = vmatpush.msra.mxu0 %v308
        %405 = vmatpush.msra.mxu0 %v304
        %406 = vmatpush.msra.mxu0 %v300
        %407 = vmatpush.msra.mxu0 %v296
        %408 = vmatpush.msra.mxu0 %v292
        %409 = vmatpush.msra.mxu0 %v288
        %410 = vmatpush.msra.mxu0 %v284
        %411 = vmatpush.msra.mxu0 %v280
        %412 = vmatpush.msra.mxu0 %v276
        %413 = vmatpush.msra.mxu0 %v272
        %414 = vmatpush.msra.mxu0 %v268
        %415 = vmatmul.f32.gmra.mxu0 %v264
        %v416 = vpop.f32.mrf.mxu0
        %v417 = vadd.f32 %v334, %v416
        %418 = vdwg.mxu0
        %v419 = vmax.f32 %v357, 0.0
        %v420 = vmax.f32 %v377, 0.0
        %v421 = vmax.f32 %v397, 0.0
        %v422 = vmax.f32 %v417, 0.0
        %v423 = vld [vmem:[#allocation2] sm:$0xff]
        %v424 = vld [vmem:[#allocation2 + $0x8] sm:$0xff]
        %v425 = vld [vmem:[#allocation2 + $0x10] sm:$0xff]
        %v426 = vld [vmem:[#allocation2 + $0x18] sm:$0xff]
        %v427 = vld [vmem:[#allocation2 + $0x20] sm:$0xff]
        %v428 = vld [vmem:[#allocation2 + $0x28] sm:$0xff]
        %v429 = vld [vmem:[#allocation2 + $0x30] sm:$0xff]
        %v430 = vld [vmem:[#allocation2 + $0x38] sm:$0xff]
        %v431 = vld [vmem:[#allocation2 + $0x40] sm:$0xff]
        %v432 = vld [vmem:[#allocation2 + $0x48] sm:$0xff]
        %v433 = vld [vmem:[#allocation2 + $0x50] sm:$0xff]
        %v434 = vld [vmem:[#allocation2 + $0x58] sm:$0xff]
        %v435 = vld [vmem:[#allocation2 + $0x60] sm:$0xff]
        %v436 = vld [vmem:[#allocation2 + $0x68] sm:$0xff]
        %v437 = vld [vmem:[#allocation2 + $0x70] sm:$0xff]
        %v438 = vld [vmem:[#allocation2 + $0x78] sm:$0xff]
        %v439 = vld [vmem:[#allocation2 + $0x80] sm:$0xff]
        %v440 = vld [vmem:[#allocation2 + $0x88] sm:$0xff]
        %v441 = vld [vmem:[#allocation2 + $0x90] sm:$0xff]
        %v442 = vld [vmem:[#allocation2 + $0x98] sm:$0xff]
        %v443 = vld [vmem:[#allocation2 + $0xa0] sm:$0xff]
        %v444 = vld [vmem:[#allocation2 + $0xa8] sm:$0xff]
        %v445 = vld [vmem:[#allocation2 + $0xb0] sm:$0xff]
        %v446 = vld [vmem:[#allocation2 + $0xb8] sm:$0xff]
        %v447 = vld [vmem:[#allocation2 + $0xc0] sm:$0xff]
        %v448 = vld [vmem:[#allocation2 + $0xc8] sm:$0xff]
        %v449 = vld [vmem:[#allocation2 + $0xd0] sm:$0xff]
        %v450 = vld [vmem:[#allocation2 + $0xd8] sm:$0xff]
        %v451 = vld [vmem:[#allocation2 + $0xe0] sm:$0xff]
        %v452 = vld [vmem:[#allocation2 + $0xe8] sm:$0xff]
        %v453 = vld [vmem:[#allocation2 + $0xf0] sm:$0xff]
        %v454 = vld [vmem:[#allocation2 + $0xf8] sm:$0xff]
        %v455 = vld [vmem:[#allocation2 + $0x100] sm:$0xff]
        %v456 = vld [vmem:[#allocation2 + $0x108] sm:$0xff]
        %v457 = vld [vmem:[#allocation2 + $0x110] sm:$0xff]
        %v458 = vld [vmem:[#allocation2 + $0x118] sm:$0xff]
        %v459 = vld [vmem:[#allocation2 + $0x120] sm:$0xff]
        %v460 = vld [vmem:[#allocation2 + $0x128] sm:$0xff]
        %v461 = vld [vmem:[#allocation2 + $0x130] sm:$0xff]
        %v462 = vld [vmem:[#allocation2 + $0x138] sm:$0xff]
        %v463 = vld [vmem:[#allocation2 + $0x140] sm:$0xff]
        %v464 = vld [vmem:[#allocation2 + $0x148] sm:$0xff]
        %v465 = vld [vmem:[#allocation2 + $0x150] sm:$0xff]
        %v466 = vld [vmem:[#allocation2 + $0x158] sm:$0xff]
        %v467 = vld [vmem:[#allocation2 + $0x160] sm:$0xff]
        %v468 = vld [vmem:[#allocation2 + $0x168] sm:$0xff]
        %v469 = vld [vmem:[#allocation2 + $0x170] sm:$0xff]
        %v470 = vld [vmem:[#allocation2 + $0x178] sm:$0xff]
        %v471 = vld [vmem:[#allocation2 + $0x180] sm:$0xff]
        %v472 = vld [vmem:[#allocation2 + $0x188] sm:$0xff]
        %v473 = vld [vmem:[#allocation2 + $0x190] sm:$0xff]
        %v474 = vld [vmem:[#allocation2 + $0x198] sm:$0xff]
        %v475 = vld [vmem:[#allocation2 + $0x1a0] sm:$0xff]
        %v476 = vld [vmem:[#allocation2 + $0x1a8] sm:$0xff]
        %v477 = vld [vmem:[#allocation2 + $0x1b0] sm:$0xff]
        %v478 = vld [vmem:[#allocation2 + $0x1b8] sm:$0xff]
        %v479 = vld [vmem:[#allocation2 + $0x1c0] sm:$0xff]
        %v480 = vld [vmem:[#allocation2 + $0x1c8] sm:$0xff]
        %v481 = vld [vmem:[#allocation2 + $0x1d0] sm:$0xff]
        %v482 = vld [vmem:[#allocation2 + $0x1d8] sm:$0xff]
        %v483 = vld [vmem:[#allocation2 + $0x1e0] sm:$0xff]
        %v484 = vld [vmem:[#allocation2 + $0x1e8] sm:$0xff]
        %v485 = vld [vmem:[#allocation2 + $0x1f0] sm:$0xff]
        %v486 = vld [vmem:[#allocation2 + $0x1f8] sm:$0xff]
        %v487 = vld [vmem:[%s4] sm:$0x1]
        %v489 = vperm.slane %v487, 0
        %491 = vmatpush.msra.mxu0 %v438
        %492 = vmatpush.msra.mxu0 %v437
        %493 = vmatpush.msra.mxu0 %v436
        %494 = vmatpush.msra.mxu0 %v435
        %495 = vmatpush.msra.mxu0 %v434
        %496 = vmatpush.msra.mxu0 %v433
        %497 = vmatpush.msra.mxu0 %v432
        %498 = vmatpush.msra.mxu0 %v431
        %499 = vmatpush.msra.mxu0 %v430
        %500 = vmatpush.msra.mxu0 %v429
        %501 = vmatpush.msra.mxu0 %v428
        %502 = vmatpush.msra.mxu0 %v427
        %503 = vmatpush.msra.mxu0 %v426
        %504 = vmatpush.msra.mxu0 %v425
        %505 = vmatpush.msra.mxu0 %v424
        %506 = vmatpush.msra.mxu0 %v423
        %507 = vmatmul.f32.gmra.mxu0 %v419
        %v508 = vpop.f32.mrf.mxu0
        %v509 = vadd.f32 %v489, %v508
        %510 = vdwg.mxu0
        %511 = vmatpush.msra.mxu0 %v454
        %512 = vmatpush.msra.mxu0 %v453
        %513 = vmatpush.msra.mxu0 %v452
        %514 = vmatpush.msra.mxu0 %v451
        %515 = vmatpush.msra.mxu0 %v450
        %516 = vmatpush.msra.mxu0 %v449
        %517 = vmatpush.msra.mxu0 %v448
        %518 = vmatpush.msra.mxu0 %v447
        %519 = vmatpush.msra.mxu0 %v446
        %520 = vmatpush.msra.mxu0 %v445
        %521 = vmatpush.msra.mxu0 %v444
        %522 = vmatpush.msra.mxu0 %v443
        %523 = vmatpush.msra.mxu0 %v442
        %524 = vmatpush.msra.mxu0 %v441
        %525 = vmatpush.msra.mxu0 %v440
        %526 = vmatpush.msra.mxu0 %v439
        %527 = vmatmul.f32.gmra.mxu0 %v420
        %v528 = vpop.f32.mrf.mxu0
        %v529 = vadd.f32 %v509, %v528
        %530 = vdwg.mxu0
        %531 = vmatpush.msra.mxu0 %v470
        %532 = vmatpush.msra.mxu0 %v469
        %533 = vmatpush.msra.mxu0 %v468
        %534 = vmatpush.msra.mxu0 %v467
        %535 = vmatpush.msra.mxu0 %v466
        %536 = vmatpush.msra.mxu0 %v465
        %537 = vmatpush.msra.mxu0 %v464
        %538 = vmatpush.msra.mxu0 %v463
        %539 = vmatpush.msra.mxu0 %v462
        %540 = vmatpush.msra.mxu0 %v461
        %541 = vmatpush.msra.mxu0 %v460
        %542 = vmatpush.msra.mxu0 %v459
        %543 = vmatpush.msra.mxu0 %v458
        %544 = vmatpush.msra.mxu0 %v457
        %545 = vmatpush.msra.mxu0 %v456
        %546 = vmatpush.msra.mxu0 %v455
        %547 = vmatmul.f32.gmra.mxu0 %v421
        %v548 = vpop.f32.mrf.mxu0
        %v549 = vadd.f32 %v529, %v548
        %550 = vdwg.mxu0
        %551 = vmatpush.msra.mxu0 %v486
        %552 = vmatpush.msra.mxu0 %v485
        %553 = vmatpush.msra.mxu0 %v484
        %554 = vmatpush.msra.mxu0 %v483
        %555 = vmatpush.msra.mxu0 %v482
        %556 = vmatpush.msra.mxu0 %v481
        %557 = vmatpush.msra.mxu0 %v480
        %558 = vmatpush.msra.mxu0 %v479
        %559 = vmatpush.msra.mxu0 %v478
        %560 = vmatpush.msra.mxu0 %v477
        %561 = vmatpush.msra.mxu0 %v476
        %562 = vmatpush.msra.mxu0 %v475
        %563 = vmatpush.msra.mxu0 %v474
        %564 = vmatpush.msra.mxu0 %v473
        %565 = vmatpush.msra.mxu0 %v472
        %566 = vmatpush.msra.mxu0 %v471
        %567 = vmatmul.f32.gmra.mxu0 %v422
        %v568 = vpop.f32.mrf.mxu0
        %v569 = vadd.f32 %v549, %v568
        %570 = vdwg.mxu0
        %v571 = vadd.f32 %v237, %v569
        %572 = vst [vmem:[%s236] sm:$0xff] %v571
        %p573 = scmp.lt.s32.totalorder %s17, 1
        %s574 = scalar_select %p573, %s17, 1
        %s575 = smul.addr %s574, 8
        %s576 = scalar_lea.vmem %s5, %s575
        // Predicated region
        $region45: #{sentiment_classifier_pallas.5} parent=39 // pred_check
          %p577 = pneg %p145
        $region46: #{sentiment_classifier_pallas.5} parent=39 // pred_check_branch
          %579 = sbr.rel (%p577) target = $region48
        $region47: #{sentiment_classifier_pallas.5} parent=39 // pred_region
          _
        $region48: #{sentiment_classifier_pallas.5} parent=39 // pred_fallthru
          _
      $region40: #{sentiment_classifier_pallas.5} parent=5 // pred_fallthru
        _
      %p580 = scmp.le.s32.totalorder 2, %s12
      // Predicated region
      $region49: #{sentiment_classifier_pallas.5} parent=5 // pred_check
        %p581 = pneg %p580
      $region50: #{sentiment_classifier_pallas.5} parent=5 // pred_check_branch
        %583 = sbr.rel (%p581) target = $region52
      $region51: #{sentiment_classifier_pallas.5} parent=5 // pred_region
        %s584 = ssub.s32 %s12, 2
        // Predicated region
        $region53: #{sentiment_classifier_pallas.5} parent=51 // pred_check
          %p585 = pneg %p151
        $region54: #{sentiment_classifier_pallas.5} parent=51 // pred_check_branch
          %587 = sbr.rel (%p585) target = $region56
        $region55: #{sentiment_classifier_pallas.5} parent=51 // pred_region
          %p588 = scmp.lt.s32.totalorder %s18, 1
          %s589 = scalar_select %p588, %s18, 1
          %s590 = smul.addr %s589, 8
          %s591 = scalar_lea.vmem %s5, %s590
        $region56: #{sentiment_classifier_pallas.5} parent=51 // pred_fallthru
          _
      $region52: #{sentiment_classifier_pallas.5} parent=5 // pred_fallthru
        _
    $region6: #{sentiment_classifier_pallas.5} parent=1 // loop_footer
      %s16 = sadd.s32 1, %s12
    $region7: #{sentiment_classifier_pallas.5} parent=1 // loop_footer_branch
      %11 = sbr.rel target = $region3
    $region8: #{sentiment_classifier_pallas.5} parent=1 // loop_exit
      _
    %592 = vsyncpa [#allocation3], 1
    %s593 = scalar_lea.sflag [#allocation3], 1
    %594 = vsyncpa %s593, 1

// kernel: sentiment_classifier_pallas.7
$region0: #{sentiment_classifier_pallas.7}
  #allocation0 [shape = 'u32[]', space=smem, size = 0x4, offset = 0x4, fixed_abs, tag = 'smem constant byte address 0x4 - core index']
  #allocation1 [shape = 'u32[72,128]{1,0:T(1,128)}', space=vmem, size = 0x9000, scoped, tag = 'internal scratch']
  %s0 = inlined_call_operand.vmem [shape: f32[16,128], index: 0, kind: input, shape index: {}]
  %s1 = inlined_call_operand.vmem [shape: f32[128,512], index: 1, kind: input, shape index: {}]
  %s2 = inlined_call_operand.vmem [shape: f32[1,512], index: 2, kind: input, shape index: {}]
  %s3 = inlined_call_operand.vmem [shape: f32[512,128], index: 3, kind: input, shape index: {}]
  %s4 = inlined_call_operand.vmem [shape: f32[1,128], index: 4, kind: input, shape index: {}]
  %s5 = inlined_call_operand.vmem [shape: f32[16,128], index: 5, kind: output, shape index: {}]
  %s6 = sld [smem:[#allocation0]]
  $region53: #{sentiment_classifier_pallas.7} parent=0
    _
  %s8 = ssub.s32 1, %s6
  %s9 = scalar_select 0, %s8, %s6
  loop: start=0, step=1, limit=4
  $region2: #{sentiment_classifier_pallas.7} parent=0 // loop_pre_header
    _
  $region3: #{sentiment_classifier_pallas.7} parent=0 // loop_header
    %s11 = sphi 0, %s15
    %p12 = scmp.ge.s32.totalorder %s11, 4
    %s21 = sphi 0, %s23
    %s24 = sphi 0, %s21
    %s25 = sphi 0, %s24
    %s41 = sphi 0, %s25
    %s45 = sphi 0, %s45
    %s47 = sphi 0, %s45
    %s48 = sphi 0, %s47
    %s62 = sphi 0, %s48
    %s66 = sphi 0, %s66
    %s68 = sphi 0, %s66
    %s69 = sphi 0, %s68
    %s83 = sphi 0, %s69
    %s87 = sphi 0, %s87
    %s89 = sphi 0, %s87
    %s90 = sphi 0, %s89
    %s104 = sphi 0, %s90
    %s108 = sphi 0, %s108
    %s110 = sphi 0, %s108
    %s111 = sphi 0, %s110
    %s125 = sphi 0, %s111
    %s131 = sphi 0, %s133
    %s134 = sphi 0, %s131
    %s135 = sphi 0, %s134
    %s151 = sphi 0, %s135
  $region4: #{sentiment_classifier_pallas.7} parent=0 // loop_header_branch
    %14 = sbr.rel (%p12) target = $region8
  $region5: #{sentiment_classifier_pallas.7} parent=0 // loop_body
    %s16 = ssub.s32 %s11, 1
    %s17 = ssub.s32 %s11, 2
    %s18 = sadd.s32 %s11, 1
    %s19 = ssub.s32 %s11, %s18
    %p20 = scmp.eq.s32.totalorder %s19, 0
    %s22 = sadd.s32 %s21, 1
    %s23 = scalar_select %p20, %s21, %s22
    %p26 = pneg %p20
    %p27 = scmp.eq.s32.totalorder %s11, 1
    %p28 = por %p26, %p27
    %p29 = scmp.ne.s32.totalorder %s21, %s24
    %p30 = scmp.eq.s32.totalorder %s11, 0
    %p31 = por %p29, %p30
    %p32 = scmp.ne.s32.totalorder %s21, %s24
    %p33 = scmp.eq.s32.totalorder %s16, 1
    %p34 = por %p32, %p33
    %p35 = scmp.ne.s32.totalorder %s24, %s25
    %p36 = scmp.eq.s32.totalorder %s16, 0
    %p37 = por %p35, %p36
    %p38 = scmp.ne.s32.totalorder %s24, %s25
    %p39 = scmp.eq.s32.totalorder %s17, 1
    %p40 = por %p38, %p39
    %p42 = scmp.ne.s32.totalorder %s25, %s41
    %p43 = scmp.eq.s32.totalorder %s17, 0
    %p44 = por %p42, %p43
    %s46 = sadd.s32 %s45, 1
    %p49 = scmp.eq.s32.totalorder %s11, 1
    %p50 = scmp.ne.s32.totalorder %s45, %s47
    %p51 = scmp.eq.s32.totalorder %s11, 0
    %p52 = por %p50, %p51
    %p53 = scmp.ne.s32.totalorder %s45, %s47
    %p54 = scmp.eq.s32.totalorder %s16, 1
    %p55 = por %p53, %p54
    %p56 = scmp.ne.s32.totalorder %s47, %s48
    %p57 = scmp.eq.s32.totalorder %s16, 0
    %p58 = por %p56, %p57
    %p59 = scmp.ne.s32.totalorder %s47, %s48
    %p60 = scmp.eq.s32.totalorder %s17, 1
    %p61 = por %p59, %p60
    %p63 = scmp.ne.s32.totalorder %s48, %s62
    %p64 = scmp.eq.s32.totalorder %s17, 0
    %p65 = por %p63, %p64
    %s67 = sadd.s32 %s66, 1
    %p70 = scmp.eq.s32.totalorder %s11, 1
    %p71 = scmp.ne.s32.totalorder %s66, %s68
    %p72 = scmp.eq.s32.totalorder %s11, 0
    %p73 = por %p71, %p72
    %p74 = scmp.ne.s32.totalorder %s66, %s68
    %p75 = scmp.eq.s32.totalorder %s16, 1
    %p76 = por %p74, %p75
    %p77 = scmp.ne.s32.totalorder %s68, %s69
    %p78 = scmp.eq.s32.totalorder %s16, 0
    %p79 = por %p77, %p78
    %p80 = scmp.ne.s32.totalorder %s68, %s69
    %p81 = scmp.eq.s32.totalorder %s17, 1
    %p82 = por %p80, %p81
    %p84 = scmp.ne.s32.totalorder %s69, %s83
    %p85 = scmp.eq.s32.totalorder %s17, 0
    %p86 = por %p84, %p85
    %s88 = sadd.s32 %s87, 1
    %p91 = scmp.eq.s32.totalorder %s11, 1
    %p92 = scmp.ne.s32.totalorder %s87, %s89
    %p93 = scmp.eq.s32.totalorder %s11, 0
    %p94 = por %p92, %p93
    %p95 = scmp.ne.s32.totalorder %s87, %s89
    %p96 = scmp.eq.s32.totalorder %s16, 1
    %p97 = por %p95, %p96
    %p98 = scmp.ne.s32.totalorder %s89, %s90
    %p99 = scmp.eq.s32.totalorder %s16, 0
    %p100 = por %p98, %p99
    %p101 = scmp.ne.s32.totalorder %s89, %s90
    %p102 = scmp.eq.s32.totalorder %s17, 1
    %p103 = por %p101, %p102
    %p105 = scmp.ne.s32.totalorder %s90, %s104
    %p106 = scmp.eq.s32.totalorder %s17, 0
    %p107 = por %p105, %p106
    %s109 = sadd.s32 %s108, 1
    %p112 = scmp.eq.s32.totalorder %s11, 1
    %p113 = scmp.ne.s32.totalorder %s108, %s110
    %p114 = scmp.eq.s32.totalorder %s11, 0
    %p115 = por %p113, %p114
    %p116 = scmp.ne.s32.totalorder %s108, %s110
    %p117 = scmp.eq.s32.totalorder %s16, 1
    %p118 = por %p116, %p117
    %p119 = scmp.ne.s32.totalorder %s110, %s111
    %p120 = scmp.eq.s32.totalorder %s16, 0
    %p121 = por %p119, %p120
    %p122 = scmp.ne.s32.totalorder %s110, %s111
    %p123 = scmp.eq.s32.totalorder %s17, 1
    %p124 = por %p122, %p123
    %p126 = scmp.ne.s32.totalorder %s111, %s125
    %p127 = scmp.eq.s32.totalorder %s17, 0
    %p128 = por %p126, %p127
    %s129 = ssub.s32 %s11, %s18
    %p130 = scmp.eq.s32.totalorder %s129, 0
    %s132 = sadd.s32 %s131, 1
    %s133 = scalar_select %p130, %s131, %s132
    %p136 = pneg %p130
    %p137 = scmp.eq.s32.totalorder %s11, 1
    %p138 = por %p136, %p137
    %p139 = scmp.ne.s32.totalorder %s131, %s134
    %p140 = scmp.eq.s32.totalorder %s11, 0
    %p141 = por %p139, %p140
    %p142 = scmp.ne.s32.totalorder %s131, %s134
    %p143 = scmp.eq.s32.totalorder %s16, 1
    %p144 = por %p142, %p143
    %p145 = scmp.ne.s32.totalorder %s134, %s135
    %p146 = scmp.eq.s32.totalorder %s16, 0
    %p147 = por %p145, %p146
    %p148 = scmp.ne.s32.totalorder %s134, %s135
    %p149 = scmp.eq.s32.totalorder %s17, 1
    %p150 = por %p148, %p149
    %p152 = scmp.ne.s32.totalorder %s135, %s151
    %p153 = scmp.eq.s32.totalorder %s17, 0
    %p154 = por %p152, %p153
    %p155 = scmp.le.s32.totalorder 1, %s11
    %p156 = scmp.lt.s32.totalorder %s11, 3
    %p157 = pnand %p155, %p156
    %p158 = pneg %p157
    // Predicated region
    $region9: #{sentiment_classifier_pallas.7} parent=5 // pred_check
      _
    $region10: #{sentiment_classifier_pallas.7} parent=5 // pred_check_branch
      %160 = sbr.rel (%p157) target = $region12
    $region11: #{sentiment_classifier_pallas.7} parent=5 // pred_region
      %s161 = ssub.s32 %s11, 1
      // Predicated region
      $region13: #{sentiment_classifier_pallas.7} parent=11 // pred_check
        %p162 = pneg %p58
      $region14: #{sentiment_classifier_pallas.7} parent=11 // pred_check_branch
        %164 = sbr.rel (%p162) target = $region16
      $region15: #{sentiment_classifier_pallas.7} parent=11 // pred_region
        _
      $region16: #{sentiment_classifier_pallas.7} parent=11 // pred_fallthru
        _
      // Predicated region
      $region17: #{sentiment_classifier_pallas.7} parent=11 // pred_check
        %p165 = pneg %p79
      $region18: #{sentiment_classifier_pallas.7} parent=11 // pred_check_branch
        %167 = sbr.rel (%p165) target = $region20
      $region19: #{sentiment_classifier_pallas.7} parent=11 // pred_region
        _
      $region20: #{sentiment_classifier_pallas.7} parent=11 // pred_fallthru
        _
      // Predicated region
      $region21: #{sentiment_classifier_pallas.7} parent=11 // pred_check
        %p168 = pneg %p100
      $region22: #{sentiment_classifier_pallas.7} parent=11 // pred_check_branch
        %170 = sbr.rel (%p168) target = $region24
      $region23: #{sentiment_classifier_pallas.7} parent=11 // pred_region
        _
      $region24: #{sentiment_classifier_pallas.7} parent=11 // pred_fallthru
        _
      // Predicated region
      $region25: #{sentiment_classifier_pallas.7} parent=11 // pred_check
        %p171 = pneg %p121
      $region26: #{sentiment_classifier_pallas.7} parent=11 // pred_check_branch
        %173 = sbr.rel (%p171) target = $region28
      $region27: #{sentiment_classifier_pallas.7} parent=11 // pred_region
        _
      $region28: #{sentiment_classifier_pallas.7} parent=11 // pred_fallthru
        _
    $region12: #{sentiment_classifier_pallas.7} parent=5 // pred_fallthru
      _
    %p174 = scmp.lt.s32.totalorder %s11, 2
    // Predicated region
    $region29: #{sentiment_classifier_pallas.7} parent=5 // pred_check
      %p175 = pneg %p174
    $region30: #{sentiment_classifier_pallas.7} parent=5 // pred_check_branch
      %177 = sbr.rel (%p175) target = $region32
    $region31: #{sentiment_classifier_pallas.7} parent=5 // pred_region
      // Predicated region
      $region33: #{sentiment_classifier_pallas.7} parent=31 // pred_check
        %p178 = pneg %p31
      $region34: #{sentiment_classifier_pallas.7} parent=31 // pred_check_branch
        %180 = sbr.rel (%p178) target = $region36
      $region35: #{sentiment_classifier_pallas.7} parent=31 // pred_region
        %p181 = scmp.lt.s32.totalorder %s11, 1
        %s182 = scalar_select %p181, %s11, 1
        %s183 = smul.addr %s182, 8
        %s184 = scalar_lea.vmem %s0, %s183
      $region36: #{sentiment_classifier_pallas.7} parent=31 // pred_fallthru
        _
    $region32: #{sentiment_classifier_pallas.7} parent=5 // pred_fallthru
      _
    %p185 = scmp.le.s32.totalorder 1, %s11
    %p186 = scmp.lt.s32.totalorder %s11, 3
    %p187 = pnand %p185, %p186
    %p188 = pneg %p187
    // Predicated region
    $region37: #{sentiment_classifier_pallas.7} parent=5 // pred_check
      _
    $region38: #{sentiment_classifier_pallas.7} parent=5 // pred_check_branch
      %190 = sbr.rel (%p187) target = $region40
    $region39: #{sentiment_classifier_pallas.7} parent=5 // pred_region
      %s191 = ssub.s32 %s11, 1
      %p192 = scmp.lt.s32.totalorder %s16, 1
      %s193 = scalar_select %p192, %s16, 1
      %s194 = smul.addr %s193, 8
      %s195 = scalar_lea.vmem %s0, %s194
      %p196 = pneg %p37
      %p197 = pneg %p34
      %p198 = pneg %p58
      %p199 = pneg %p55
      %p200 = pneg %p79
      %p201 = pneg %p76
      %p202 = pneg %p100
      %p203 = pneg %p97
      %p204 = pneg %p121
      %p205 = pneg %p118
      %p206 = pneg %p147
      %p207 = pneg %p144
      %p208 = scmp.lt.s32.totalorder %s16, 1
      %s209 = scalar_select %p208, %s16, 1
      %s210 = smul.addr %s209, 8
      %s211 = scalar_lea.vmem %s5, %s210
      %p212 = scmp.lt.s32.totalorder %s16, 1
      %s213 = scalar_select %p212, %s16, 1
      %s214 = smul.addr %s213, 8
      %s215 = scalar_lea.vmem %s0, %s214
      %p216 = scmp.lt.s32.totalorder %s16, 1
      %s217 = scalar_select %p216, %s16, 1
      %s218 = smul.addr %s217, 8
      %s219 = scalar_lea.vmem %s5, %s218
      %v220 = vld [vmem:[%s215] sm:$0xff]
      %221 = vadd.xlane.f32.xlu0 %v220
      %v222 = vpop.xlane.xlu0 %221
      %v223 = vrcp.pop 128.0
      %v224 = vmul.f32 128.0, %v223
      %v225 = vsub.f32 1.0, %v224
      %v226 = vmul.f32 %v223, %v225
      %v227 = vadd.f32 %v223, %v226
      %vm228 = vweird.f32 %v223
      %v229 = vsel %vm228, %v223, %v227
      %v230 = vmul.f32 %v222, %v229
      %v231 = vsub.f32 %v220, %v230
      %v232 = vmul.f32 %v231, %v231
      %233 = vadd.xlane.f32.xlu0 %v232
      %v234 = vpop.xlane.xlu0 %233
      %v235 = vmul.f32 %v234, %v229
      %v236 = vadd.f32 %v235, 1e-05
      %v237 = vrsqrt.pop %v236
      %v238 = vmul.f32 %v237, %v236
      %v239 = vmul.f32 %v238, %v237
      %v240 = vmul.f32 0.5, %v239
      %v241 = vsub.f32 1.5, %v240
      %v242 = vmul.f32 %v237, %v241
      %vm243 = vweird.f32 %v236
      %vm244 = vweird.f32 %v237
      %vm245 = vmor %vm243, %vm244
      %v246 = vsel %vm245, %v237, %v242
      %v247 = vmul.f32 %v231, %v246
      %v248 = vld [vmem:[%s1] sm:$0xff]
      %v249 = vld [vmem:[%s1 + $0x8] sm:$0xff]
      %v250 = vld [vmem:[%s1 + $0x10] sm:$0xff]
      %v251 = vld [vmem:[%s1 + $0x18] sm:$0xff]
      %v252 = vld [vmem:[%s1 + $0x20] sm:$0xff]
      %v253 = vld [vmem:[%s1 + $0x28] sm:$0xff]
      %v254 = vld [vmem:[%s1 + $0x30] sm:$0xff]
      %v255 = vld [vmem:[%s1 + $0x38] sm:$0xff]
      %v256 = vld [vmem:[%s1 + $0x40] sm:$0xff]
      %v257 = vld [vmem:[%s1 + $0x48] sm:$0xff]
      %v258 = vld [vmem:[%s1 + $0x50] sm:$0xff]
      %v259 = vld [vmem:[%s1 + $0x58] sm:$0xff]
      %v260 = vld [vmem:[%s1 + $0x60] sm:$0xff]
      %v261 = vld [vmem:[%s1 + $0x68] sm:$0xff]
      %v262 = vld [vmem:[%s1 + $0x70] sm:$0xff]
      %v263 = vld [vmem:[%s1 + $0x78] sm:$0xff]
      %v264 = vld [vmem:[%s1 + $0x80] sm:$0xff]
      %v265 = vld [vmem:[%s1 + $0x88] sm:$0xff]
      %v266 = vld [vmem:[%s1 + $0x90] sm:$0xff]
      %v267 = vld [vmem:[%s1 + $0x98] sm:$0xff]
      %v268 = vld [vmem:[%s1 + $0xa0] sm:$0xff]
      %v269 = vld [vmem:[%s1 + $0xa8] sm:$0xff]
      %v270 = vld [vmem:[%s1 + $0xb0] sm:$0xff]
      %v271 = vld [vmem:[%s1 + $0xb8] sm:$0xff]
      %v272 = vld [vmem:[%s1 + $0xc0] sm:$0xff]
      %v273 = vld [vmem:[%s1 + $0xc8] sm:$0xff]
      %v274 = vld [vmem:[%s1 + $0xd0] sm:$0xff]
      %v275 = vld [vmem:[%s1 + $0xd8] sm:$0xff]
      %v276 = vld [vmem:[%s1 + $0xe0] sm:$0xff]
      %v277 = vld [vmem:[%s1 + $0xe8] sm:$0xff]
      %v278 = vld [vmem:[%s1 + $0xf0] sm:$0xff]
      %v279 = vld [vmem:[%s1 + $0xf8] sm:$0xff]
      %v280 = vld [vmem:[%s1 + $0x100] sm:$0xff]
      %v281 = vld [vmem:[%s1 + $0x108] sm:$0xff]
      %v282 = vld [vmem:[%s1 + $0x110] sm:$0xff]
      %v283 = vld [vmem:[%s1 + $0x118] sm:$0xff]
      %v284 = vld [vmem:[%s1 + $0x120] sm:$0xff]
      %v285 = vld [vmem:[%s1 + $0x128] sm:$0xff]
      %v286 = vld [vmem:[%s1 + $0x130] sm:$0xff]
      %v287 = vld [vmem:[%s1 + $0x138] sm:$0xff]
      %v288 = vld [vmem:[%s1 + $0x140] sm:$0xff]
      %v289 = vld [vmem:[%s1 + $0x148] sm:$0xff]
      %v290 = vld [vmem:[%s1 + $0x150] sm:$0xff]
      %v291 = vld [vmem:[%s1 + $0x158] sm:$0xff]
      %v292 = vld [vmem:[%s1 + $0x160] sm:$0xff]
      %v293 = vld [vmem:[%s1 + $0x168] sm:$0xff]
      %v294 = vld [vmem:[%s1 + $0x170] sm:$0xff]
      %v295 = vld [vmem:[%s1 + $0x178] sm:$0xff]
      %v296 = vld [vmem:[%s1 + $0x180] sm:$0xff]
      %v297 = vld [vmem:[%s1 + $0x188] sm:$0xff]
      %v298 = vld [vmem:[%s1 + $0x190] sm:$0xff]
      %v299 = vld [vmem:[%s1 + $0x198] sm:$0xff]
      %v300 = vld [vmem:[%s1 + $0x1a0] sm:$0xff]
      %v301 = vld [vmem:[%s1 + $0x1a8] sm:$0xff]
      %v302 = vld [vmem:[%s1 + $0x1b0] sm:$0xff]
      %v303 = vld [vmem:[%s1 + $0x1b8] sm:$0xff]
      %v304 = vld [vmem:[%s1 + $0x1c0] sm:$0xff]
      %v305 = vld [vmem:[%s1 + $0x1c8] sm:$0xff]
      %v306 = vld [vmem:[%s1 + $0x1d0] sm:$0xff]
      %v307 = vld [vmem:[%s1 + $0x1d8] sm:$0xff]
      %v308 = vld [vmem:[%s1 + $0x1e0] sm:$0xff]
      %v309 = vld [vmem:[%s1 + $0x1e8] sm:$0xff]
      %v310 = vld [vmem:[%s1 + $0x1f0] sm:$0xff]
      %v311 = vld [vmem:[%s1 + $0x1f8] sm:$0xff]
      %v312 = vld [vmem:[%s2] sm:$0xf]
      %v314 = vperm.slane %v312, 0
      %v315 = vperm.slane %v312, 1
      %v316 = vperm.slane %v312, 2
      %v317 = vperm.slane %v312, 3
      %322 = vmatpush.msra.mxu0 %v308
      %323 = vmatpush.msra.mxu0 %v304
      %324 = vmatpush.msra.mxu0 %v300
      %325 = vmatpush.msra.mxu0 %v296
      %326 = vmatpush.msra.mxu0 %v292
      %327 = vmatpush.msra.mxu0 %v288
      %328 = vmatpush.msra.mxu0 %v284
      %329 = vmatpush.msra.mxu0 %v280
      %330 = vmatpush.msra.mxu0 %v276
      %331 = vmatpush.msra.mxu0 %v272
      %332 = vmatpush.msra.mxu0 %v268
      %333 = vmatpush.msra.mxu0 %v264
      %334 = vmatpush.msra.mxu0 %v260
      %335 = vmatpush.msra.mxu0 %v256
      %336 = vmatpush.msra.mxu0 %v252
      %337 = vmatpush.msra.mxu0 %v248
      %338 = vmatmul.f32.gmra.mxu0 %v247
      %v339 = vpop.f32.mrf.mxu0
      %v340 = vadd.f32 %v314, %v339
      %341 = vdwg.mxu0
      %342 = vmatpush.msra.mxu0 %v309
      %343 = vmatpush.msra.mxu0 %v305
      %344 = vmatpush.msra.mxu0 %v301
      %345 = vmatpush.msra.mxu0 %v297
      %346 = vmatpush.msra.mxu0 %v293
      %347 = vmatpush.msra.mxu0 %v289
      %348 = vmatpush.msra.mxu0 %v285
      %349 = vmatpush.msra.mxu0 %v281
      %350 = vmatpush.msra.mxu0 %v277
      %351 = vmatpush.msra.mxu0 %v273
      %352 = vmatpush.msra.mxu0 %v269
      %353 = vmatpush.msra.mxu0 %v265
      %354 = vmatpush.msra.mxu0 %v261
      %355 = vmatpush.msra.mxu0 %v257
      %356 = vmatpush.msra.mxu0 %v253
      %357 = vmatpush.msra.mxu0 %v249
      %358 = vmatmul.f32.gmra.mxu0 %v247
      %v359 = vpop.f32.mrf.mxu0
      %v360 = vadd.f32 %v315, %v359
      %361 = vdwg.mxu0
      %362 = vmatpush.msra.mxu0 %v310
      %363 = vmatpush.msra.mxu0 %v306
      %364 = vmatpush.msra.mxu0 %v302
      %365 = vmatpush.msra.mxu0 %v298
      %366 = vmatpush.msra.mxu0 %v294
      %367 = vmatpush.msra.mxu0 %v290
      %368 = vmatpush.msra.mxu0 %v286
      %369 = vmatpush.msra.mxu0 %v282
      %370 = vmatpush.msra.mxu0 %v278
      %371 = vmatpush.msra.mxu0 %v274
      %372 = vmatpush.msra.mxu0 %v270
      %373 = vmatpush.msra.mxu0 %v266
      %374 = vmatpush.msra.mxu0 %v262
      %375 = vmatpush.msra.mxu0 %v258
      %376 = vmatpush.msra.mxu0 %v254
      %377 = vmatpush.msra.mxu0 %v250
      %378 = vmatmul.f32.gmra.mxu0 %v247
      %v379 = vpop.f32.mrf.mxu0
      %v380 = vadd.f32 %v316, %v379
      %381 = vdwg.mxu0
      %382 = vmatpush.msra.mxu0 %v311
      %383 = vmatpush.msra.mxu0 %v307
      %384 = vmatpush.msra.mxu0 %v303
      %385 = vmatpush.msra.mxu0 %v299
      %386 = vmatpush.msra.mxu0 %v295
      %387 = vmatpush.msra.mxu0 %v291
      %388 = vmatpush.msra.mxu0 %v287
      %389 = vmatpush.msra.mxu0 %v283
      %390 = vmatpush.msra.mxu0 %v279
      %391 = vmatpush.msra.mxu0 %v275
      %392 = vmatpush.msra.mxu0 %v271
      %393 = vmatpush.msra.mxu0 %v267
      %394 = vmatpush.msra.mxu0 %v263
      %395 = vmatpush.msra.mxu0 %v259
      %396 = vmatpush.msra.mxu0 %v255
      %397 = vmatpush.msra.mxu0 %v251
      %398 = vmatmul.f32.gmra.mxu0 %v247
      %v399 = vpop.f32.mrf.mxu0
      %v400 = vadd.f32 %v317, %v399
      %401 = vdwg.mxu0
      %v402 = vmax.f32 %v340, 0.0
      %v403 = vmax.f32 %v360, 0.0
      %v404 = vmax.f32 %v380, 0.0
      %v405 = vmax.f32 %v400, 0.0
      %v406 = vld [vmem:[%s3] sm:$0xff]
      %v407 = vld [vmem:[%s3 + $0x8] sm:$0xff]
      %v408 = vld [vmem:[%s3 + $0x10] sm:$0xff]
      %v409 = vld [vmem:[%s3 + $0x18] sm:$0xff]
      %v410 = vld [vmem:[%s3 + $0x20] sm:$0xff]
      %v411 = vld [vmem:[%s3 + $0x28] sm:$0xff]
      %v412 = vld [vmem:[%s3 + $0x30] sm:$0xff]
      %v413 = vld [vmem:[%s3 + $0x38] sm:$0xff]
      %v414 = vld [vmem:[%s3 + $0x40] sm:$0xff]
      %v415 = vld [vmem:[%s3 + $0x48] sm:$0xff]
      %v416 = vld [vmem:[%s3 + $0x50] sm:$0xff]
      %v417 = vld [vmem:[%s3 + $0x58] sm:$0xff]
      %v418 = vld [vmem:[%s3 + $0x60] sm:$0xff]
      %v419 = vld [vmem:[%s3 + $0x68] sm:$0xff]
      %v420 = vld [vmem:[%s3 + $0x70] sm:$0xff]
      %v421 = vld [vmem:[%s3 + $0x78] sm:$0xff]
      %v422 = vld [vmem:[%s3 + $0x80] sm:$0xff]
      %v423 = vld [vmem:[%s3 + $0x88] sm:$0xff]
      %v424 = vld [vmem:[%s3 + $0x90] sm:$0xff]
      %v425 = vld [vmem:[%s3 + $0x98] sm:$0xff]
      %v426 = vld [vmem:[%s3 + $0xa0] sm:$0xff]
      %v427 = vld [vmem:[%s3 + $0xa8] sm:$0xff]
      %v428 = vld [vmem:[%s3 + $0xb0] sm:$0xff]
      %v429 = vld [vmem:[%s3 + $0xb8] sm:$0xff]
      %v430 = vld [vmem:[%s3 + $0xc0] sm:$0xff]
      %v431 = vld [vmem:[%s3 + $0xc8] sm:$0xff]
      %v432 = vld [vmem:[%s3 + $0xd0] sm:$0xff]
      %v433 = vld [vmem:[%s3 + $0xd8] sm:$0xff]
      %v434 = vld [vmem:[%s3 + $0xe0] sm:$0xff]
      %v435 = vld [vmem:[%s3 + $0xe8] sm:$0xff]
      %v436 = vld [vmem:[%s3 + $0xf0] sm:$0xff]
      %v437 = vld [vmem:[%s3 + $0xf8] sm:$0xff]
      %v438 = vld [vmem:[%s3 + $0x100] sm:$0xff]
      %v439 = vld [vmem:[%s3 + $0x108] sm:$0xff]
      %v440 = vld [vmem:[%s3 + $0x110] sm:$0xff]
      %v441 = vld [vmem:[%s3 + $0x118] sm:$0xff]
      %v442 = vld [vmem:[%s3 + $0x120] sm:$0xff]
      %v443 = vld [vmem:[%s3 + $0x128] sm:$0xff]
      %v444 = vld [vmem:[%s3 + $0x130] sm:$0xff]
      %v445 = vld [vmem:[%s3 + $0x138] sm:$0xff]
      %v446 = vld [vmem:[%s3 + $0x140] sm:$0xff]
      %v447 = vld [vmem:[%s3 + $0x148] sm:$0xff]
      %v448 = vld [vmem:[%s3 + $0x150] sm:$0xff]
      %v449 = vld [vmem:[%s3 + $0x158] sm:$0xff]
      %v450 = vld [vmem:[%s3 + $0x160] sm:$0xff]
      %v451 = vld [vmem:[%s3 + $0x168] sm:$0xff]
      %v452 = vld [vmem:[%s3 + $0x170] sm:$0xff]
      %v453 = vld [vmem:[%s3 + $0x178] sm:$0xff]
      %v454 = vld [vmem:[%s3 + $0x180] sm:$0xff]
      %v455 = vld [vmem:[%s3 + $0x188] sm:$0xff]
      %v456 = vld [vmem:[%s3 + $0x190] sm:$0xff]
      %v457 = vld [vmem:[%s3 + $0x198] sm:$0xff]
      %v458 = vld [vmem:[%s3 + $0x1a0] sm:$0xff]
      %v459 = vld [vmem:[%s3 + $0x1a8] sm:$0xff]
      %v460 = vld [vmem:[%s3 + $0x1b0] sm:$0xff]
      %v461 = vld [vmem:[%s3 + $0x1b8] sm:$0xff]
      %v462 = vld [vmem:[%s3 + $0x1c0] sm:$0xff]
      %v463 = vld [vmem:[%s3 + $0x1c8] sm:$0xff]
      %v464 = vld [vmem:[%s3 + $0x1d0] sm:$0xff]
      %v465 = vld [vmem:[%s3 + $0x1d8] sm:$0xff]
      %v466 = vld [vmem:[%s3 + $0x1e0] sm:$0xff]
      %v467 = vld [vmem:[%s3 + $0x1e8] sm:$0xff]
      %v468 = vld [vmem:[%s3 + $0x1f0] sm:$0xff]
      %v469 = vld [vmem:[%s3 + $0x1f8] sm:$0xff]
      %v470 = vld [vmem:[%s4] sm:$0x1]
      %v472 = vperm.slane %v470, 0
      %474 = vmatpush.msra.mxu0 %v421
      %475 = vmatpush.msra.mxu0 %v420
      %476 = vmatpush.msra.mxu0 %v419
      %477 = vmatpush.msra.mxu0 %v418
      %478 = vmatpush.msra.mxu0 %v417
      %479 = vmatpush.msra.mxu0 %v416
      %480 = vmatpush.msra.mxu0 %v415
      %481 = vmatpush.msra.mxu0 %v414
      %482 = vmatpush.msra.mxu0 %v413
      %483 = vmatpush.msra.mxu0 %v412
      %484 = vmatpush.msra.mxu0 %v411
      %485 = vmatpush.msra.mxu0 %v410
      %486 = vmatpush.msra.mxu0 %v409
      %487 = vmatpush.msra.mxu0 %v408
      %488 = vmatpush.msra.mxu0 %v407
      %489 = vmatpush.msra.mxu0 %v406
      %490 = vmatmul.f32.gmra.mxu0 %v402
      %v491 = vpop.f32.mrf.mxu0
      %v492 = vadd.f32 %v472, %v491
      %493 = vdwg.mxu0
      %494 = vmatpush.msra.mxu0 %v437
      %495 = vmatpush.msra.mxu0 %v436
      %496 = vmatpush.msra.mxu0 %v435
      %497 = vmatpush.msra.mxu0 %v434
      %498 = vmatpush.msra.mxu0 %v433
      %499 = vmatpush.msra.mxu0 %v432
      %500 = vmatpush.msra.mxu0 %v431
      %501 = vmatpush.msra.mxu0 %v430
      %502 = vmatpush.msra.mxu0 %v429
      %503 = vmatpush.msra.mxu0 %v428
      %504 = vmatpush.msra.mxu0 %v427
      %505 = vmatpush.msra.mxu0 %v426
      %506 = vmatpush.msra.mxu0 %v425
      %507 = vmatpush.msra.mxu0 %v424
      %508 = vmatpush.msra.mxu0 %v423
      %509 = vmatpush.msra.mxu0 %v422
      %510 = vmatmul.f32.gmra.mxu0 %v403
      %v511 = vpop.f32.mrf.mxu0
      %v512 = vadd.f32 %v492, %v511
      %513 = vdwg.mxu0
      %514 = vmatpush.msra.mxu0 %v453
      %515 = vmatpush.msra.mxu0 %v452
      %516 = vmatpush.msra.mxu0 %v451
      %517 = vmatpush.msra.mxu0 %v450
      %518 = vmatpush.msra.mxu0 %v449
      %519 = vmatpush.msra.mxu0 %v448
      %520 = vmatpush.msra.mxu0 %v447
      %521 = vmatpush.msra.mxu0 %v446
      %522 = vmatpush.msra.mxu0 %v445
      %523 = vmatpush.msra.mxu0 %v444
      %524 = vmatpush.msra.mxu0 %v443
      %525 = vmatpush.msra.mxu0 %v442
      %526 = vmatpush.msra.mxu0 %v441
      %527 = vmatpush.msra.mxu0 %v440
      %528 = vmatpush.msra.mxu0 %v439
      %529 = vmatpush.msra.mxu0 %v438
      %530 = vmatmul.f32.gmra.mxu0 %v404
      %v531 = vpop.f32.mrf.mxu0
      %v532 = vadd.f32 %v512, %v531
      %533 = vdwg.mxu0
      %534 = vmatpush.msra.mxu0 %v469
      %535 = vmatpush.msra.mxu0 %v468
      %536 = vmatpush.msra.mxu0 %v467
      %537 = vmatpush.msra.mxu0 %v466
      %538 = vmatpush.msra.mxu0 %v465
      %539 = vmatpush.msra.mxu0 %v464
      %540 = vmatpush.msra.mxu0 %v463
      %541 = vmatpush.msra.mxu0 %v462
      %542 = vmatpush.msra.mxu0 %v461
      %543 = vmatpush.msra.mxu0 %v460
      %544 = vmatpush.msra.mxu0 %v459
      %545 = vmatpush.msra.mxu0 %v458
      %546 = vmatpush.msra.mxu0 %v457
      %547 = vmatpush.msra.mxu0 %v456
      %548 = vmatpush.msra.mxu0 %v455
      %549 = vmatpush.msra.mxu0 %v454
      %550 = vmatmul.f32.gmra.mxu0 %v405
      %v551 = vpop.f32.mrf.mxu0
      %v552 = vadd.f32 %v532, %v551
      %553 = vdwg.mxu0
      %v554 = vadd.f32 %v220, %v552
      %555 = vst [vmem:[%s219] sm:$0xff] %v554
      %p556 = scmp.lt.s32.totalorder %s16, 1
      %s557 = scalar_select %p556, %s16, 1
      %s558 = smul.addr %s557, 8
      %s559 = scalar_lea.vmem %s5, %s558
      // Predicated region
      $region41: #{sentiment_classifier_pallas.7} parent=39 // pred_check
        %p560 = pneg %p144
      $region42: #{sentiment_classifier_pallas.7} parent=39 // pred_check_branch
        %562 = sbr.rel (%p560) target = $region44
      $region43: #{sentiment_classifier_pallas.7} parent=39 // pred_region
        _
      $region44: #{sentiment_classifier_pallas.7} parent=39 // pred_fallthru
        _
    $region40: #{sentiment_classifier_pallas.7} parent=5 // pred_fallthru
      _
    %p563 = scmp.le.s32.totalorder 2, %s11
    // Predicated region
    $region45: #{sentiment_classifier_pallas.7} parent=5 // pred_check
      %p564 = pneg %p563
    $region46: #{sentiment_classifier_pallas.7} parent=5 // pred_check_branch
      %566 = sbr.rel (%p564) target = $region48
    $region47: #{sentiment_classifier_pallas.7} parent=5 // pred_region
      %s567 = ssub.s32 %s11, 2
      // Predicated region
      $region49: #{sentiment_classifier_pallas.7} parent=47 // pred_check
        %p568 = pneg %p150
      $region50: #{sentiment_classifier_pallas.7} parent=47 // pred_check_branch
        %570 = sbr.rel (%p568) target = $region52
      $region51: #{sentiment_classifier_pallas.7} parent=47 // pred_region
        %p571 = scmp.lt.s32.totalorder %s17, 1
        %s572 = scalar_select %p571, %s17, 1
        %s573 = smul.addr %s572, 8
        %s574 = scalar_lea.vmem %s5, %s573
      $region52: #{sentiment_classifier_pallas.7} parent=47 // pred_fallthru
        _
    $region48: #{sentiment_classifier_pallas.7} parent=5 // pred_fallthru
      _
  $region6: #{sentiment_classifier_pallas.7} parent=0 // loop_footer
    %s15 = sadd.s32 1, %s11
  $region7: #{sentiment_classifier_pallas.7} parent=0 // loop_footer_branch
    %10 = sbr.rel target = $region3
  $region8: #{sentiment_classifier_pallas.7} parent=0 // loop_exit
    _

// kernel: sentiment_classifier_pallas.6
$region0: #{sentiment_classifier_pallas.6}
  #allocation0 [shape = 'u32[]', space=smem, size = 0x4, offset = 0x4, fixed_abs, tag = 'smem constant byte address 0x4 - core index']
  #allocation1 [shape = 'u32[72,128]{1,0:T(1,128)}', space=vmem, size = 0x9000, scoped, tag = 'internal scratch']
  %s0 = inlined_call_operand.vmem [shape: f32[2,8,128], index: 0, kind: input, shape index: {}]
  %s1 = inlined_call_operand.vmem [shape: f32[128,384], index: 1, kind: input, shape index: {}]
  %s2 = inlined_call_operand.vmem [shape: f32[1,384], index: 2, kind: input, shape index: {}]
  %s3 = inlined_call_operand.vmem [shape: f32[128,128], index: 3, kind: input, shape index: {}]
  %s4 = inlined_call_operand.vmem [shape: f32[1,128], index: 4, kind: input, shape index: {}]
  %s5 = inlined_call_operand.vmem [shape: f32[2,8,128], index: 5, kind: output, shape index: {}]
  %s6 = sld [smem:[#allocation0]]
  $region53: #{sentiment_classifier_pallas.6} parent=0
    _
  %s8 = ssub.s32 1, %s6
  %s9 = scalar_select 0, %s8, %s6
  loop: start=0, step=1, limit=4
  $region2: #{sentiment_classifier_pallas.6} parent=0 // loop_pre_header
    _
  $region3: #{sentiment_classifier_pallas.6} parent=0 // loop_header
    %s11 = sphi 0, %s15
    %p12 = scmp.ge.s32.totalorder %s11, 4
    %s21 = sphi 0, %s23
    %s24 = sphi 0, %s21
    %s25 = sphi 0, %s24
    %s41 = sphi 0, %s25
    %s45 = sphi 0, %s45
    %s47 = sphi 0, %s45
    %s48 = sphi 0, %s47
    %s62 = sphi 0, %s48
    %s66 = sphi 0, %s66
    %s68 = sphi 0, %s66
    %s69 = sphi 0, %s68
    %s83 = sphi 0, %s69
    %s87 = sphi 0, %s87
    %s89 = sphi 0, %s87
    %s90 = sphi 0, %s89
    %s104 = sphi 0, %s90
    %s108 = sphi 0, %s108
    %s110 = sphi 0, %s108
    %s111 = sphi 0, %s110
    %s125 = sphi 0, %s111
    %s131 = sphi 0, %s133
    %s134 = sphi 0, %s131
    %s135 = sphi 0, %s134
    %s151 = sphi 0, %s135
  $region4: #{sentiment_classifier_pallas.6} parent=0 // loop_header_branch
    %14 = sbr.rel (%p12) target = $region8
  $region5: #{sentiment_classifier_pallas.6} parent=0 // loop_body
    %s16 = ssub.s32 %s11, 1
    %s17 = ssub.s32 %s11, 2
    %s18 = sadd.s32 %s11, 1
    %s19 = ssub.s32 %s11, %s18
    %p20 = scmp.eq.s32.totalorder %s19, 0
    %s22 = sadd.s32 %s21, 1
    %s23 = scalar_select %p20, %s21, %s22
    %p26 = pneg %p20
    %p27 = scmp.eq.s32.totalorder %s11, 1
    %p28 = por %p26, %p27
    %p29 = scmp.ne.s32.totalorder %s21, %s24
    %p30 = scmp.eq.s32.totalorder %s11, 0
    %p31 = por %p29, %p30
    %p32 = scmp.ne.s32.totalorder %s21, %s24
    %p33 = scmp.eq.s32.totalorder %s16, 1
    %p34 = por %p32, %p33
    %p35 = scmp.ne.s32.totalorder %s24, %s25
    %p36 = scmp.eq.s32.totalorder %s16, 0
    %p37 = por %p35, %p36
    %p38 = scmp.ne.s32.totalorder %s24, %s25
    %p39 = scmp.eq.s32.totalorder %s17, 1
    %p40 = por %p38, %p39
    %p42 = scmp.ne.s32.totalorder %s25, %s41
    %p43 = scmp.eq.s32.totalorder %s17, 0
    %p44 = por %p42, %p43
    %s46 = sadd.s32 %s45, 1
    %p49 = scmp.eq.s32.totalorder %s11, 1
    %p50 = scmp.ne.s32.totalorder %s45, %s47
    %p51 = scmp.eq.s32.totalorder %s11, 0
    %p52 = por %p50, %p51
    %p53 = scmp.ne.s32.totalorder %s45, %s47
    %p54 = scmp.eq.s32.totalorder %s16, 1
    %p55 = por %p53, %p54
    %p56 = scmp.ne.s32.totalorder %s47, %s48
    %p57 = scmp.eq.s32.totalorder %s16, 0
    %p58 = por %p56, %p57
    %p59 = scmp.ne.s32.totalorder %s47, %s48
    %p60 = scmp.eq.s32.totalorder %s17, 1
    %p61 = por %p59, %p60
    %p63 = scmp.ne.s32.totalorder %s48, %s62
    %p64 = scmp.eq.s32.totalorder %s17, 0
    %p65 = por %p63, %p64
    %s67 = sadd.s32 %s66, 1
    %p70 = scmp.eq.s32.totalorder %s11, 1
    %p71 = scmp.ne.s32.totalorder %s66, %s68
    %p72 = scmp.eq.s32.totalorder %s11, 0
    %p73 = por %p71, %p72
    %p74 = scmp.ne.s32.totalorder %s66, %s68
    %p75 = scmp.eq.s32.totalorder %s16, 1
    %p76 = por %p74, %p75
    %p77 = scmp.ne.s32.totalorder %s68, %s69
    %p78 = scmp.eq.s32.totalorder %s16, 0
    %p79 = por %p77, %p78
    %p80 = scmp.ne.s32.totalorder %s68, %s69
    %p81 = scmp.eq.s32.totalorder %s17, 1
    %p82 = por %p80, %p81
    %p84 = scmp.ne.s32.totalorder %s69, %s83
    %p85 = scmp.eq.s32.totalorder %s17, 0
    %p86 = por %p84, %p85
    %s88 = sadd.s32 %s87, 1
    %p91 = scmp.eq.s32.totalorder %s11, 1
    %p92 = scmp.ne.s32.totalorder %s87, %s89
    %p93 = scmp.eq.s32.totalorder %s11, 0
    %p94 = por %p92, %p93
    %p95 = scmp.ne.s32.totalorder %s87, %s89
    %p96 = scmp.eq.s32.totalorder %s16, 1
    %p97 = por %p95, %p96
    %p98 = scmp.ne.s32.totalorder %s89, %s90
    %p99 = scmp.eq.s32.totalorder %s16, 0
    %p100 = por %p98, %p99
    %p101 = scmp.ne.s32.totalorder %s89, %s90
    %p102 = scmp.eq.s32.totalorder %s17, 1
    %p103 = por %p101, %p102
    %p105 = scmp.ne.s32.totalorder %s90, %s104
    %p106 = scmp.eq.s32.totalorder %s17, 0
    %p107 = por %p105, %p106
    %s109 = sadd.s32 %s108, 1
    %p112 = scmp.eq.s32.totalorder %s11, 1
    %p113 = scmp.ne.s32.totalorder %s108, %s110
    %p114 = scmp.eq.s32.totalorder %s11, 0
    %p115 = por %p113, %p114
    %p116 = scmp.ne.s32.totalorder %s108, %s110
    %p117 = scmp.eq.s32.totalorder %s16, 1
    %p118 = por %p116, %p117
    %p119 = scmp.ne.s32.totalorder %s110, %s111
    %p120 = scmp.eq.s32.totalorder %s16, 0
    %p121 = por %p119, %p120
    %p122 = scmp.ne.s32.totalorder %s110, %s111
    %p123 = scmp.eq.s32.totalorder %s17, 1
    %p124 = por %p122, %p123
    %p126 = scmp.ne.s32.totalorder %s111, %s125
    %p127 = scmp.eq.s32.totalorder %s17, 0
    %p128 = por %p126, %p127
    %s129 = ssub.s32 %s11, %s18
    %p130 = scmp.eq.s32.totalorder %s129, 0
    %s132 = sadd.s32 %s131, 1
    %s133 = scalar_select %p130, %s131, %s132
    %p136 = pneg %p130
    %p137 = scmp.eq.s32.totalorder %s11, 1
    %p138 = por %p136, %p137
    %p139 = scmp.ne.s32.totalorder %s131, %s134
    %p140 = scmp.eq.s32.totalorder %s11, 0
    %p141 = por %p139, %p140
    %p142 = scmp.ne.s32.totalorder %s131, %s134
    %p143 = scmp.eq.s32.totalorder %s16, 1
    %p144 = por %p142, %p143
    %p145 = scmp.ne.s32.totalorder %s134, %s135
    %p146 = scmp.eq.s32.totalorder %s16, 0
    %p147 = por %p145, %p146
    %p148 = scmp.ne.s32.totalorder %s134, %s135
    %p149 = scmp.eq.s32.totalorder %s17, 1
    %p150 = por %p148, %p149
    %p152 = scmp.ne.s32.totalorder %s135, %s151
    %p153 = scmp.eq.s32.totalorder %s17, 0
    %p154 = por %p152, %p153
    %p155 = scmp.le.s32.totalorder 1, %s11
    %p156 = scmp.lt.s32.totalorder %s11, 3
    %p157 = pnand %p155, %p156
    %p158 = pneg %p157
    // Predicated region
    $region9: #{sentiment_classifier_pallas.6} parent=5 // pred_check
      _
    $region10: #{sentiment_classifier_pallas.6} parent=5 // pred_check_branch
      %160 = sbr.rel (%p157) target = $region12
    $region11: #{sentiment_classifier_pallas.6} parent=5 // pred_region
      %s161 = ssub.s32 %s11, 1
      // Predicated region
      $region13: #{sentiment_classifier_pallas.6} parent=11 // pred_check
        %p162 = pneg %p58
      $region14: #{sentiment_classifier_pallas.6} parent=11 // pred_check_branch
        %164 = sbr.rel (%p162) target = $region16
      $region15: #{sentiment_classifier_pallas.6} parent=11 // pred_region
        _
      $region16: #{sentiment_classifier_pallas.6} parent=11 // pred_fallthru
        _
      // Predicated region
      $region17: #{sentiment_classifier_pallas.6} parent=11 // pred_check
        %p165 = pneg %p79
      $region18: #{sentiment_classifier_pallas.6} parent=11 // pred_check_branch
        %167 = sbr.rel (%p165) target = $region20
      $region19: #{sentiment_classifier_pallas.6} parent=11 // pred_region
        _
      $region20: #{sentiment_classifier_pallas.6} parent=11 // pred_fallthru
        _
      // Predicated region
      $region21: #{sentiment_classifier_pallas.6} parent=11 // pred_check
        %p168 = pneg %p100
      $region22: #{sentiment_classifier_pallas.6} parent=11 // pred_check_branch
        %170 = sbr.rel (%p168) target = $region24
      $region23: #{sentiment_classifier_pallas.6} parent=11 // pred_region
        _
      $region24: #{sentiment_classifier_pallas.6} parent=11 // pred_fallthru
        _
      // Predicated region
      $region25: #{sentiment_classifier_pallas.6} parent=11 // pred_check
        %p171 = pneg %p121
      $region26: #{sentiment_classifier_pallas.6} parent=11 // pred_check_branch
        %173 = sbr.rel (%p171) target = $region28
      $region27: #{sentiment_classifier_pallas.6} parent=11 // pred_region
        _
      $region28: #{sentiment_classifier_pallas.6} parent=11 // pred_fallthru
        _
    $region12: #{sentiment_classifier_pallas.6} parent=5 // pred_fallthru
      _
    %p174 = scmp.lt.s32.totalorder %s11, 2
    // Predicated region
    $region29: #{sentiment_classifier_pallas.6} parent=5 // pred_check
      %p175 = pneg %p174
    $region30: #{sentiment_classifier_pallas.6} parent=5 // pred_check_branch
      %177 = sbr.rel (%p175) target = $region32
    $region31: #{sentiment_classifier_pallas.6} parent=5 // pred_region
      // Predicated region
      $region33: #{sentiment_classifier_pallas.6} parent=31 // pred_check
        %p178 = pneg %p31
      $region34: #{sentiment_classifier_pallas.6} parent=31 // pred_check_branch
        %180 = sbr.rel (%p178) target = $region36
      $region35: #{sentiment_classifier_pallas.6} parent=31 // pred_region
        %p181 = scmp.lt.s32.totalorder %s11, 1
        %s182 = scalar_select %p181, %s11, 1
        %s183 = smul.addr %s182, 8
        %s184 = scalar_lea.vmem %s0, %s183
      $region36: #{sentiment_classifier_pallas.6} parent=31 // pred_fallthru
        _
    $region32: #{sentiment_classifier_pallas.6} parent=5 // pred_fallthru
      _
    %p185 = scmp.le.s32.totalorder 1, %s11
    %p186 = scmp.lt.s32.totalorder %s11, 3
    %p187 = pnand %p185, %p186
    %p188 = pneg %p187
    // Predicated region
    $region37: #{sentiment_classifier_pallas.6} parent=5 // pred_check
      _
    $region38: #{sentiment_classifier_pallas.6} parent=5 // pred_check_branch
      %190 = sbr.rel (%p187) target = $region40
    $region39: #{sentiment_classifier_pallas.6} parent=5 // pred_region
      %s191 = ssub.s32 %s11, 1
      %p192 = scmp.lt.s32.totalorder %s16, 1
      %s193 = scalar_select %p192, %s16, 1
      %s194 = smul.addr %s193, 8
      %s195 = scalar_lea.vmem %s0, %s194
      %p196 = pneg %p37
      %p197 = pneg %p34
      %p198 = pneg %p58
      %p199 = pneg %p55
      %p200 = pneg %p79
      %p201 = pneg %p76
      %p202 = pneg %p100
      %p203 = pneg %p97
      %p204 = pneg %p121
      %p205 = pneg %p118
      %p206 = pneg %p147
      %p207 = pneg %p144
      %p208 = scmp.lt.s32.totalorder %s16, 1
      %s209 = scalar_select %p208, %s16, 1
      %s210 = smul.addr %s209, 8
      %s211 = scalar_lea.vmem %s5, %s210
      %p212 = scmp.lt.s32.totalorder %s16, 1
      %s213 = scalar_select %p212, %s16, 1
      %s214 = smul.addr %s213, 8
      %s215 = scalar_lea.vmem %s0, %s214
      %p216 = scmp.lt.s32.totalorder %s16, 1
      %s217 = scalar_select %p216, %s16, 1
      %s218 = smul.addr %s217, 8
      %s219 = scalar_lea.vmem %s5, %s218
      %v220 = vld [vmem:[%s215] sm:$0xff]
      %221 = vadd.xlane.f32.xlu0 %v220
      %v222 = vpop.xlane.xlu0 %221
      %v223 = vrcp.pop 128.0
      %v224 = vmul.f32 128.0, %v223
      %v225 = vsub.f32 1.0, %v224
      %v226 = vmul.f32 %v223, %v225
      %v227 = vadd.f32 %v223, %v226
      %vm228 = vweird.f32 %v223
      %v229 = vsel %vm228, %v223, %v227
      %v230 = vmul.f32 %v222, %v229
      %v231 = vsub.f32 %v220, %v230
      %v232 = vmul.f32 %v231, %v231
      %233 = vadd.xlane.f32.xlu0 %v232
      %v234 = vpop.xlane.xlu0 %233
      %v235 = vmul.f32 %v234, %v229
      %v236 = vadd.f32 %v235, 1e-05
      %v237 = vrsqrt.pop %v236
      %v238 = vmul.f32 %v237, %v236
      %v239 = vmul.f32 %v238, %v237
      %v240 = vmul.f32 0.5, %v239
      %v241 = vsub.f32 1.5, %v240
      %v242 = vmul.f32 %v237, %v241
      %vm243 = vweird.f32 %v236
      %vm244 = vweird.f32 %v237
      %vm245 = vmor %vm243, %vm244
      %v246 = vsel %vm245, %v237, %v242
      %v247 = vmul.f32 %v231, %v246
      %v248 = vld [vmem:[%s1] sm:$0xff]
      %v249 = vld [vmem:[%s1 + $0x8] sm:$0xff]
      %v250 = vld [vmem:[%s1 + $0x10] sm:$0xff]
      %v251 = vld [vmem:[%s1 + $0x18] sm:$0xff]
      %v252 = vld [vmem:[%s1 + $0x20] sm:$0xff]
      %v253 = vld [vmem:[%s1 + $0x28] sm:$0xff]
      %v254 = vld [vmem:[%s1 + $0x30] sm:$0xff]
      %v255 = vld [vmem:[%s1 + $0x38] sm:$0xff]
      %v256 = vld [vmem:[%s1 + $0x40] sm:$0xff]
      %v257 = vld [vmem:[%s1 + $0x48] sm:$0xff]
      %v258 = vld [vmem:[%s1 + $0x50] sm:$0xff]
      %v259 = vld [vmem:[%s1 + $0x58] sm:$0xff]
      %v260 = vld [vmem:[%s1 + $0x60] sm:$0xff]
      %v261 = vld [vmem:[%s1 + $0x68] sm:$0xff]
      %v262 = vld [vmem:[%s1 + $0x70] sm:$0xff]
      %v263 = vld [vmem:[%s1 + $0x78] sm:$0xff]
      %v264 = vld [vmem:[%s1 + $0x80] sm:$0xff]
      %v265 = vld [vmem:[%s1 + $0x88] sm:$0xff]
      %v266 = vld [vmem:[%s1 + $0x90] sm:$0xff]
      %v267 = vld [vmem:[%s1 + $0x98] sm:$0xff]
      %v268 = vld [vmem:[%s1 + $0xa0] sm:$0xff]
      %v269 = vld [vmem:[%s1 + $0xa8] sm:$0xff]
      %v270 = vld [vmem:[%s1 + $0xb0] sm:$0xff]
      %v271 = vld [vmem:[%s1 + $0xb8] sm:$0xff]
      %v272 = vld [vmem:[%s1 + $0xc0] sm:$0xff]
      %v273 = vld [vmem:[%s1 + $0xc8] sm:$0xff]
      %v274 = vld [vmem:[%s1 + $0xd0] sm:$0xff]
      %v275 = vld [vmem:[%s1 + $0xd8] sm:$0xff]
      %v276 = vld [vmem:[%s1 + $0xe0] sm:$0xff]
      %v277 = vld [vmem:[%s1 + $0xe8] sm:$0xff]
      %v278 = vld [vmem:[%s1 + $0xf0] sm:$0xff]
      %v279 = vld [vmem:[%s1 + $0xf8] sm:$0xff]
      %v280 = vld [vmem:[%s1 + $0x100] sm:$0xff]
      %v281 = vld [vmem:[%s1 + $0x108] sm:$0xff]
      %v282 = vld [vmem:[%s1 + $0x110] sm:$0xff]
      %v283 = vld [vmem:[%s1 + $0x118] sm:$0xff]
      %v284 = vld [vmem:[%s1 + $0x120] sm:$0xff]
      %v285 = vld [vmem:[%s1 + $0x128] sm:$0xff]
      %v286 = vld [vmem:[%s1 + $0x130] sm:$0xff]
      %v287 = vld [vmem:[%s1 + $0x138] sm:$0xff]
      %v288 = vld [vmem:[%s1 + $0x140] sm:$0xff]
      %v289 = vld [vmem:[%s1 + $0x148] sm:$0xff]
      %v290 = vld [vmem:[%s1 + $0x150] sm:$0xff]
      %v291 = vld [vmem:[%s1 + $0x158] sm:$0xff]
      %v292 = vld [vmem:[%s1 + $0x160] sm:$0xff]
      %v293 = vld [vmem:[%s1 + $0x168] sm:$0xff]
      %v294 = vld [vmem:[%s1 + $0x170] sm:$0xff]
      %v295 = vld [vmem:[%s1 + $0x178] sm:$0xff]
      %v296 = vld [vmem:[%s2] sm:$0x7]
      %v298 = vperm.slane %v296, 0
      %v299 = vperm.slane %v296, 1
      %v300 = vperm.slane %v296, 2
      %304 = vmatpush.msra.mxu0 %v293
      %305 = vmatpush.msra.mxu0 %v290
      %306 = vmatpush.msra.mxu0 %v287
      %307 = vmatpush.msra.mxu0 %v284
      %308 = vmatpush.msra.mxu0 %v281
      %309 = vmatpush.msra.mxu0 %v278
      %310 = vmatpush.msra.mxu0 %v275
      %311 = vmatpush.msra.mxu0 %v272
      %312 = vmatpush.msra.mxu0 %v269
      %313 = vmatpush.msra.mxu0 %v266
      %314 = vmatpush.msra.mxu0 %v263
      %315 = vmatpush.msra.mxu0 %v260
      %316 = vmatpush.msra.mxu0 %v257
      %317 = vmatpush.msra.mxu0 %v254
      %318 = vmatpush.msra.mxu0 %v251
      %319 = vmatpush.msra.mxu0 %v248
      %320 = vmatmul.f32.gmra.mxu0 %v247
      %v321 = vpop.f32.mrf.mxu0
      %v322 = vadd.f32 %v298, %v321
      %323 = vdwg.mxu0
      %324 = vmatpush.msra.mxu0 %v294
      %325 = vmatpush.msra.mxu0 %v291
      %326 = vmatpush.msra.mxu0 %v288
      %327 = vmatpush.msra.mxu0 %v285
      %328 = vmatpush.msra.mxu0 %v282
      %329 = vmatpush.msra.mxu0 %v279
      %330 = vmatpush.msra.mxu0 %v276
      %331 = vmatpush.msra.mxu0 %v273
      %332 = vmatpush.msra.mxu0 %v270
      %333 = vmatpush.msra.mxu0 %v267
      %334 = vmatpush.msra.mxu0 %v264
      %335 = vmatpush.msra.mxu0 %v261
      %336 = vmatpush.msra.mxu0 %v258
      %337 = vmatpush.msra.mxu0 %v255
      %338 = vmatpush.msra.mxu0 %v252
      %339 = vmatpush.msra.mxu0 %v249
      %340 = vmatmul.f32.gmra.mxu0 %v247
      %v341 = vpop.f32.mrf.mxu0
      %v342 = vadd.f32 %v299, %v341
      %343 = vdwg.mxu0
      %344 = vmatpush.msra.mxu0 %v295
      %345 = vmatpush.msra.mxu0 %v292
      %346 = vmatpush.msra.mxu0 %v289
      %347 = vmatpush.msra.mxu0 %v286
      %348 = vmatpush.msra.mxu0 %v283
      %349 = vmatpush.msra.mxu0 %v280
      %350 = vmatpush.msra.mxu0 %v277
      %351 = vmatpush.msra.mxu0 %v274
      %352 = vmatpush.msra.mxu0 %v271
      %353 = vmatpush.msra.mxu0 %v268
      %354 = vmatpush.msra.mxu0 %v265
      %355 = vmatpush.msra.mxu0 %v262
      %356 = vmatpush.msra.mxu0 %v259
      %357 = vmatpush.msra.mxu0 %v256
      %358 = vmatpush.msra.mxu0 %v253
      %359 = vmatpush.msra.mxu0 %v250
      %360 = vmatmul.f32.gmra.mxu0 %v247
      %v361 = vpop.f32.mrf.mxu0
      %v362 = vadd.f32 %v300, %v361
      %363 = vdwg.mxu0
      %vm364 = vcmask 130048
      %v366 = vsel %vm364, %v322, 0
      %v369 = vsel %vm364, %v342, 0
      %371 = vmatpush.xpose.msra.mxu0 0.0
      %372 = vmatpush.xpose.msra.mxu0 0.0
      %373 = vmatpush.xpose.msra.mxu0 0.0
      %374 = vmatpush.xpose.msra.mxu0 0.0
      %375 = vmatpush.xpose.msra.mxu0 0.0
      %376 = vmatpush.xpose.msra.mxu0 0.0
      %377 = vmatpush.xpose.msra.mxu0 0.0
      %378 = vmatpush.xpose.msra.mxu0 0.0
      %379 = vmatpush.xpose.msra.mxu0 0.0
      %380 = vmatpush.xpose.msra.mxu0 0.0
      %381 = vmatpush.xpose.msra.mxu0 0.0
      %382 = vmatpush.xpose.msra.mxu0 0.0
      %383 = vmatpush.xpose.msra.mxu0 0.0
      %384 = vmatpush.xpose.msra.mxu0 0.0
      %385 = vmatpush.xpose.msra.mxu0 0.0
      %386 = vmatpush.xpose.msra.mxu0 %v369
      %387 = vmatmul.f32.gmra.mxu0 %v366
      %v388 = vpop.f32.mrf.mxu0
      %v389 = vadd.f32 0.0, %v388
      %390 = vdwg.mxu0
      %v391 = vmul.f32 %v389, 0.25
      %vm392 = vcmask 64512
      %v393 = vsel %vm392, %v391, -inf
      %394 = vmax.xlane.f32.xlu0 %v393
      %v395 = vpop.xlane.xlu0 %394
      %v396 = vsub.f32 %v391, %v395
      %v397 = vmul.f32 %v396, 1.442695
      %v398 = vpow.pop %v397
      %v399 = vsel %vm392, %v398, 0.0
      %400 = vadd.xlane.f32.xlu0 %v399
      %v401 = vpop.xlane.xlu0 %400
      %v402 = vrcp.pop %v401
      %v403 = vmul.f32 %v398, %v402
      %v405 = vsel %vm392, %v403, 0
      %407 = vmatpush.msra.mxu0 0.0
      %408 = vmatpush.msra.mxu0 0.0
      %409 = vmatpush.msra.mxu0 0.0
      %410 = vmatpush.msra.mxu0 0.0
      %411 = vmatpush.msra.mxu0 0.0
      %412 = vmatpush.msra.mxu0 0.0
      %413 = vmatpush.msra.mxu0 0.0
      %414 = vmatpush.msra.mxu0 0.0
      %415 = vmatpush.msra.mxu0 0.0
      %416 = vmatpush.msra.mxu0 0.0
      %417 = vmatpush.msra.mxu0 0.0
      %418 = vmatpush.msra.mxu0 0.0
      %419 = vmatpush.msra.mxu0 0.0
      %420 = vmatpush.msra.mxu0 0.0
      %421 = vmatpush.msra.mxu0 0.0
      %422 = vmatpush.msra.mxu0 %v362
      %423 = vmatmul.f32.gmra.mxu0 %v405
      %v424 = vpop.f32.mrf.mxu0
      %v425 = vadd.f32 0.0, %v424
      %426 = vdwg.mxu0
      %427 = vrot.lane.b32.xlu0 %v322, 112
      %v428 = vpop.permute.xlu0 %427
      %429 = vrot.lane.b32.xlu0 %v342, 112
      %v430 = vpop.permute.xlu0 %429
      %v431 = vsel %vm364, %v428, 0
      %v433 = vsel %vm364, %v430, 0
      %435 = vmatpush.xpose.msra.mxu0 0.0
      %436 = vmatpush.xpose.msra.mxu0 0.0
      %437 = vmatpush.xpose.msra.mxu0 0.0
      %438 = vmatpush.xpose.msra.mxu0 0.0
      %439 = vmatpush.xpose.msra.mxu0 0.0
      %440 = vmatpush.xpose.msra.mxu0 0.0
      %441 = vmatpush.xpose.msra.mxu0 0.0
      %442 = vmatpush.xpose.msra.mxu0 0.0
      %443 = vmatpush.xpose.msra.mxu0 0.0
      %444 = vmatpush.xpose.msra.mxu0 0.0
      %445 = vmatpush.xpose.msra.mxu0 0.0
      %446 = vmatpush.xpose.msra.mxu0 0.0
      %447 = vmatpush.xpose.msra.mxu0 0.0
      %448 = vmatpush.xpose.msra.mxu0 0.0
      %449 = vmatpush.xpose.msra.mxu0 0.0
      %450 = vmatpush.xpose.msra.mxu0 %v433
      %451 = vmatmul.f32.gmra.mxu0 %v431
      %v452 = vpop.f32.mrf.mxu0
      %v453 = vadd.f32 0.0, %v452
      %454 = vdwg.mxu0
      %v455 = vmul.f32 %v453, 0.25
      %v456 = vsel %vm392, %v455, -inf
      %457 = vmax.xlane.f32.xlu0 %v456
      %v458 = vpop.xlane.xlu0 %457
      %v459 = vsub.f32 %v455, %v458
      %v460 = vmul.f32 %v459, 1.442695
      %v461 = vpow.pop %v460
      %v462 = vsel %vm392, %v461, 0.0
      %463 = vadd.xlane.f32.xlu0 %v462
      %v464 = vpop.xlane.xlu0 %463
      %v465 = vrcp.pop %v464
      %v466 = vmul.f32 %v461, %v465
      %468 = vrot.lane.b32.xlu0 %v362, 112
      %v469 = vpop.permute.xlu0 %468
      %v472 = vsel %vm392, %v466, 0
      %474 = vmatpush.msra.mxu0 0.0
      %475 = vmatpush.msra.mxu0 0.0
      %476 = vmatpush.msra.mxu0 0.0
      %477 = vmatpush.msra.mxu0 0.0
      %478 = vmatpush.msra.mxu0 0.0
      %479 = vmatpush.msra.mxu0 0.0
      %480 = vmatpush.msra.mxu0 0.0
      %481 = vmatpush.msra.mxu0 0.0
      %482 = vmatpush.msra.mxu0 0.0
      %483 = vmatpush.msra.mxu0 0.0
      %484 = vmatpush.msra.mxu0 0.0
      %485 = vmatpush.msra.mxu0 0.0
      %486 = vmatpush.msra.mxu0 0.0
      %487 = vmatpush.msra.mxu0 0.0
      %488 = vmatpush.msra.mxu0 0.0
      %489 = vmatpush.msra.mxu0 %v469
      %490 = vmatmul.f32.gmra.mxu0 %v472
      %v491 = vpop.f32.mrf.mxu0
      %v492 = vadd.f32 0.0, %v491
      %493 = vdwg.mxu0
      %494 = vrot.lane.b32.xlu0 %v322, 96
      %v495 = vpop.permute.xlu0 %494
      %496 = vrot.lane.b32.xlu0 %v342, 96
      %v497 = vpop.permute.xlu0 %496
      %v498 = vsel %vm364, %v495, 0
      %v500 = vsel %vm364, %v497, 0
      %502 = vmatpush.xpose.msra.mxu0 0.0
      %503 = vmatpush.xpose.msra.mxu0 0.0
      %504 = vmatpush.xpose.msra.mxu0 0.0
      %505 = vmatpush.xpose.msra.mxu0 0.0
      %506 = vmatpush.xpose.msra.mxu0 0.0
      %507 = vmatpush.xpose.msra.mxu0 0.0
      %508 = vmatpush.xpose.msra.mxu0 0.0
      %509 = vmatpush.xpose.msra.mxu0 0.0
      %510 = vmatpush.xpose.msra.mxu0 0.0
      %511 = vmatpush.xpose.msra.mxu0 0.0
      %512 = vmatpush.xpose.msra.mxu0 0.0
      %513 = vmatpush.xpose.msra.mxu0 0.0
      %514 = vmatpush.xpose.msra.mxu0 0.0
      %515 = vmatpush.xpose.msra.mxu0 0.0
      %516 = vmatpush.xpose.msra.mxu0 0.0
      %517 = vmatpush.xpose.msra.mxu0 %v500
      %518 = vmatmul.f32.gmra.mxu0 %v498
      %v519 = vpop.f32.mrf.mxu0
      %v520 = vadd.f32 0.0, %v519
      %521 = vdwg.mxu0
      %v522 = vmul.f32 %v520, 0.25
      %v523 = vsel %vm392, %v522, -inf
      %524 = vmax.xlane.f32.xlu0 %v523
      %v525 = vpop.xlane.xlu0 %524
      %v526 = vsub.f32 %v522, %v525
      %v527 = vmul.f32 %v526, 1.442695
      %v528 = vpow.pop %v527
      %v529 = vsel %vm392, %v528, 0.0
      %530 = vadd.xlane.f32.xlu0 %v529
      %v531 = vpop.xlane.xlu0 %530
      %v532 = vrcp.pop %v531
      %v533 = vmul.f32 %v528, %v532
      %534 = vrot.lane.b32.xlu0 %v362, 96
      %v535 = vpop.permute.xlu0 %534
      %v538 = vsel %vm392, %v533, 0
      %540 = vmatpush.msra.mxu0 0.0
      %541 = vmatpush.msra.mxu0 0.0
      %542 = vmatpush.msra.mxu0 0.0
      %543 = vmatpush.msra.mxu0 0.0
      %544 = vmatpush.msra.mxu0 0.0
      %545 = vmatpush.msra.mxu0 0.0
      %546 = vmatpush.msra.mxu0 0.0
      %547 = vmatpush.msra.mxu0 0.0
      %548 = vmatpush.msra.mxu0 0.0
      %549 = vmatpush.msra.mxu0 0.0
      %550 = vmatpush.msra.mxu0 0.0
      %551 = vmatpush.msra.mxu0 0.0
      %552 = vmatpush.msra.mxu0 0.0
      %553 = vmatpush.msra.mxu0 0.0
      %554 = vmatpush.msra.mxu0 0.0
      %555 = vmatpush.msra.mxu0 %v535
      %556 = vmatmul.f32.gmra.mxu0 %v538
      %v557 = vpop.f32.mrf.mxu0
      %v558 = vadd.f32 0.0, %v557
      %559 = vdwg.mxu0
      %560 = vrot.lane.b32.xlu0 %v322, 80
      %v561 = vpop.permute.xlu0 %560
      %562 = vrot.lane.b32.xlu0 %v342, 80
      %v563 = vpop.permute.xlu0 %562
      %v564 = vsel %vm364, %v561, 0
      %v566 = vsel %vm364, %v563, 0
      %568 = vmatpush.xpose.msra.mxu0 0.0
      %569 = vmatpush.xpose.msra.mxu0 0.0
      %570 = vmatpush.xpose.msra.mxu0 0.0
      %571 = vmatpush.xpose.msra.mxu0 0.0
      %572 = vmatpush.xpose.msra.mxu0 0.0
      %573 = vmatpush.xpose.msra.mxu0 0.0
      %574 = vmatpush.xpose.msra.mxu0 0.0
      %575 = vmatpush.xpose.msra.mxu0 0.0
      %576 = vmatpush.xpose.msra.mxu0 0.0
      %577 = vmatpush.xpose.msra.mxu0 0.0
      %578 = vmatpush.xpose.msra.mxu0 0.0
      %579 = vmatpush.xpose.msra.mxu0 0.0
      %580 = vmatpush.xpose.msra.mxu0 0.0
      %581 = vmatpush.xpose.msra.mxu0 0.0
      %582 = vmatpush.xpose.msra.mxu0 0.0
      %583 = vmatpush.xpose.msra.mxu0 %v566
      %584 = vmatmul.f32.gmra.mxu0 %v564
      %v585 = vpop.f32.mrf.mxu0
      %v586 = vadd.f32 0.0, %v585
      %587 = vdwg.mxu0
      %v588 = vmul.f32 %v586, 0.25
      %v589 = vsel %vm392, %v588, -inf
      %590 = vmax.xlane.f32.xlu0 %v589
      %v591 = vpop.xlane.xlu0 %590
      %v592 = vsub.f32 %v588, %v591
      %v593 = vmul.f32 %v592, 1.442695
      %v594 = vpow.pop %v593
      %v595 = vsel %vm392, %v594, 0.0
      %596 = vadd.xlane.f32.xlu0 %v595
      %v597 = vpop.xlane.xlu0 %596
      %v598 = vrcp.pop %v597
      %v599 = vmul.f32 %v594, %v598
      %600 = vrot.lane.b32.xlu0 %v362, 80
      %v601 = vpop.permute.xlu0 %600
      %v604 = vsel %vm392, %v599, 0
      %606 = vmatpush.msra.mxu0 0.0
      %607 = vmatpush.msra.mxu0 0.0
      %608 = vmatpush.msra.mxu0 0.0
      %609 = vmatpush.msra.mxu0 0.0
      %610 = vmatpush.msra.mxu0 0.0
      %611 = vmatpush.msra.mxu0 0.0
      %612 = vmatpush.msra.mxu0 0.0
      %613 = vmatpush.msra.mxu0 0.0
      %614 = vmatpush.msra.mxu0 0.0
      %615 = vmatpush.msra.mxu0 0.0
      %616 = vmatpush.msra.mxu0 0.0
      %617 = vmatpush.msra.mxu0 0.0
      %618 = vmatpush.msra.mxu0 0.0
      %619 = vmatpush.msra.mxu0 0.0
      %620 = vmatpush.msra.mxu0 0.0
      %621 = vmatpush.msra.mxu0 %v601
      %622 = vmatmul.f32.gmra.mxu0 %v604
      %v623 = vpop.f32.mrf.mxu0
      %v624 = vadd.f32 0.0, %v623
      %625 = vdwg.mxu0
      %626 = vrot.lane.b32.xlu0 %v322, 64
      %v627 = vpop.permute.xlu0 %626
      %628 = vrot.lane.b32.xlu0 %v342, 64
      %v629 = vpop.permute.xlu0 %628
      %v630 = vsel %vm364, %v627, 0
      %v632 = vsel %vm364, %v629, 0
      %634 = vmatpush.xpose.msra.mxu0 0.0
      %635 = vmatpush.xpose.msra.mxu0 0.0
      %636 = vmatpush.xpose.msra.mxu0 0.0
      %637 = vmatpush.xpose.msra.mxu0 0.0
      %638 = vmatpush.xpose.msra.mxu0 0.0
      %639 = vmatpush.xpose.msra.mxu0 0.0
      %640 = vmatpush.xpose.msra.mxu0 0.0
      %641 = vmatpush.xpose.msra.mxu0 0.0
      %642 = vmatpush.xpose.msra.mxu0 0.0
      %643 = vmatpush.xpose.msra.mxu0 0.0
      %644 = vmatpush.xpose.msra.mxu0 0.0
      %645 = vmatpush.xpose.msra.mxu0 0.0
      %646 = vmatpush.xpose.msra.mxu0 0.0
      %647 = vmatpush.xpose.msra.mxu0 0.0
      %648 = vmatpush.xpose.msra.mxu0 0.0
      %649 = vmatpush.xpose.msra.mxu0 %v632
      %650 = vmatmul.f32.gmra.mxu0 %v630
      %v651 = vpop.f32.mrf.mxu0
      %v652 = vadd.f32 0.0, %v651
      %653 = vdwg.mxu0
      %v654 = vmul.f32 %v652, 0.25
      %v655 = vsel %vm392, %v654, -inf
      %656 = vmax.xlane.f32.xlu0 %v655
      %v657 = vpop.xlane.xlu0 %656
      %v658 = vsub.f32 %v654, %v657
      %v659 = vmul.f32 %v658, 1.442695
      %v660 = vpow.pop %v659
      %v661 = vsel %vm392, %v660, 0.0
      %662 = vadd.xlane.f32.xlu0 %v661
      %v663 = vpop.xlane.xlu0 %662
      %v664 = vrcp.pop %v663
      %v665 = vmul.f32 %v660, %v664
      %666 = vrot.lane.b32.xlu0 %v362, 64
      %v667 = vpop.permute.xlu0 %666
      %v670 = vsel %vm392, %v665, 0
      %672 = vmatpush.msra.mxu0 0.0
      %673 = vmatpush.msra.mxu0 0.0
      %674 = vmatpush.msra.mxu0 0.0
      %675 = vmatpush.msra.mxu0 0.0
      %676 = vmatpush.msra.mxu0 0.0
      %677 = vmatpush.msra.mxu0 0.0
      %678 = vmatpush.msra.mxu0 0.0
      %679 = vmatpush.msra.mxu0 0.0
      %680 = vmatpush.msra.mxu0 0.0
      %681 = vmatpush.msra.mxu0 0.0
      %682 = vmatpush.msra.mxu0 0.0
      %683 = vmatpush.msra.mxu0 0.0
      %684 = vmatpush.msra.mxu0 0.0
      %685 = vmatpush.msra.mxu0 0.0
      %686 = vmatpush.msra.mxu0 0.0
      %687 = vmatpush.msra.mxu0 %v667
      %688 = vmatmul.f32.gmra.mxu0 %v670
      %v689 = vpop.f32.mrf.mxu0
      %v690 = vadd.f32 0.0, %v689
      %691 = vdwg.mxu0
      %692 = vrot.lane.b32.xlu0 %v322, 48
      %v693 = vpop.permute.xlu0 %692
      %694 = vrot.lane.b32.xlu0 %v342, 48
      %v695 = vpop.permute.xlu0 %694
      %v696 = vsel %vm364, %v693, 0
      %v698 = vsel %vm364, %v695, 0
      %700 = vmatpush.xpose.msra.mxu0 0.0
      %701 = vmatpush.xpose.msra.mxu0 0.0
      %702 = vmatpush.xpose.msra.mxu0 0.0
      %703 = vmatpush.xpose.msra.mxu0 0.0
      %704 = vmatpush.xpose.msra.mxu0 0.0
      %705 = vmatpush.xpose.msra.mxu0 0.0
      %706 = vmatpush.xpose.msra.mxu0 0.0
      %707 = vmatpush.xpose.msra.mxu0 0.0
      %708 = vmatpush.xpose.msra.mxu0 0.0
      %709 = vmatpush.xpose.msra.mxu0 0.0
      %710 = vmatpush.xpose.msra.mxu0 0.0
      %711 = vmatpush.xpose.msra.mxu0 0.0
      %712 = vmatpush.xpose.msra.mxu0 0.0
      %713 = vmatpush.xpose.msra.mxu0 0.0
      %714 = vmatpush.xpose.msra.mxu0 0.0
      %715 = vmatpush.xpose.msra.mxu0 %v698
      %716 = vmatmul.f32.gmra.mxu0 %v696
      %v717 = vpop.f32.mrf.mxu0
      %v718 = vadd.f32 0.0, %v717
      %719 = vdwg.mxu0
      %v720 = vmul.f32 %v718, 0.25
      %v721 = vsel %vm392, %v720, -inf
      %722 = vmax.xlane.f32.xlu0 %v721
      %v723 = vpop.xlane.xlu0 %722
      %v724 = vsub.f32 %v720, %v723
      %v725 = vmul.f32 %v724, 1.442695
      %v726 = vpow.pop %v725
      %v727 = vsel %vm392, %v726, 0.0
      %728 = vadd.xlane.f32.xlu0 %v727
      %v729 = vpop.xlane.xlu0 %728
      %v730 = vrcp.pop %v729
      %v731 = vmul.f32 %v726, %v730
      %732 = vrot.lane.b32.xlu0 %v362, 48
      %v733 = vpop.permute.xlu0 %732
      %v736 = vsel %vm392, %v731, 0
      %738 = vmatpush.msra.mxu0 0.0
      %739 = vmatpush.msra.mxu0 0.0
      %740 = vmatpush.msra.mxu0 0.0
      %741 = vmatpush.msra.mxu0 0.0
      %742 = vmatpush.msra.mxu0 0.0
      %743 = vmatpush.msra.mxu0 0.0
      %744 = vmatpush.msra.mxu0 0.0
      %745 = vmatpush.msra.mxu0 0.0
      %746 = vmatpush.msra.mxu0 0.0
      %747 = vmatpush.msra.mxu0 0.0
      %748 = vmatpush.msra.mxu0 0.0
      %749 = vmatpush.msra.mxu0 0.0
      %750 = vmatpush.msra.mxu0 0.0
      %751 = vmatpush.msra.mxu0 0.0
      %752 = vmatpush.msra.mxu0 0.0
      %753 = vmatpush.msra.mxu0 %v733
      %754 = vmatmul.f32.gmra.mxu0 %v736
      %v755 = vpop.f32.mrf.mxu0
      %v756 = vadd.f32 0.0, %v755
      %757 = vdwg.mxu0
      %758 = vrot.lane.b32.xlu0 %v322, 32
      %v759 = vpop.permute.xlu0 %758
      %760 = vrot.lane.b32.xlu0 %v342, 32
      %v761 = vpop.permute.xlu0 %760
      %v762 = vsel %vm364, %v759, 0
      %v764 = vsel %vm364, %v761, 0
      %766 = vmatpush.xpose.msra.mxu0 0.0
      %767 = vmatpush.xpose.msra.mxu0 0.0
      %768 = vmatpush.xpose.msra.mxu0 0.0
      %769 = vmatpush.xpose.msra.mxu0 0.0
      %770 = vmatpush.xpose.msra.mxu0 0.0
      %771 = vmatpush.xpose.msra.mxu0 0.0
      %772 = vmatpush.xpose.msra.mxu0 0.0
      %773 = vmatpush.xpose.msra.mxu0 0.0
      %774 = vmatpush.xpose.msra.mxu0 0.0
      %775 = vmatpush.xpose.msra.mxu0 0.0
      %776 = vmatpush.xpose.msra.mxu0 0.0
      %777 = vmatpush.xpose.msra.mxu0 0.0
      %778 = vmatpush.xpose.msra.mxu0 0.0
      %779 = vmatpush.xpose.msra.mxu0 0.0
      %780 = vmatpush.xpose.msra.mxu0 0.0
      %781 = vmatpush.xpose.msra.mxu0 %v764
      %782 = vmatmul.f32.gmra.mxu0 %v762
      %v783 = vpop.f32.mrf.mxu0
      %v784 = vadd.f32 0.0, %v783
      %785 = vdwg.mxu0
      %v786 = vmul.f32 %v784, 0.25
      %v787 = vsel %vm392, %v786, -inf
      %788 = vmax.xlane.f32.xlu0 %v787
      %v789 = vpop.xlane.xlu0 %788
      %v790 = vsub.f32 %v786, %v789
      %v791 = vmul.f32 %v790, 1.442695
      %v792 = vpow.pop %v791
      %v793 = vsel %vm392, %v792, 0.0
      %794 = vadd.xlane.f32.xlu0 %v793
      %v795 = vpop.xlane.xlu0 %794
      %v796 = vrcp.pop %v795
      %v797 = vmul.f32 %v792, %v796
      %798 = vrot.lane.b32.xlu0 %v362, 32
      %v799 = vpop.permute.xlu0 %798
      %v802 = vsel %vm392, %v797, 0
      %804 = vmatpush.msra.mxu0 0.0
      %805 = vmatpush.msra.mxu0 0.0
      %806 = vmatpush.msra.mxu0 0.0
      %807 = vmatpush.msra.mxu0 0.0
      %808 = vmatpush.msra.mxu0 0.0
      %809 = vmatpush.msra.mxu0 0.0
      %810 = vmatpush.msra.mxu0 0.0
      %811 = vmatpush.msra.mxu0 0.0
      %812 = vmatpush.msra.mxu0 0.0
      %813 = vmatpush.msra.mxu0 0.0
      %814 = vmatpush.msra.mxu0 0.0
      %815 = vmatpush.msra.mxu0 0.0
      %816 = vmatpush.msra.mxu0 0.0
      %817 = vmatpush.msra.mxu0 0.0
      %818 = vmatpush.msra.mxu0 0.0
      %819 = vmatpush.msra.mxu0 %v799
      %820 = vmatmul.f32.gmra.mxu0 %v802
      %v821 = vpop.f32.mrf.mxu0
      %v822 = vadd.f32 0.0, %v821
      %823 = vdwg.mxu0
      %824 = vrot.lane.b32.xlu0 %v322, 16
      %v825 = vpop.permute.xlu0 %824
      %826 = vrot.lane.b32.xlu0 %v342, 16
      %v827 = vpop.permute.xlu0 %826
      %v828 = vsel %vm364, %v825, 0
      %v830 = vsel %vm364, %v827, 0
      %832 = vmatpush.xpose.msra.mxu0 0.0
      %833 = vmatpush.xpose.msra.mxu0 0.0
      %834 = vmatpush.xpose.msra.mxu0 0.0
      %835 = vmatpush.xpose.msra.mxu0 0.0
      %836 = vmatpush.xpose.msra.mxu0 0.0
      %837 = vmatpush.xpose.msra.mxu0 0.0
      %838 = vmatpush.xpose.msra.mxu0 0.0
      %839 = vmatpush.xpose.msra.mxu0 0.0
      %840 = vmatpush.xpose.msra.mxu0 0.0
      %841 = vmatpush.xpose.msra.mxu0 0.0
      %842 = vmatpush.xpose.msra.mxu0 0.0
      %843 = vmatpush.xpose.msra.mxu0 0.0
      %844 = vmatpush.xpose.msra.mxu0 0.0
      %845 = vmatpush.xpose.msra.mxu0 0.0
      %846 = vmatpush.xpose.msra.mxu0 0.0
      %847 = vmatpush.xpose.msra.mxu0 %v830
      %848 = vmatmul.f32.gmra.mxu0 %v828
      %v849 = vpop.f32.mrf.mxu0
      %v850 = vadd.f32 0.0, %v849
      %851 = vdwg.mxu0
      %v852 = vmul.f32 %v850, 0.25
      %v853 = vsel %vm392, %v852, -inf
      %854 = vmax.xlane.f32.xlu0 %v853
      %v855 = vpop.xlane.xlu0 %854
      %v856 = vsub.f32 %v852, %v855
      %v857 = vmul.f32 %v856, 1.442695
      %v858 = vpow.pop %v857
      %v859 = vsel %vm392, %v858, 0.0
      %860 = vadd.xlane.f32.xlu0 %v859
      %v861 = vpop.xlane.xlu0 %860
      %v862 = vrcp.pop %v861
      %v863 = vmul.f32 %v858, %v862
      %864 = vrot.lane.b32.xlu0 %v362, 16
      %v865 = vpop.permute.xlu0 %864
      %v868 = vsel %vm392, %v863, 0
      %870 = vmatpush.msra.mxu0 0.0
      %871 = vmatpush.msra.mxu0 0.0
      %872 = vmatpush.msra.mxu0 0.0
      %873 = vmatpush.msra.mxu0 0.0
      %874 = vmatpush.msra.mxu0 0.0
      %875 = vmatpush.msra.mxu0 0.0
      %876 = vmatpush.msra.mxu0 0.0
      %877 = vmatpush.msra.mxu0 0.0
      %878 = vmatpush.msra.mxu0 0.0
      %879 = vmatpush.msra.mxu0 0.0
      %880 = vmatpush.msra.mxu0 0.0
      %881 = vmatpush.msra.mxu0 0.0
      %882 = vmatpush.msra.mxu0 0.0
      %883 = vmatpush.msra.mxu0 0.0
      %884 = vmatpush.msra.mxu0 0.0
      %885 = vmatpush.msra.mxu0 %v865
      %886 = vmatmul.f32.gmra.mxu0 %v868
      %v887 = vpop.f32.mrf.mxu0
      %v888 = vadd.f32 0.0, %v887
      %889 = vdwg.mxu0
      %891 = vrot.lane.b32.xlu0 %v492, 16
      %v892 = vpop.permute.xlu0 %891
      %895 = vrot.lane.b32.xlu0 %v558, 32
      %v896 = vpop.permute.xlu0 %895
      %899 = vrot.lane.b32.xlu0 %v624, 48
      %v900 = vpop.permute.xlu0 %899
      %903 = vrot.lane.b32.xlu0 %v690, 64
      %v904 = vpop.permute.xlu0 %903
      %907 = vrot.lane.b32.xlu0 %v756, 80
      %v908 = vpop.permute.xlu0 %907
      %911 = vrot.lane.b32.xlu0 %v822, 96
      %v912 = vpop.permute.xlu0 %911
      %915 = vrot.lane.b32.xlu0 %v888, 112
      %v916 = vpop.permute.xlu0 %915
      %v918 = vsel %vm364, %v425, %v892
      %vm919 = vcmask 261120
      %v920 = vsel %vm919, %v918, %v896
      %vm921 = vcmask 392192
      %v922 = vsel %vm921, %v920, %v900
      %vm923 = vcmask 523264
      %v924 = vsel %vm923, %v922, %v904
      %vm925 = vcmask 654336
      %v926 = vsel %vm925, %v924, %v908
      %vm927 = vcmask 785408
      %v928 = vsel %vm927, %v926, %v912
      %vm929 = vcmask 916480
      %v930 = vsel %vm929, %v928, %v916
      %v931 = vld [vmem:[%s3] sm:$0xff]
      %v932 = vld [vmem:[%s3 + $0x8] sm:$0xff]
      %v933 = vld [vmem:[%s3 + $0x10] sm:$0xff]
      %v934 = vld [vmem:[%s3 + $0x18] sm:$0xff]
      %v935 = vld [vmem:[%s3 + $0x20] sm:$0xff]
      %v936 = vld [vmem:[%s3 + $0x28] sm:$0xff]
      %v937 = vld [vmem:[%s3 + $0x30] sm:$0xff]
      %v938 = vld [vmem:[%s3 + $0x38] sm:$0xff]
      %v939 = vld [vmem:[%s3 + $0x40] sm:$0xff]
      %v940 = vld [vmem:[%s3 + $0x48] sm:$0xff]
      %v941 = vld [vmem:[%s3 + $0x50] sm:$0xff]
      %v942 = vld [vmem:[%s3 + $0x58] sm:$0xff]
      %v943 = vld [vmem:[%s3 + $0x60] sm:$0xff]
      %v944 = vld [vmem:[%s3 + $0x68] sm:$0xff]
      %v945 = vld [vmem:[%s3 + $0x70] sm:$0xff]
      %v946 = vld [vmem:[%s3 + $0x78] sm:$0xff]
      %v947 = vld [vmem:[%s4] sm:$0x1]
      %v949 = vperm.slane %v947, 0
      %951 = vmatpush.msra.mxu0 %v946
      %952 = vmatpush.msra.mxu0 %v945
      %953 = vmatpush.msra.mxu0 %v944
      %954 = vmatpush.msra.mxu0 %v943
      %955 = vmatpush.msra.mxu0 %v942
      %956 = vmatpush.msra.mxu0 %v941
      %957 = vmatpush.msra.mxu0 %v940
      %958 = vmatpush.msra.mxu0 %v939
      %959 = vmatpush.msra.mxu0 %v938
      %960 = vmatpush.msra.mxu0 %v937
      %961 = vmatpush.msra.mxu0 %v936
      %962 = vmatpush.msra.mxu0 %v935
      %963 = vmatpush.msra.mxu0 %v934
      %964 = vmatpush.msra.mxu0 %v933
      %965 = vmatpush.msra.mxu0 %v932
      %966 = vmatpush.msra.mxu0 %v931
      %967 = vmatmul.f32.gmra.mxu0 %v930
      %v968 = vpop.f32.mrf.mxu0
      %v969 = vadd.f32 %v949, %v968
      %970 = vdwg.mxu0
      %v971 = vadd.f32 %v220, %v969
      %972 = vst [vmem:[%s219] sm:$0xff] %v971
      %p973 = scmp.lt.s32.totalorder %s16, 1
      %s974 = scalar_select %p973, %s16, 1
      %s975 = smul.addr %s974, 8
      %s976 = scalar_lea.vmem %s5, %s975
      // Predicated region
      $region41: #{sentiment_classifier_pallas.6} parent=39 // pred_check
        %p977 = pneg %p144
      $region42: #{sentiment_classifier_pallas.6} parent=39 // pred_check_branch
        %979 = sbr.rel (%p977) target = $region44
      $region43: #{sentiment_classifier_pallas.6} parent=39 // pred_region
        _
      $region44: #{sentiment_classifier_pallas.6} parent=39 // pred_fallthru
        _
    $region40: #{sentiment_classifier_pallas.6} parent=5 // pred_fallthru
      _
    %p980 = scmp.le.s32.totalorder 2, %s11
    // Predicated region
    $region45: #{sentiment_classifier_pallas.6} parent=5 // pred_check
      %p981 = pneg %p980
    $region46: #{sentiment_classifier_pallas.6} parent=5 // pred_check_branch
      %983 = sbr.rel (%p981) target = $region48
    $region47: #{sentiment_classifier_pallas.6} parent=5 // pred_region
      %s984 = ssub.s32 %s11, 2
      // Predicated region
      $region49: #{sentiment_classifier_pallas.6} parent=47 // pred_check
        %p985 = pneg %p150
      $region50: #{sentiment_classifier_pallas.6} parent=47 // pred_check_branch
        %987 = sbr.rel (%p985) target = $region52
      $region51: #{sentiment_classifier_pallas.6} parent=47 // pred_region
        %p988 = scmp.lt.s32.totalorder %s17, 1
        %s989 = scalar_select %p988, %s17, 1
        %s990 = smul.addr %s989, 8
        %s991 = scalar_lea.vmem %s5, %s990
      $region52: #{sentiment_classifier_pallas.6} parent=47 // pred_fallthru
        _
    $region48: #{sentiment_classifier_pallas.6} parent=5 // pred_fallthru
      _
  $region6: #{sentiment_classifier_pallas.6} parent=0 // loop_footer
    %s15 = sadd.s32 1, %s11
  $region7: #{sentiment_classifier_pallas.6} parent=0 // loop_footer_branch
    %10 = sbr.rel target = $region3
  $region8: #{sentiment_classifier_pallas.6} parent=0 // loop_exit
    _

// kernel: sentiment_classifier_pallas.4
$region0: #{sentiment_classifier_pallas.4}
  #allocation0 [shape = 'u32[]', space=smem, size = 0x4, offset = 0x4, fixed_abs, tag = 'smem constant byte address 0x4 - core index']
  #allocation1 [shape = 'u32[72,128]{1,0:T(1,128)}', space=vmem, size = 0x9000, scoped, tag = 'internal scratch']
  %s0 = inlined_call_operand.vmem [shape: f32[2,8,128], index: 0, kind: input, shape index: {}]
  %s1 = inlined_call_operand.hbm [shape: f32[128,384], index: 1, kind: input, shape index: {}]
  %s2 = inlined_call_operand.hbm [shape: f32[1,384], index: 2, kind: input, shape index: {}]
  %s3 = inlined_call_operand.vmem [shape: f32[128,128], index: 3, kind: input, shape index: {}]
  %s4 = inlined_call_operand.hbm [shape: f32[1,128], index: 4, kind: input, shape index: {}]
  %s5 = inlined_call_operand.vmem [shape: f32[2,8,128], index: 5, kind: output, shape index: {}]
  %s6 = sld [smem:[#allocation0]]
  $region65: #{sentiment_classifier_pallas.4} parent=0
    _
  %s8 = ssub.s32 1, %s6
  %s9 = scalar_select 0, %s8, %s6
  $region1: #{sentiment_classifier_pallas.4} parent=0
    #allocation2 [shape = 'u8[196608]{0}', space=vmem, size = 0x30000, scoped, tag = 'input window, operand 1, single buffered']
    #allocation3 [shape = 's32[2]{0}', space=sflag, size = 0x8, scoped, tag = 'scoped memory for sentiment_classifier_pallas.4']
    #allocation4 [shape = 'u8[1536]{0}', space=vmem, size = 0x800, scoped, tag = 'input window, operand 2, single buffered']
    #allocation5 [shape = 's32[1]{0}', space=sflag, size = 0x4, scoped, tag = 'scoped memory for sentiment_classifier_pallas.4']
    #allocation6 [shape = 'u8[512]{0}', space=vmem, size = 0x400, scoped, tag = 'input window, operand 4, single buffered']
    %10 = vsyncpa [#allocation3], 0
    %11 = vsyncpa [#allocation5], 0
    loop: start=0, step=1, limit=4
    $region2: #{sentiment_classifier_pallas.4} parent=1 // loop_pre_header
      _
    $region3: #{sentiment_classifier_pallas.4} parent=1 // loop_header
      %s13 = sphi 0, %s17
      %p14 = scmp.ge.s32.totalorder %s13, 4
      %s23 = sphi 0, %s25
      %s26 = sphi 0, %s23
      %s27 = sphi 0, %s26
      %s43 = sphi 0, %s27
      %s47 = sphi 0, %s47
      %s49 = sphi 0, %s47
      %s50 = sphi 0, %s49
      %s64 = sphi 0, %s50
      %s68 = sphi 0, %s68
      %s70 = sphi 0, %s68
      %s71 = sphi 0, %s70
      %s85 = sphi 0, %s71
      %s89 = sphi 0, %s89
      %s91 = sphi 0, %s89
      %s92 = sphi 0, %s91
      %s106 = sphi 0, %s92
      %s110 = sphi 0, %s110
      %s112 = sphi 0, %s110
      %s113 = sphi 0, %s112
      %s127 = sphi 0, %s113
      %s133 = sphi 0, %s135
      %s136 = sphi 0, %s133
      %s137 = sphi 0, %s136
      %s153 = sphi 0, %s137
    $region4: #{sentiment_classifier_pallas.4} parent=1 // loop_header_branch
      %16 = sbr.rel (%p14) target = $region8
    $region5: #{sentiment_classifier_pallas.4} parent=1 // loop_body
      %s18 = ssub.s32 %s13, 1
      %s19 = ssub.s32 %s13, 2
      %s20 = sadd.s32 %s13, 1
      %s21 = ssub.s32 %s13, %s20
      %p22 = scmp.eq.s32.totalorder %s21, 0
      %s24 = sadd.s32 %s23, 1
      %s25 = scalar_select %p22, %s23, %s24
      %p28 = pneg %p22
      %p29 = scmp.eq.s32.totalorder %s13, 1
      %p30 = por %p28, %p29
      %p31 = scmp.ne.s32.totalorder %s23, %s26
      %p32 = scmp.eq.s32.totalorder %s13, 0
      %p33 = por %p31, %p32
      %p34 = scmp.ne.s32.totalorder %s23, %s26
      %p35 = scmp.eq.s32.totalorder %s18, 1
      %p36 = por %p34, %p35
      %p37 = scmp.ne.s32.totalorder %s26, %s27
      %p38 = scmp.eq.s32.totalorder %s18, 0
      %p39 = por %p37, %p38
      %p40 = scmp.ne.s32.totalorder %s26, %s27
      %p41 = scmp.eq.s32.totalorder %s19, 1
      %p42 = por %p40, %p41
      %p44 = scmp.ne.s32.totalorder %s27, %s43
      %p45 = scmp.eq.s32.totalorder %s19, 0
      %p46 = por %p44, %p45
      %s48 = sadd.s32 %s47, 1
      %p51 = scmp.eq.s32.totalorder %s13, 1
      %p52 = scmp.ne.s32.totalorder %s47, %s49
      %p53 = scmp.eq.s32.totalorder %s13, 0
      %p54 = por %p52, %p53
      %p55 = scmp.ne.s32.totalorder %s47, %s49
      %p56 = scmp.eq.s32.totalorder %s18, 1
      %p57 = por %p55, %p56
      %p58 = scmp.ne.s32.totalorder %s49, %s50
      %p59 = scmp.eq.s32.totalorder %s18, 0
      %p60 = por %p58, %p59
      %p61 = scmp.ne.s32.totalorder %s49, %s50
      %p62 = scmp.eq.s32.totalorder %s19, 1
      %p63 = por %p61, %p62
      %p65 = scmp.ne.s32.totalorder %s50, %s64
      %p66 = scmp.eq.s32.totalorder %s19, 0
      %p67 = por %p65, %p66
      %s69 = sadd.s32 %s68, 1
      %p72 = scmp.eq.s32.totalorder %s13, 1
      %p73 = scmp.ne.s32.totalorder %s68, %s70
      %p74 = scmp.eq.s32.totalorder %s13, 0
      %p75 = por %p73, %p74
      %p76 = scmp.ne.s32.totalorder %s68, %s70
      %p77 = scmp.eq.s32.totalorder %s18, 1
      %p78 = por %p76, %p77
      %p79 = scmp.ne.s32.totalorder %s70, %s71
      %p80 = scmp.eq.s32.totalorder %s18, 0
      %p81 = por %p79, %p80
      %p82 = scmp.ne.s32.totalorder %s70, %s71
      %p83 = scmp.eq.s32.totalorder %s19, 1
      %p84 = por %p82, %p83
      %p86 = scmp.ne.s32.totalorder %s71, %s85
      %p87 = scmp.eq.s32.totalorder %s19, 0
      %p88 = por %p86, %p87
      %s90 = sadd.s32 %s89, 1
      %p93 = scmp.eq.s32.totalorder %s13, 1
      %p94 = scmp.ne.s32.totalorder %s89, %s91
      %p95 = scmp.eq.s32.totalorder %s13, 0
      %p96 = por %p94, %p95
      %p97 = scmp.ne.s32.totalorder %s89, %s91
      %p98 = scmp.eq.s32.totalorder %s18, 1
      %p99 = por %p97, %p98
      %p100 = scmp.ne.s32.totalorder %s91, %s92
      %p101 = scmp.eq.s32.totalorder %s18, 0
      %p102 = por %p100, %p101
      %p103 = scmp.ne.s32.totalorder %s91, %s92
      %p104 = scmp.eq.s32.totalorder %s19, 1
      %p105 = por %p103, %p104
      %p107 = scmp.ne.s32.totalorder %s92, %s106
      %p108 = scmp.eq.s32.totalorder %s19, 0
      %p109 = por %p107, %p108
      %s111 = sadd.s32 %s110, 1
      %p114 = scmp.eq.s32.totalorder %s13, 1
      %p115 = scmp.ne.s32.totalorder %s110, %s112
      %p116 = scmp.eq.s32.totalorder %s13, 0
      %p117 = por %p115, %p116
      %p118 = scmp.ne.s32.totalorder %s110, %s112
      %p119 = scmp.eq.s32.totalorder %s18, 1
      %p120 = por %p118, %p119
      %p121 = scmp.ne.s32.totalorder %s112, %s113
      %p122 = scmp.eq.s32.totalorder %s18, 0
      %p123 = por %p121, %p122
      %p124 = scmp.ne.s32.totalorder %s112, %s113
      %p125 = scmp.eq.s32.totalorder %s19, 1
      %p126 = por %p124, %p125
      %p128 = scmp.ne.s32.totalorder %s113, %s127
      %p129 = scmp.eq.s32.totalorder %s19, 0
      %p130 = por %p128, %p129
      %s131 = ssub.s32 %s13, %s20
      %p132 = scmp.eq.s32.totalorder %s131, 0
      %s134 = sadd.s32 %s133, 1
      %s135 = scalar_select %p132, %s133, %s134
      %p138 = pneg %p132
      %p139 = scmp.eq.s32.totalorder %s13, 1
      %p140 = por %p138, %p139
      %p141 = scmp.ne.s32.totalorder %s133, %s136
      %p142 = scmp.eq.s32.totalorder %s13, 0
      %p143 = por %p141, %p142
      %p144 = scmp.ne.s32.totalorder %s133, %s136
      %p145 = scmp.eq.s32.totalorder %s18, 1
      %p146 = por %p144, %p145
      %p147 = scmp.ne.s32.totalorder %s136, %s137
      %p148 = scmp.eq.s32.totalorder %s18, 0
      %p149 = por %p147, %p148
      %p150 = scmp.ne.s32.totalorder %s136, %s137
      %p151 = scmp.eq.s32.totalorder %s19, 1
      %p152 = por %p150, %p151
      %p154 = scmp.ne.s32.totalorder %s137, %s153
      %p155 = scmp.eq.s32.totalorder %s19, 0
      %p156 = por %p154, %p155
      %p157 = scmp.le.s32.totalorder 1, %s13
      %p158 = scmp.lt.s32.totalorder %s13, 3
      %p159 = pnand %p157, %p158
      %p160 = pneg %p159
      // Predicated region
      $region9: #{sentiment_classifier_pallas.4} parent=5 // pred_check
        _
      $region10: #{sentiment_classifier_pallas.4} parent=5 // pred_check_branch
        %162 = sbr.rel (%p159) target = $region12
      $region11: #{sentiment_classifier_pallas.4} parent=5 // pred_region
        %s163 = ssub.s32 %s13, 1
        // Predicated region
        $region13: #{sentiment_classifier_pallas.4} parent=11 // pred_check
          %p164 = pneg %p60
        $region14: #{sentiment_classifier_pallas.4} parent=11 // pred_check_branch
          %166 = sbr.rel (%p164) target = $region16
        $region15: #{sentiment_classifier_pallas.4} parent=11 // pred_region
          %168 = vsyncadd [#allocation3], 0
          %s169 = sshll.u32 %s1, 4
          %s170 = int_to_ptr.hbm [resolvable:$true] %s169
          %s171 = sshll.u32 [#allocation2], 4
          %s172 = int_to_ptr.vmem [resolvable:$true] %s171
          %177 = dma.hbm_to_vmem [thread:$0]  %s170, 6144, %s172, [#allocation3], 384, 384, 24
        $region16: #{sentiment_classifier_pallas.4} parent=11 // pred_fallthru
          _
        // Predicated region
        $region17: #{sentiment_classifier_pallas.4} parent=11 // pred_check
          %p178 = pneg %p81
        $region18: #{sentiment_classifier_pallas.4} parent=11 // pred_check_branch
          %180 = sbr.rel (%p178) target = $region20
        $region19: #{sentiment_classifier_pallas.4} parent=11 // pred_region
          %182 = vsyncadd [#allocation5], 0
          %s184 = sshll.u32 %s2, 4
          %s185 = int_to_ptr.hbm [resolvable:$true] %s184
          %s186 = sshll.u32 [#allocation4], 4
          %s187 = int_to_ptr.vmem [resolvable:$true] %s186
          %189 = dma.hbm_to_vmem [thread:$0]  %s185, 48, %s187, [#allocation5]
        $region20: #{sentiment_classifier_pallas.4} parent=11 // pred_fallthru
          _
        // Predicated region
        $region21: #{sentiment_classifier_pallas.4} parent=11 // pred_check
          %p190 = pneg %p102
        $region22: #{sentiment_classifier_pallas.4} parent=11 // pred_check_branch
          %192 = sbr.rel (%p190) target = $region24
        $region23: #{sentiment_classifier_pallas.4} parent=11 // pred_region
          _
        $region24: #{sentiment_classifier_pallas.4} parent=11 // pred_fallthru
          _
        // Predicated region
        $region25: #{sentiment_classifier_pallas.4} parent=11 // pred_check
          %p193 = pneg %p123
        $region26: #{sentiment_classifier_pallas.4} parent=11 // pred_check_branch
          %195 = sbr.rel (%p193) target = $region28
        $region27: #{sentiment_classifier_pallas.4} parent=11 // pred_region
          %197 = vsyncadd [#allocation5], 0
          %s199 = sshll.u32 %s4, 4
          %s200 = int_to_ptr.hbm [resolvable:$true] %s199
          %s201 = sshll.u32 [#allocation6], 4
          %s202 = int_to_ptr.vmem [resolvable:$true] %s201
          %204 = dma.hbm_to_vmem [thread:$0]  %s200, 16, %s202, [#allocation5]
        $region28: #{sentiment_classifier_pallas.4} parent=11 // pred_fallthru
          _
      $region12: #{sentiment_classifier_pallas.4} parent=5 // pred_fallthru
        _
      %p205 = scmp.lt.s32.totalorder %s13, 2
      // Predicated region
      $region29: #{sentiment_classifier_pallas.4} parent=5 // pred_check
        %p206 = pneg %p205
      $region30: #{sentiment_classifier_pallas.4} parent=5 // pred_check_branch
        %208 = sbr.rel (%p206) target = $region32
      $region31: #{sentiment_classifier_pallas.4} parent=5 // pred_region
        // Predicated region
        $region33: #{sentiment_classifier_pallas.4} parent=31 // pred_check
          %p209 = pneg %p33
        $region34: #{sentiment_classifier_pallas.4} parent=31 // pred_check_branch
          %211 = sbr.rel (%p209) target = $region36
        $region35: #{sentiment_classifier_pallas.4} parent=31 // pred_region
          %p212 = scmp.lt.s32.totalorder %s13, 1
          %s213 = scalar_select %p212, %s13, 1
          %s214 = smul.addr %s213, 8
          %s215 = scalar_lea.vmem %s0, %s214
        $region36: #{sentiment_classifier_pallas.4} parent=31 // pred_fallthru
          _
      $region32: #{sentiment_classifier_pallas.4} parent=5 // pred_fallthru
        _
      %p216 = scmp.le.s32.totalorder 1, %s13
      %p217 = scmp.lt.s32.totalorder %s13, 3
      %p218 = pnand %p216, %p217
      %p219 = pneg %p218
      // Predicated region
      $region37: #{sentiment_classifier_pallas.4} parent=5 // pred_check
        _
      $region38: #{sentiment_classifier_pallas.4} parent=5 // pred_check_branch
        %221 = sbr.rel (%p218) target = $region40
      $region39: #{sentiment_classifier_pallas.4} parent=5 // pred_region
        %s222 = ssub.s32 %s13, 1
        // Predicated region
        $region41: #{sentiment_classifier_pallas.4} parent=39 // pred_check
          %p223 = pneg %p60
        $region42: #{sentiment_classifier_pallas.4} parent=39 // pred_check_branch
          %225 = sbr.rel (%p223) target = $region44
        $region43: #{sentiment_classifier_pallas.4} parent=39 // pred_region
          %227 = dma.done [#allocation3], 6144
        $region44: #{sentiment_classifier_pallas.4} parent=39 // pred_fallthru
          _
        // Predicated region
        $region45: #{sentiment_classifier_pallas.4} parent=39 // pred_check
          %p228 = pneg %p81
        $region46: #{sentiment_classifier_pallas.4} parent=39 // pred_check_branch
          %230 = sbr.rel (%p228) target = $region48
        $region47: #{sentiment_classifier_pallas.4} parent=39 // pred_region
          %232 = dma.done [#allocation5], 48
        $region48: #{sentiment_classifier_pallas.4} parent=39 // pred_fallthru
          _
        // Predicated region
        $region49: #{sentiment_classifier_pallas.4} parent=39 // pred_check
          %p233 = pneg %p123
        $region50: #{sentiment_classifier_pallas.4} parent=39 // pred_check_branch
          %235 = sbr.rel (%p233) target = $region52
        $region51: #{sentiment_classifier_pallas.4} parent=39 // pred_region
          %237 = dma.done [#allocation5], 16
        $region52: #{sentiment_classifier_pallas.4} parent=39 // pred_fallthru
          _
        %p238 = scmp.lt.s32.totalorder %s18, 1
        %s239 = scalar_select %p238, %s18, 1
        %s240 = smul.addr %s239, 8
        %s241 = scalar_lea.vmem %s0, %s240
        %p242 = pneg %p39
        %p243 = pneg %p36
        %p244 = pneg %p60
        %p245 = pneg %p57
        %p246 = pneg %p81
        %p247 = pneg %p78
        %p248 = pneg %p102
        %p249 = pneg %p99
        %p250 = pneg %p123
        %p251 = pneg %p120
        %p252 = pneg %p149
        %p253 = pneg %p146
        %p254 = scmp.lt.s32.totalorder %s18, 1
        %s255 = scalar_select %p254, %s18, 1
        %s256 = smul.addr %s255, 8
        %s257 = scalar_lea.vmem %s5, %s256
        %p258 = scmp.lt.s32.totalorder %s18, 1
        %s259 = scalar_select %p258, %s18, 1
        %s260 = smul.addr %s259, 8
        %s261 = scalar_lea.vmem %s0, %s260
        %p262 = scmp.lt.s32.totalorder %s18, 1
        %s263 = scalar_select %p262, %s18, 1
        %s264 = smul.addr %s263, 8
        %s265 = scalar_lea.vmem %s5, %s264
        %v266 = vld [vmem:[%s261] sm:$0xff]
        %267 = vadd.xlane.f32.xlu0 %v266
        %v268 = vpop.xlane.xlu0 %267
        %v269 = vrcp.pop 128.0
        %v270 = vmul.f32 128.0, %v269
        %v271 = vsub.f32 1.0, %v270
        %v272 = vmul.f32 %v269, %v271
        %v273 = vadd.f32 %v269, %v272
        %vm274 = vweird.f32 %v269
        %v275 = vsel %vm274, %v269, %v273
        %v276 = vmul.f32 %v268, %v275
        %v277 = vsub.f32 %v266, %v276
        %v278 = vmul.f32 %v277, %v277
        %279 = vadd.xlane.f32.xlu0 %v278
        %v280 = vpop.xlane.xlu0 %279
        %v281 = vmul.f32 %v280, %v275
        %v282 = vadd.f32 %v281, 1e-05
        %v283 = vrsqrt.pop %v282
        %v284 = vmul.f32 %v283, %v282
        %v285 = vmul.f32 %v284, %v283
        %v286 = vmul.f32 0.5, %v285
        %v287 = vsub.f32 1.5, %v286
        %v288 = vmul.f32 %v283, %v287
        %vm289 = vweird.f32 %v282
        %vm290 = vweird.f32 %v283
        %vm291 = vmor %vm289, %vm290
        %v292 = vsel %vm291, %v283, %v288
        %v293 = vmul.f32 %v277, %v292
        %v294 = vld [vmem:[#allocation2] sm:$0xff]
        %v295 = vld [vmem:[#allocation2 + $0x8] sm:$0xff]
        %v296 = vld [vmem:[#allocation2 + $0x10] sm:$0xff]
        %v297 = vld [vmem:[#allocation2 + $0x18] sm:$0xff]
        %v298 = vld [vmem:[#allocation2 + $0x20] sm:$0xff]
        %v299 = vld [vmem:[#allocation2 + $0x28] sm:$0xff]
        %v300 = vld [vmem:[#allocation2 + $0x30] sm:$0xff]
        %v301 = vld [vmem:[#allocation2 + $0x38] sm:$0xff]
        %v302 = vld [vmem:[#allocation2 + $0x40] sm:$0xff]
        %v303 = vld [vmem:[#allocation2 + $0x48] sm:$0xff]
        %v304 = vld [vmem:[#allocation2 + $0x50] sm:$0xff]
        %v305 = vld [vmem:[#allocation2 + $0x58] sm:$0xff]
        %v306 = vld [vmem:[#allocation2 + $0x60] sm:$0xff]
        %v307 = vld [vmem:[#allocation2 + $0x68] sm:$0xff]
        %v308 = vld [vmem:[#allocation2 + $0x70] sm:$0xff]
        %v309 = vld [vmem:[#allocation2 + $0x78] sm:$0xff]
        %v310 = vld [vmem:[#allocation2 + $0x80] sm:$0xff]
        %v311 = vld [vmem:[#allocation2 + $0x88] sm:$0xff]
        %v312 = vld [vmem:[#allocation2 + $0x90] sm:$0xff]
        %v313 = vld [vmem:[#allocation2 + $0x98] sm:$0xff]
        %v314 = vld [vmem:[#allocation2 + $0xa0] sm:$0xff]
        %v315 = vld [vmem:[#allocation2 + $0xa8] sm:$0xff]
        %v316 = vld [vmem:[#allocation2 + $0xb0] sm:$0xff]
        %v317 = vld [vmem:[#allocation2 + $0xb8] sm:$0xff]
        %v318 = vld [vmem:[#allocation2 + $0xc0] sm:$0xff]
        %v319 = vld [vmem:[#allocation2 + $0xc8] sm:$0xff]
        %v320 = vld [vmem:[#allocation2 + $0xd0] sm:$0xff]
        %v321 = vld [vmem:[#allocation2 + $0xd8] sm:$0xff]
        %v322 = vld [vmem:[#allocation2 + $0xe0] sm:$0xff]
        %v323 = vld [vmem:[#allocation2 + $0xe8] sm:$0xff]
        %v324 = vld [vmem:[#allocation2 + $0xf0] sm:$0xff]
        %v325 = vld [vmem:[#allocation2 + $0xf8] sm:$0xff]
        %v326 = vld [vmem:[#allocation2 + $0x100] sm:$0xff]
        %v327 = vld [vmem:[#allocation2 + $0x108] sm:$0xff]
        %v328 = vld [vmem:[#allocation2 + $0x110] sm:$0xff]
        %v329 = vld [vmem:[#allocation2 + $0x118] sm:$0xff]
        %v330 = vld [vmem:[#allocation2 + $0x120] sm:$0xff]
        %v331 = vld [vmem:[#allocation2 + $0x128] sm:$0xff]
        %v332 = vld [vmem:[#allocation2 + $0x130] sm:$0xff]
        %v333 = vld [vmem:[#allocation2 + $0x138] sm:$0xff]
        %v334 = vld [vmem:[#allocation2 + $0x140] sm:$0xff]
        %v335 = vld [vmem:[#allocation2 + $0x148] sm:$0xff]
        %v336 = vld [vmem:[#allocation2 + $0x150] sm:$0xff]
        %v337 = vld [vmem:[#allocation2 + $0x158] sm:$0xff]
        %v338 = vld [vmem:[#allocation2 + $0x160] sm:$0xff]
        %v339 = vld [vmem:[#allocation2 + $0x168] sm:$0xff]
        %v340 = vld [vmem:[#allocation2 + $0x170] sm:$0xff]
        %v341 = vld [vmem:[#allocation2 + $0x178] sm:$0xff]
        %v342 = vld [vmem:[#allocation4] sm:$0x7]
        %v344 = vperm.slane %v342, 0
        %v345 = vperm.slane %v342, 1
        %v346 = vperm.slane %v342, 2
        %350 = vmatpush.msra.mxu0 %v339
        %351 = vmatpush.msra.mxu0 %v336
        %352 = vmatpush.msra.mxu0 %v333
        %353 = vmatpush.msra.mxu0 %v330
        %354 = vmatpush.msra.mxu0 %v327
        %355 = vmatpush.msra.mxu0 %v324
        %356 = vmatpush.msra.mxu0 %v321
        %357 = vmatpush.msra.mxu0 %v318
        %358 = vmatpush.msra.mxu0 %v315
        %359 = vmatpush.msra.mxu0 %v312
        %360 = vmatpush.msra.mxu0 %v309
        %361 = vmatpush.msra.mxu0 %v306
        %362 = vmatpush.msra.mxu0 %v303
        %363 = vmatpush.msra.mxu0 %v300
        %364 = vmatpush.msra.mxu0 %v297
        %365 = vmatpush.msra.mxu0 %v294
        %366 = vmatmul.f32.gmra.mxu0 %v293
        %v367 = vpop.f32.mrf.mxu0
        %v368 = vadd.f32 %v344, %v367
        %369 = vdwg.mxu0
        %370 = vmatpush.msra.mxu0 %v340
        %371 = vmatpush.msra.mxu0 %v337
        %372 = vmatpush.msra.mxu0 %v334
        %373 = vmatpush.msra.mxu0 %v331
        %374 = vmatpush.msra.mxu0 %v328
        %375 = vmatpush.msra.mxu0 %v325
        %376 = vmatpush.msra.mxu0 %v322
        %377 = vmatpush.msra.mxu0 %v319
        %378 = vmatpush.msra.mxu0 %v316
        %379 = vmatpush.msra.mxu0 %v313
        %380 = vmatpush.msra.mxu0 %v310
        %381 = vmatpush.msra.mxu0 %v307
        %382 = vmatpush.msra.mxu0 %v304
        %383 = vmatpush.msra.mxu0 %v301
        %384 = vmatpush.msra.mxu0 %v298
        %385 = vmatpush.msra.mxu0 %v295
        %386 = vmatmul.f32.gmra.mxu0 %v293
        %v387 = vpop.f32.mrf.mxu0
        %v388 = vadd.f32 %v345, %v387
        %389 = vdwg.mxu0
        %390 = vmatpush.msra.mxu0 %v341
        %391 = vmatpush.msra.mxu0 %v338
        %392 = vmatpush.msra.mxu0 %v335
        %393 = vmatpush.msra.mxu0 %v332
        %394 = vmatpush.msra.mxu0 %v329
        %395 = vmatpush.msra.mxu0 %v326
        %396 = vmatpush.msra.mxu0 %v323
        %397 = vmatpush.msra.mxu0 %v320
        %398 = vmatpush.msra.mxu0 %v317
        %399 = vmatpush.msra.mxu0 %v314
        %400 = vmatpush.msra.mxu0 %v311
        %401 = vmatpush.msra.mxu0 %v308
        %402 = vmatpush.msra.mxu0 %v305
        %403 = vmatpush.msra.mxu0 %v302
        %404 = vmatpush.msra.mxu0 %v299
        %405 = vmatpush.msra.mxu0 %v296
        %406 = vmatmul.f32.gmra.mxu0 %v293
        %v407 = vpop.f32.mrf.mxu0
        %v408 = vadd.f32 %v346, %v407
        %409 = vdwg.mxu0
        %vm410 = vcmask 130048
        %v412 = vsel %vm410, %v368, 0
        %v415 = vsel %vm410, %v388, 0
        %417 = vmatpush.xpose.msra.mxu0 0.0
        %418 = vmatpush.xpose.msra.mxu0 0.0
        %419 = vmatpush.xpose.msra.mxu0 0.0
        %420 = vmatpush.xpose.msra.mxu0 0.0
        %421 = vmatpush.xpose.msra.mxu0 0.0
        %422 = vmatpush.xpose.msra.mxu0 0.0
        %423 = vmatpush.xpose.msra.mxu0 0.0
        %424 = vmatpush.xpose.msra.mxu0 0.0
        %425 = vmatpush.xpose.msra.mxu0 0.0
        %426 = vmatpush.xpose.msra.mxu0 0.0
        %427 = vmatpush.xpose.msra.mxu0 0.0
        %428 = vmatpush.xpose.msra.mxu0 0.0
        %429 = vmatpush.xpose.msra.mxu0 0.0
        %430 = vmatpush.xpose.msra.mxu0 0.0
        %431 = vmatpush.xpose.msra.mxu0 0.0
        %432 = vmatpush.xpose.msra.mxu0 %v415
        %433 = vmatmul.f32.gmra.mxu0 %v412
        %v434 = vpop.f32.mrf.mxu0
        %v435 = vadd.f32 0.0, %v434
        %436 = vdwg.mxu0
        %v437 = vmul.f32 %v435, 0.25
        %vm438 = vcmask 64512
        %v439 = vsel %vm438, %v437, -inf
        %440 = vmax.xlane.f32.xlu0 %v439
        %v441 = vpop.xlane.xlu0 %440
        %v442 = vsub.f32 %v437, %v441
        %v443 = vmul.f32 %v442, 1.442695
        %v444 = vpow.pop %v443
        %v445 = vsel %vm438, %v444, 0.0
        %446 = vadd.xlane.f32.xlu0 %v445
        %v447 = vpop.xlane.xlu0 %446
        %v448 = vrcp.pop %v447
        %v449 = vmul.f32 %v444, %v448
        %v451 = vsel %vm438, %v449, 0
        %453 = vmatpush.msra.mxu0 0.0
        %454 = vmatpush.msra.mxu0 0.0
        %455 = vmatpush.msra.mxu0 0.0
        %456 = vmatpush.msra.mxu0 0.0
        %457 = vmatpush.msra.mxu0 0.0
        %458 = vmatpush.msra.mxu0 0.0
        %459 = vmatpush.msra.mxu0 0.0
        %460 = vmatpush.msra.mxu0 0.0
        %461 = vmatpush.msra.mxu0 0.0
        %462 = vmatpush.msra.mxu0 0.0
        %463 = vmatpush.msra.mxu0 0.0
        %464 = vmatpush.msra.mxu0 0.0
        %465 = vmatpush.msra.mxu0 0.0
        %466 = vmatpush.msra.mxu0 0.0
        %467 = vmatpush.msra.mxu0 0.0
        %468 = vmatpush.msra.mxu0 %v408
        %469 = vmatmul.f32.gmra.mxu0 %v451
        %v470 = vpop.f32.mrf.mxu0
        %v471 = vadd.f32 0.0, %v470
        %472 = vdwg.mxu0
        %473 = vrot.lane.b32.xlu0 %v368, 112
        %v474 = vpop.permute.xlu0 %473
        %475 = vrot.lane.b32.xlu0 %v388, 112
        %v476 = vpop.permute.xlu0 %475
        %v477 = vsel %vm410, %v474, 0
        %v479 = vsel %vm410, %v476, 0
        %481 = vmatpush.xpose.msra.mxu0 0.0
        %482 = vmatpush.xpose.msra.mxu0 0.0
        %483 = vmatpush.xpose.msra.mxu0 0.0
        %484 = vmatpush.xpose.msra.mxu0 0.0
        %485 = vmatpush.xpose.msra.mxu0 0.0
        %486 = vmatpush.xpose.msra.mxu0 0.0
        %487 = vmatpush.xpose.msra.mxu0 0.0
        %488 = vmatpush.xpose.msra.mxu0 0.0
        %489 = vmatpush.xpose.msra.mxu0 0.0
        %490 = vmatpush.xpose.msra.mxu0 0.0
        %491 = vmatpush.xpose.msra.mxu0 0.0
        %492 = vmatpush.xpose.msra.mxu0 0.0
        %493 = vmatpush.xpose.msra.mxu0 0.0
        %494 = vmatpush.xpose.msra.mxu0 0.0
        %495 = vmatpush.xpose.msra.mxu0 0.0
        %496 = vmatpush.xpose.msra.mxu0 %v479
        %497 = vmatmul.f32.gmra.mxu0 %v477
        %v498 = vpop.f32.mrf.mxu0
        %v499 = vadd.f32 0.0, %v498
        %500 = vdwg.mxu0
        %v501 = vmul.f32 %v499, 0.25
        %v502 = vsel %vm438, %v501, -inf
        %503 = vmax.xlane.f32.xlu0 %v502
        %v504 = vpop.xlane.xlu0 %503
        %v505 = vsub.f32 %v501, %v504
        %v506 = vmul.f32 %v505, 1.442695
        %v507 = vpow.pop %v506
        %v508 = vsel %vm438, %v507, 0.0
        %509 = vadd.xlane.f32.xlu0 %v508
        %v510 = vpop.xlane.xlu0 %509
        %v511 = vrcp.pop %v510
        %v512 = vmul.f32 %v507, %v511
        %514 = vrot.lane.b32.xlu0 %v408, 112
        %v515 = vpop.permute.xlu0 %514
        %v518 = vsel %vm438, %v512, 0
        %520 = vmatpush.msra.mxu0 0.0
        %521 = vmatpush.msra.mxu0 0.0
        %522 = vmatpush.msra.mxu0 0.0
        %523 = vmatpush.msra.mxu0 0.0
        %524 = vmatpush.msra.mxu0 0.0
        %525 = vmatpush.msra.mxu0 0.0
        %526 = vmatpush.msra.mxu0 0.0
        %527 = vmatpush.msra.mxu0 0.0
        %528 = vmatpush.msra.mxu0 0.0
        %529 = vmatpush.msra.mxu0 0.0
        %530 = vmatpush.msra.mxu0 0.0
        %531 = vmatpush.msra.mxu0 0.0
        %532 = vmatpush.msra.mxu0 0.0
        %533 = vmatpush.msra.mxu0 0.0
        %534 = vmatpush.msra.mxu0 0.0
        %535 = vmatpush.msra.mxu0 %v515
        %536 = vmatmul.f32.gmra.mxu0 %v518
        %v537 = vpop.f32.mrf.mxu0
        %v538 = vadd.f32 0.0, %v537
        %539 = vdwg.mxu0
        %540 = vrot.lane.b32.xlu0 %v368, 96
        %v541 = vpop.permute.xlu0 %540
        %542 = vrot.lane.b32.xlu0 %v388, 96
        %v543 = vpop.permute.xlu0 %542
        %v544 = vsel %vm410, %v541, 0
        %v546 = vsel %vm410, %v543, 0
        %548 = vmatpush.xpose.msra.mxu0 0.0
        %549 = vmatpush.xpose.msra.mxu0 0.0
        %550 = vmatpush.xpose.msra.mxu0 0.0
        %551 = vmatpush.xpose.msra.mxu0 0.0
        %552 = vmatpush.xpose.msra.mxu0 0.0
        %553 = vmatpush.xpose.msra.mxu0 0.0
        %554 = vmatpush.xpose.msra.mxu0 0.0
        %555 = vmatpush.xpose.msra.mxu0 0.0
        %556 = vmatpush.xpose.msra.mxu0 0.0
        %557 = vmatpush.xpose.msra.mxu0 0.0
        %558 = vmatpush.xpose.msra.mxu0 0.0
        %559 = vmatpush.xpose.msra.mxu0 0.0
        %560 = vmatpush.xpose.msra.mxu0 0.0
        %561 = vmatpush.xpose.msra.mxu0 0.0
        %562 = vmatpush.xpose.msra.mxu0 0.0
        %563 = vmatpush.xpose.msra.mxu0 %v546
        %564 = vmatmul.f32.gmra.mxu0 %v544
        %v565 = vpop.f32.mrf.mxu0
        %v566 = vadd.f32 0.0, %v565
        %567 = vdwg.mxu0
        %v568 = vmul.f32 %v566, 0.25
        %v569 = vsel %vm438, %v568, -inf
        %570 = vmax.xlane.f32.xlu0 %v569
        %v571 = vpop.xlane.xlu0 %570
        %v572 = vsub.f32 %v568, %v571
        %v573 = vmul.f32 %v572, 1.442695
        %v574 = vpow.pop %v573
        %v575 = vsel %vm438, %v574, 0.0
        %576 = vadd.xlane.f32.xlu0 %v575
        %v577 = vpop.xlane.xlu0 %576
        %v578 = vrcp.pop %v577
        %v579 = vmul.f32 %v574, %v578
        %580 = vrot.lane.b32.xlu0 %v408, 96
        %v581 = vpop.permute.xlu0 %580
        %v584 = vsel %vm438, %v579, 0
        %586 = vmatpush.msra.mxu0 0.0
        %587 = vmatpush.msra.mxu0 0.0
        %588 = vmatpush.msra.mxu0 0.0
        %589 = vmatpush.msra.mxu0 0.0
        %590 = vmatpush.msra.mxu0 0.0
        %591 = vmatpush.msra.mxu0 0.0
        %592 = vmatpush.msra.mxu0 0.0
        %593 = vmatpush.msra.mxu0 0.0
        %594 = vmatpush.msra.mxu0 0.0
        %595 = vmatpush.msra.mxu0 0.0
        %596 = vmatpush.msra.mxu0 0.0
        %597 = vmatpush.msra.mxu0 0.0
        %598 = vmatpush.msra.mxu0 0.0
        %599 = vmatpush.msra.mxu0 0.0
        %600 = vmatpush.msra.mxu0 0.0
        %601 = vmatpush.msra.mxu0 %v581
        %602 = vmatmul.f32.gmra.mxu0 %v584
        %v603 = vpop.f32.mrf.mxu0
        %v604 = vadd.f32 0.0, %v603
        %605 = vdwg.mxu0
        %606 = vrot.lane.b32.xlu0 %v368, 80
        %v607 = vpop.permute.xlu0 %606
        %608 = vrot.lane.b32.xlu0 %v388, 80
        %v609 = vpop.permute.xlu0 %608
        %v610 = vsel %vm410, %v607, 0
        %v612 = vsel %vm410, %v609, 0
        %614 = vmatpush.xpose.msra.mxu0 0.0
        %615 = vmatpush.xpose.msra.mxu0 0.0
        %616 = vmatpush.xpose.msra.mxu0 0.0
        %617 = vmatpush.xpose.msra.mxu0 0.0
        %618 = vmatpush.xpose.msra.mxu0 0.0
        %619 = vmatpush.xpose.msra.mxu0 0.0
        %620 = vmatpush.xpose.msra.mxu0 0.0
        %621 = vmatpush.xpose.msra.mxu0 0.0
        %622 = vmatpush.xpose.msra.mxu0 0.0
        %623 = vmatpush.xpose.msra.mxu0 0.0
        %624 = vmatpush.xpose.msra.mxu0 0.0
        %625 = vmatpush.xpose.msra.mxu0 0.0
        %626 = vmatpush.xpose.msra.mxu0 0.0
        %627 = vmatpush.xpose.msra.mxu0 0.0
        %628 = vmatpush.xpose.msra.mxu0 0.0
        %629 = vmatpush.xpose.msra.mxu0 %v612
        %630 = vmatmul.f32.gmra.mxu0 %v610
        %v631 = vpop.f32.mrf.mxu0
        %v632 = vadd.f32 0.0, %v631
        %633 = vdwg.mxu0
        %v634 = vmul.f32 %v632, 0.25
        %v635 = vsel %vm438, %v634, -inf
        %636 = vmax.xlane.f32.xlu0 %v635
        %v637 = vpop.xlane.xlu0 %636
        %v638 = vsub.f32 %v634, %v637
        %v639 = vmul.f32 %v638, 1.442695
        %v640 = vpow.pop %v639
        %v641 = vsel %vm438, %v640, 0.0
        %642 = vadd.xlane.f32.xlu0 %v641
        %v643 = vpop.xlane.xlu0 %642
        %v644 = vrcp.pop %v643
        %v645 = vmul.f32 %v640, %v644
        %646 = vrot.lane.b32.xlu0 %v408, 80
        %v647 = vpop.permute.xlu0 %646
        %v650 = vsel %vm438, %v645, 0
        %652 = vmatpush.msra.mxu0 0.0
        %653 = vmatpush.msra.mxu0 0.0
        %654 = vmatpush.msra.mxu0 0.0
        %655 = vmatpush.msra.mxu0 0.0
        %656 = vmatpush.msra.mxu0 0.0
        %657 = vmatpush.msra.mxu0 0.0
        %658 = vmatpush.msra.mxu0 0.0
        %659 = vmatpush.msra.mxu0 0.0
        %660 = vmatpush.msra.mxu0 0.0
        %661 = vmatpush.msra.mxu0 0.0
        %662 = vmatpush.msra.mxu0 0.0
        %663 = vmatpush.msra.mxu0 0.0
        %664 = vmatpush.msra.mxu0 0.0
        %665 = vmatpush.msra.mxu0 0.0
        %666 = vmatpush.msra.mxu0 0.0
        %667 = vmatpush.msra.mxu0 %v647
        %668 = vmatmul.f32.gmra.mxu0 %v650
        %v669 = vpop.f32.mrf.mxu0
        %v670 = vadd.f32 0.0, %v669
        %671 = vdwg.mxu0
        %672 = vrot.lane.b32.xlu0 %v368, 64
        %v673 = vpop.permute.xlu0 %672
        %674 = vrot.lane.b32.xlu0 %v388, 64
        %v675 = vpop.permute.xlu0 %674
        %v676 = vsel %vm410, %v673, 0
        %v678 = vsel %vm410, %v675, 0
        %680 = vmatpush.xpose.msra.mxu0 0.0
        %681 = vmatpush.xpose.msra.mxu0 0.0
        %682 = vmatpush.xpose.msra.mxu0 0.0
        %683 = vmatpush.xpose.msra.mxu0 0.0
        %684 = vmatpush.xpose.msra.mxu0 0.0
        %685 = vmatpush.xpose.msra.mxu0 0.0
        %686 = vmatpush.xpose.msra.mxu0 0.0
        %687 = vmatpush.xpose.msra.mxu0 0.0
        %688 = vmatpush.xpose.msra.mxu0 0.0
        %689 = vmatpush.xpose.msra.mxu0 0.0
        %690 = vmatpush.xpose.msra.mxu0 0.0
        %691 = vmatpush.xpose.msra.mxu0 0.0
        %692 = vmatpush.xpose.msra.mxu0 0.0
        %693 = vmatpush.xpose.msra.mxu0 0.0
        %694 = vmatpush.xpose.msra.mxu0 0.0
        %695 = vmatpush.xpose.msra.mxu0 %v678
        %696 = vmatmul.f32.gmra.mxu0 %v676
        %v697 = vpop.f32.mrf.mxu0
        %v698 = vadd.f32 0.0, %v697
        %699 = vdwg.mxu0
        %v700 = vmul.f32 %v698, 0.25
        %v701 = vsel %vm438, %v700, -inf
        %702 = vmax.xlane.f32.xlu0 %v701
        %v703 = vpop.xlane.xlu0 %702
        %v704 = vsub.f32 %v700, %v703
        %v705 = vmul.f32 %v704, 1.442695
        %v706 = vpow.pop %v705
        %v707 = vsel %vm438, %v706, 0.0
        %708 = vadd.xlane.f32.xlu0 %v707
        %v709 = vpop.xlane.xlu0 %708
        %v710 = vrcp.pop %v709
        %v711 = vmul.f32 %v706, %v710
        %712 = vrot.lane.b32.xlu0 %v408, 64
        %v713 = vpop.permute.xlu0 %712
        %v716 = vsel %vm438, %v711, 0
        %718 = vmatpush.msra.mxu0 0.0
        %719 = vmatpush.msra.mxu0 0.0
        %720 = vmatpush.msra.mxu0 0.0
        %721 = vmatpush.msra.mxu0 0.0
        %722 = vmatpush.msra.mxu0 0.0
        %723 = vmatpush.msra.mxu0 0.0
        %724 = vmatpush.msra.mxu0 0.0
        %725 = vmatpush.msra.mxu0 0.0
        %726 = vmatpush.msra.mxu0 0.0
        %727 = vmatpush.msra.mxu0 0.0
        %728 = vmatpush.msra.mxu0 0.0
        %729 = vmatpush.msra.mxu0 0.0
        %730 = vmatpush.msra.mxu0 0.0
        %731 = vmatpush.msra.mxu0 0.0
        %732 = vmatpush.msra.mxu0 0.0
        %733 = vmatpush.msra.mxu0 %v713
        %734 = vmatmul.f32.gmra.mxu0 %v716
        %v735 = vpop.f32.mrf.mxu0
        %v736 = vadd.f32 0.0, %v735
        %737 = vdwg.mxu0
        %738 = vrot.lane.b32.xlu0 %v368, 48
        %v739 = vpop.permute.xlu0 %738
        %740 = vrot.lane.b32.xlu0 %v388, 48
        %v741 = vpop.permute.xlu0 %740
        %v742 = vsel %vm410, %v739, 0
        %v744 = vsel %vm410, %v741, 0
        %746 = vmatpush.xpose.msra.mxu0 0.0
        %747 = vmatpush.xpose.msra.mxu0 0.0
        %748 = vmatpush.xpose.msra.mxu0 0.0
        %749 = vmatpush.xpose.msra.mxu0 0.0
        %750 = vmatpush.xpose.msra.mxu0 0.0
        %751 = vmatpush.xpose.msra.mxu0 0.0
        %752 = vmatpush.xpose.msra.mxu0 0.0
        %753 = vmatpush.xpose.msra.mxu0 0.0
        %754 = vmatpush.xpose.msra.mxu0 0.0
        %755 = vmatpush.xpose.msra.mxu0 0.0
        %756 = vmatpush.xpose.msra.mxu0 0.0
        %757 = vmatpush.xpose.msra.mxu0 0.0
        %758 = vmatpush.xpose.msra.mxu0 0.0
        %759 = vmatpush.xpose.msra.mxu0 0.0
        %760 = vmatpush.xpose.msra.mxu0 0.0
        %761 = vmatpush.xpose.msra.mxu0 %v744
        %762 = vmatmul.f32.gmra.mxu0 %v742
        %v763 = vpop.f32.mrf.mxu0
        %v764 = vadd.f32 0.0, %v763
        %765 = vdwg.mxu0
        %v766 = vmul.f32 %v764, 0.25
        %v767 = vsel %vm438, %v766, -inf
        %768 = vmax.xlane.f32.xlu0 %v767
        %v769 = vpop.xlane.xlu0 %768
        %v770 = vsub.f32 %v766, %v769
        %v771 = vmul.f32 %v770, 1.442695
        %v772 = vpow.pop %v771
        %v773 = vsel %vm438, %v772, 0.0
        %774 = vadd.xlane.f32.xlu0 %v773
        %v775 = vpop.xlane.xlu0 %774
        %v776 = vrcp.pop %v775
        %v777 = vmul.f32 %v772, %v776
        %778 = vrot.lane.b32.xlu0 %v408, 48
        %v779 = vpop.permute.xlu0 %778
        %v782 = vsel %vm438, %v777, 0
        %784 = vmatpush.msra.mxu0 0.0
        %785 = vmatpush.msra.mxu0 0.0
        %786 = vmatpush.msra.mxu0 0.0
        %787 = vmatpush.msra.mxu0 0.0
        %788 = vmatpush.msra.mxu0 0.0
        %789 = vmatpush.msra.mxu0 0.0
        %790 = vmatpush.msra.mxu0 0.0
        %791 = vmatpush.msra.mxu0 0.0
        %792 = vmatpush.msra.mxu0 0.0
        %793 = vmatpush.msra.mxu0 0.0
        %794 = vmatpush.msra.mxu0 0.0
        %795 = vmatpush.msra.mxu0 0.0
        %796 = vmatpush.msra.mxu0 0.0
        %797 = vmatpush.msra.mxu0 0.0
        %798 = vmatpush.msra.mxu0 0.0
        %799 = vmatpush.msra.mxu0 %v779
        %800 = vmatmul.f32.gmra.mxu0 %v782
        %v801 = vpop.f32.mrf.mxu0
        %v802 = vadd.f32 0.0, %v801
        %803 = vdwg.mxu0
        %804 = vrot.lane.b32.xlu0 %v368, 32
        %v805 = vpop.permute.xlu0 %804
        %806 = vrot.lane.b32.xlu0 %v388, 32
        %v807 = vpop.permute.xlu0 %806
        %v808 = vsel %vm410, %v805, 0
        %v810 = vsel %vm410, %v807, 0
        %812 = vmatpush.xpose.msra.mxu0 0.0
        %813 = vmatpush.xpose.msra.mxu0 0.0
        %814 = vmatpush.xpose.msra.mxu0 0.0
        %815 = vmatpush.xpose.msra.mxu0 0.0
        %816 = vmatpush.xpose.msra.mxu0 0.0
        %817 = vmatpush.xpose.msra.mxu0 0.0
        %818 = vmatpush.xpose.msra.mxu0 0.0
        %819 = vmatpush.xpose.msra.mxu0 0.0
        %820 = vmatpush.xpose.msra.mxu0 0.0
        %821 = vmatpush.xpose.msra.mxu0 0.0
        %822 = vmatpush.xpose.msra.mxu0 0.0
        %823 = vmatpush.xpose.msra.mxu0 0.0
        %824 = vmatpush.xpose.msra.mxu0 0.0
        %825 = vmatpush.xpose.msra.mxu0 0.0
        %826 = vmatpush.xpose.msra.mxu0 0.0
        %827 = vmatpush.xpose.msra.mxu0 %v810
        %828 = vmatmul.f32.gmra.mxu0 %v808
        %v829 = vpop.f32.mrf.mxu0
        %v830 = vadd.f32 0.0, %v829
        %831 = vdwg.mxu0
        %v832 = vmul.f32 %v830, 0.25
        %v833 = vsel %vm438, %v832, -inf
        %834 = vmax.xlane.f32.xlu0 %v833
        %v835 = vpop.xlane.xlu0 %834
        %v836 = vsub.f32 %v832, %v835
        %v837 = vmul.f32 %v836, 1.442695
        %v838 = vpow.pop %v837
        %v839 = vsel %vm438, %v838, 0.0
        %840 = vadd.xlane.f32.xlu0 %v839
        %v841 = vpop.xlane.xlu0 %840
        %v842 = vrcp.pop %v841
        %v843 = vmul.f32 %v838, %v842
        %844 = vrot.lane.b32.xlu0 %v408, 32
        %v845 = vpop.permute.xlu0 %844
        %v848 = vsel %vm438, %v843, 0
        %850 = vmatpush.msra.mxu0 0.0
        %851 = vmatpush.msra.mxu0 0.0
        %852 = vmatpush.msra.mxu0 0.0
        %853 = vmatpush.msra.mxu0 0.0
        %854 = vmatpush.msra.mxu0 0.0
        %855 = vmatpush.msra.mxu0 0.0
        %856 = vmatpush.msra.mxu0 0.0
        %857 = vmatpush.msra.mxu0 0.0
        %858 = vmatpush.msra.mxu0 0.0
        %859 = vmatpush.msra.mxu0 0.0
        %860 = vmatpush.msra.mxu0 0.0
        %861 = vmatpush.msra.mxu0 0.0
        %862 = vmatpush.msra.mxu0 0.0
        %863 = vmatpush.msra.mxu0 0.0
        %864 = vmatpush.msra.mxu0 0.0
        %865 = vmatpush.msra.mxu0 %v845
        %866 = vmatmul.f32.gmra.mxu0 %v848
        %v867 = vpop.f32.mrf.mxu0
        %v868 = vadd.f32 0.0, %v867
        %869 = vdwg.mxu0
        %870 = vrot.lane.b32.xlu0 %v368, 16
        %v871 = vpop.permute.xlu0 %870
        %872 = vrot.lane.b32.xlu0 %v388, 16
        %v873 = vpop.permute.xlu0 %872
        %v874 = vsel %vm410, %v871, 0
        %v876 = vsel %vm410, %v873, 0
        %878 = vmatpush.xpose.msra.mxu0 0.0
        %879 = vmatpush.xpose.msra.mxu0 0.0
        %880 = vmatpush.xpose.msra.mxu0 0.0
        %881 = vmatpush.xpose.msra.mxu0 0.0
        %882 = vmatpush.xpose.msra.mxu0 0.0
        %883 = vmatpush.xpose.msra.mxu0 0.0
        %884 = vmatpush.xpose.msra.mxu0 0.0
        %885 = vmatpush.xpose.msra.mxu0 0.0
        %886 = vmatpush.xpose.msra.mxu0 0.0
        %887 = vmatpush.xpose.msra.mxu0 0.0
        %888 = vmatpush.xpose.msra.mxu0 0.0
        %889 = vmatpush.xpose.msra.mxu0 0.0
        %890 = vmatpush.xpose.msra.mxu0 0.0
        %891 = vmatpush.xpose.msra.mxu0 0.0
        %892 = vmatpush.xpose.msra.mxu0 0.0
        %893 = vmatpush.xpose.msra.mxu0 %v876
        %894 = vmatmul.f32.gmra.mxu0 %v874
        %v895 = vpop.f32.mrf.mxu0
        %v896 = vadd.f32 0.0, %v895
        %897 = vdwg.mxu0
        %v898 = vmul.f32 %v896, 0.25
        %v899 = vsel %vm438, %v898, -inf
        %900 = vmax.xlane.f32.xlu0 %v899
        %v901 = vpop.xlane.xlu0 %900
        %v902 = vsub.f32 %v898, %v901
        %v903 = vmul.f32 %v902, 1.442695
        %v904 = vpow.pop %v903
        %v905 = vsel %vm438, %v904, 0.0
        %906 = vadd.xlane.f32.xlu0 %v905
        %v907 = vpop.xlane.xlu0 %906
        %v908 = vrcp.pop %v907
        %v909 = vmul.f32 %v904, %v908
        %910 = vrot.lane.b32.xlu0 %v408, 16
        %v911 = vpop.permute.xlu0 %910
        %v914 = vsel %vm438, %v909, 0
        %916 = vmatpush.msra.mxu0 0.0
        %917 = vmatpush.msra.mxu0 0.0
        %918 = vmatpush.msra.mxu0 0.0
        %919 = vmatpush.msra.mxu0 0.0
        %920 = vmatpush.msra.mxu0 0.0
        %921 = vmatpush.msra.mxu0 0.0
        %922 = vmatpush.msra.mxu0 0.0
        %923 = vmatpush.msra.mxu0 0.0
        %924 = vmatpush.msra.mxu0 0.0
        %925 = vmatpush.msra.mxu0 0.0
        %926 = vmatpush.msra.mxu0 0.0
        %927 = vmatpush.msra.mxu0 0.0
        %928 = vmatpush.msra.mxu0 0.0
        %929 = vmatpush.msra.mxu0 0.0
        %930 = vmatpush.msra.mxu0 0.0
        %931 = vmatpush.msra.mxu0 %v911
        %932 = vmatmul.f32.gmra.mxu0 %v914
        %v933 = vpop.f32.mrf.mxu0
        %v934 = vadd.f32 0.0, %v933
        %935 = vdwg.mxu0
        %937 = vrot.lane.b32.xlu0 %v538, 16
        %v938 = vpop.permute.xlu0 %937
        %941 = vrot.lane.b32.xlu0 %v604, 32
        %v942 = vpop.permute.xlu0 %941
        %945 = vrot.lane.b32.xlu0 %v670, 48
        %v946 = vpop.permute.xlu0 %945
        %949 = vrot.lane.b32.xlu0 %v736, 64
        %v950 = vpop.permute.xlu0 %949
        %953 = vrot.lane.b32.xlu0 %v802, 80
        %v954 = vpop.permute.xlu0 %953
        %957 = vrot.lane.b32.xlu0 %v868, 96
        %v958 = vpop.permute.xlu0 %957
        %961 = vrot.lane.b32.xlu0 %v934, 112
        %v962 = vpop.permute.xlu0 %961
        %v964 = vsel %vm410, %v471, %v938
        %vm965 = vcmask 261120
        %v966 = vsel %vm965, %v964, %v942
        %vm967 = vcmask 392192
        %v968 = vsel %vm967, %v966, %v946
        %vm969 = vcmask 523264
        %v970 = vsel %vm969, %v968, %v950
        %vm971 = vcmask 654336
        %v972 = vsel %vm971, %v970, %v954
        %vm973 = vcmask 785408
        %v974 = vsel %vm973, %v972, %v958
        %vm975 = vcmask 916480
        %v976 = vsel %vm975, %v974, %v962
        %v977 = vld [vmem:[%s3] sm:$0xff]
        %v978 = vld [vmem:[%s3 + $0x8] sm:$0xff]
        %v979 = vld [vmem:[%s3 + $0x10] sm:$0xff]
        %v980 = vld [vmem:[%s3 + $0x18] sm:$0xff]
        %v981 = vld [vmem:[%s3 + $0x20] sm:$0xff]
        %v982 = vld [vmem:[%s3 + $0x28] sm:$0xff]
        %v983 = vld [vmem:[%s3 + $0x30] sm:$0xff]
        %v984 = vld [vmem:[%s3 + $0x38] sm:$0xff]
        %v985 = vld [vmem:[%s3 + $0x40] sm:$0xff]
        %v986 = vld [vmem:[%s3 + $0x48] sm:$0xff]
        %v987 = vld [vmem:[%s3 + $0x50] sm:$0xff]
        %v988 = vld [vmem:[%s3 + $0x58] sm:$0xff]
        %v989 = vld [vmem:[%s3 + $0x60] sm:$0xff]
        %v990 = vld [vmem:[%s3 + $0x68] sm:$0xff]
        %v991 = vld [vmem:[%s3 + $0x70] sm:$0xff]
        %v992 = vld [vmem:[%s3 + $0x78] sm:$0xff]
        %v993 = vld [vmem:[#allocation6] sm:$0x1]
        %v995 = vperm.slane %v993, 0
        %997 = vmatpush.msra.mxu0 %v992
        %998 = vmatpush.msra.mxu0 %v991
        %999 = vmatpush.msra.mxu0 %v990
        %1000 = vmatpush.msra.mxu0 %v989
        %1001 = vmatpush.msra.mxu0 %v988
        %1002 = vmatpush.msra.mxu0 %v987
        %1003 = vmatpush.msra.mxu0 %v986
        %1004 = vmatpush.msra.mxu0 %v985
        %1005 = vmatpush.msra.mxu0 %v984
        %1006 = vmatpush.msra.mxu0 %v983
        %1007 = vmatpush.msra.mxu0 %v982
        %1008 = vmatpush.msra.mxu0 %v981
        %1009 = vmatpush.msra.mxu0 %v980
        %1010 = vmatpush.msra.mxu0 %v979
        %1011 = vmatpush.msra.mxu0 %v978
        %1012 = vmatpush.msra.mxu0 %v977
        %1013 = vmatmul.f32.gmra.mxu0 %v976
        %v1014 = vpop.f32.mrf.mxu0
        %v1015 = vadd.f32 %v995, %v1014
        %1016 = vdwg.mxu0
        %v1017 = vadd.f32 %v266, %v1015
        %1018 = vst [vmem:[%s265] sm:$0xff] %v1017
        %p1019 = scmp.lt.s32.totalorder %s18, 1
        %s1020 = scalar_select %p1019, %s18, 1
        %s1021 = smul.addr %s1020, 8
        %s1022 = scalar_lea.vmem %s5, %s1021
        // Predicated region
        $region53: #{sentiment_classifier_pallas.4} parent=39 // pred_check
          %p1023 = pneg %p146
        $region54: #{sentiment_classifier_pallas.4} parent=39 // pred_check_branch
          %1025 = sbr.rel (%p1023) target = $region56
        $region55: #{sentiment_classifier_pallas.4} parent=39 // pred_region
          _
        $region56: #{sentiment_classifier_pallas.4} parent=39 // pred_fallthru
          _
      $region40: #{sentiment_classifier_pallas.4} parent=5 // pred_fallthru
        _
      %p1026 = scmp.le.s32.totalorder 2, %s13
      // Predicated region
      $region57: #{sentiment_classifier_pallas.4} parent=5 // pred_check
        %p1027 = pneg %p1026
      $region58: #{sentiment_classifier_pallas.4} parent=5 // pred_check_branch
        %1029 = sbr.rel (%p1027) target = $region60
      $region59: #{sentiment_classifier_pallas.4} parent=5 // pred_region
        %s1030 = ssub.s32 %s13, 2
        // Predicated region
        $region61: #{sentiment_classifier_pallas.4} parent=59 // pred_check
          %p1031 = pneg %p152
        $region62: #{sentiment_classifier_pallas.4} parent=59 // pred_check_branch
          %1033 = sbr.rel (%p1031) target = $region64
        $region63: #{sentiment_classifier_pallas.4} parent=59 // pred_region
          %p1034 = scmp.lt.s32.totalorder %s19, 1
          %s1035 = scalar_select %p1034, %s19, 1
          %s1036 = smul.addr %s1035, 8
          %s1037 = scalar_lea.vmem %s5, %s1036
        $region64: #{sentiment_classifier_pallas.4} parent=59 // pred_fallthru
          _
      $region60: #{sentiment_classifier_pallas.4} parent=5 // pred_fallthru
        _
    $region6: #{sentiment_classifier_pallas.4} parent=1 // loop_footer
      %s17 = sadd.s32 1, %s13
    $region7: #{sentiment_classifier_pallas.4} parent=1 // loop_footer_branch
      %12 = sbr.rel target = $region3
    $region8: #{sentiment_classifier_pallas.4} parent=1 // loop_exit
      _
    %1038 = vsyncpa [#allocation3], 1
    %s1039 = scalar_lea.sflag [#allocation3], 1
    %1040 = vsyncpa %s1039, 1
    %1041 = vsyncpa [#allocation5], 1

</llo_original>
